<compile_context>
chip_gen: v5e
topology: v5e:2x2
jax: 0.10.0
libtpu: 0.0.40
codegen_flags: <defaults>
</compile_context>

<pallas_src>
import functools

import jax
import jax.numpy as jnp
from jax.experimental import pallas as pl
from jax.experimental.pallas import tpu as pltpu

K = 7            # conv kernel size
PAD = K // 2     # 'same' padding = 3


def _band_toeplitz(k2d, w):
    """(K, K) conv kernel -> (K*W, W) stacked banded-Toeplitz matrices.

    Row block di (rows di*W:(di+1)*W) is T_di with
        T_di[c, x] = k2d[di, c - x + PAD]   if |c - x| <= PAD else 0
    so that (rows @ T_di)[r, x] = sum_dj rows[r, x + dj - PAD] * k2d[di, dj]
    with zero padding along W ('same' behaviour in the lane direction).
    """
    c = jnp.arange(w)[:, None]
    xw = jnp.arange(w)[None, :]
    dj = c - xw + PAD                                    # (W, W)
    valid = (dj >= 0) & (dj < K)
    t = k2d[:, jnp.clip(dj, 0, K - 1)]                   # (K, W, W)
    t = jnp.where(valid[None, :, :], t, 0.0)
    return t.reshape(K * w, w).astype(jnp.float32)


def pa_kernel(x_ref, t1_ref, t2_ref, b_ref, out_ref, *, img_h):
    """One group of images per grid step, images stacked along the sublane axis.

    x_ref  : (Nb*H, W)  raw input rows                 (VMEM)
    t1_ref : (K*W, W)   banded-Toeplitz mats, conv1    (VMEM, resident)
    t2_ref : (K*W, W)   banded-Toeplitz mats, conv2    (VMEM, resident)
    b_ref  : (2,)       [bias1, bias2]                 (SMEM)
    out_ref: (Nb*H, W)
    """
    x = x_ref[...]                                       # (R, W) f32
    R, W = x.shape
    # row index of each output row inside its own image; masks the sublane
    # shifts so they never leak across stacked images / block edges
    row_in_img = jax.lax.broadcasted_iota(jnp.int32, (R, W), 0) % img_h

    def conv7x7_same(inp, t_ref, bias):
        acc = jnp.zeros((R, W), jnp.float32)
        for di in range(K):                              # 7 sublane taps
            t_di = t_ref[pl.ds(di * W, W), :]            # (W, W)
            # all 7 lane-direction taps of kernel row `di`: one MXU matmul
            prod = jnp.dot(inp, t_di,
                           preferred_element_type=jnp.float32,
                           precision=jax.lax.Precision.HIGHEST)
            off = di - PAD                               # source-row offset
            if off == 0:
                acc = acc + prod
            else:
                shifted = pltpu.roll(prod, shift=(-off) % R, axis=0)
                src = row_in_img + off
                acc = acc + jnp.where((src >= 0) & (src < img_h), shifted, 0.0)
        return acc + bias

    m = jnp.maximum(conv7x7_same(x, t1_ref, b_ref[0]), 0.0)   # conv1 + ReLU
    y = jax.nn.sigmoid(conv7x7_same(m, t2_ref, b_ref[1]))     # conv2 + sigmoid
    out_ref[...] = y * x                                       # attention


@jax.jit
def pa_layer(x_nchw, w1, b1, w2, b2):
    """x_nchw: (N, 1, H, W). Returns (N, 1, H, W) float32."""
    N, C, H, W = x_nchw.shape
    assert C == 1, "PALayer convs are 1->1 channel"
    x = x_nchw[:, 0].astype(jnp.float32)                 # (N, H, W)

    # batch several images per grid step (amortizes the ~0.35us/step overhead);
    # stacking on the sublane axis needs only a free contiguous reshape
    nb = max(1, min(N, 512 // H))
    g = -(-N // nb)                                      # ceil(N / nb)
    n_pad = g * nb
    if n_pad != N:
        x = jnp.concatenate(
            [x, jnp.zeros((n_pad - N, H, W), jnp.float32)], axis=0)
    r = nb * H
    xg = x.reshape(g, r, W)                              # (G, Nb*H, W)

    t1 = _band_toeplitz(w1.astype(jnp.float32), W)       # (K*W, W)
    t2 = _band_toeplitz(w2.astype(jnp.float32), W)
    b = jnp.stack([b1, b2]).astype(jnp.float32)          # (2,)

    out = pl.pallas_call(
        functools.partial(pa_kernel, img_h=H),
        out_shape=jax.ShapeDtypeStruct((g, r, W), jnp.float32),
        grid=(g,),
        in_specs=[
            pl.BlockSpec((None, r, W), lambda i: (i, 0, 0)),   # x group
            pl.BlockSpec((K * W, W), lambda i: (0, 0)),        # T1 (resident)
            pl.BlockSpec((K * W, W), lambda i: (0, 0)),        # T2 (resident)
            pl.BlockSpec(memory_space=pltpu.SMEM),             # biases
        ],
        out_specs=pl.BlockSpec((None, r, W), lambda i: (i, 0, 0)),
        compiler_params=pltpu.CompilerParams(
            dimension_semantics=("parallel",)),                # v7x: 2 TCs
    )(xg, t1, t2, b)

    out = out.reshape(n_pad, H, W)[:N]
    return out[:, None, :, :]                            # (N, 1, H, W)


def _reference(x_nchw, w1, b1, w2, b2):
    """Pure-JAX reference using lax conv (for correctness check)."""
    x = x_nchw.astype(jnp.float32)
    dn = jax.lax.conv_dimension_numbers(x.shape, (1, 1, K, K),
                                        ("NCHW", "OIHW", "NCHW"))
    y = jax.lax.conv_general_dilated(
        x, w1[None, None], (1, 1), "SAME", dimension_numbers=dn,
        precision=jax.lax.Precision.HIGHEST) + b1
    y = jnp.maximum(y, 0.0)
    y = jax.lax.conv_general_dilated(
        y, w2[None, None], (1, 1), "SAME", dimension_numbers=dn,
        precision=jax.lax.Precision.HIGHEST) + b2
    y = jax.nn.sigmoid(y)
    return y * x


if __name__ == "__main__":
    key = jax.random.PRNGKey(0)
    k_x, k_w1, k_b1, k_w2, k_b2 = jax.random.split(key, 5)

    N, C, H, W = 2, 1, 16, 16
    x = jax.random.normal(k_x, (N, C, H, W), dtype=jnp.float32)

    # Deterministic params, torch default-style uniform(-1/sqrt(fan_in), +...)
    bound = 1.0 / (K * K) ** 0.5
    w1 = jax.random.uniform(k_w1, (K, K), jnp.float32, -bound, bound)
    b1 = jax.random.uniform(k_b1, (), jnp.float32, -bound, bound)
    w2 = jax.random.uniform(k_w2, (K, K), jnp.float32, -bound, bound)
    b2 = jax.random.uniform(k_b2, (), jnp.float32, -bound, bound)

    out = jax.block_until_ready(pa_layer(x, w1, b1, w2, b2))

    ref = _reference(x, w1, b1, w2, b2)
    assert out.shape == (N, C, H, W)
    assert jnp.allclose(out, ref, atol=2e-5, rtol=2e-5), "mismatch vs reference"

    print("KERNEL_OK")
</pallas_src>

<mosaic_0001>
module attributes {stable_mosaic.version = 11 : i64} {
  func.func @pa_kernel(%arg0: i32, %arg1: memref<1x32x16xf32, #tpu.memory_space<vmem>>, %arg2: memref<112x16xf32, #tpu.memory_space<vmem>>, %arg3: memref<112x16xf32, #tpu.memory_space<vmem>>, %arg4: memref<2xf32, #tpu.memory_space<smem>>, %arg5: memref<1x32x16xf32, #tpu.memory_space<vmem>>) attributes {dimension_semantics = [#tpu.dimension_semantics<parallel>], iteration_bounds = array<i64: 1>, scalar_prefetch = 0 : i64, scratch_operands = 0 : i64, tpu.core_type = #tpu.core_type<tc>, window_params = [{transform_indices = @transform_0, window_bounds = array<i64: 1, 32, 16>}, {pipeline_mode = #tpu.pipeline_mode<synchronous>, transform_indices = @transform_1, window_bounds = array<i64: 112, 16>}, {pipeline_mode = #tpu.pipeline_mode<synchronous>, transform_indices = @transform_2, window_bounds = array<i64: 112, 16>}, {transform_indices = @transform_3, window_bounds = array<i64: 2>}, {transform_indices = @transform_4, window_bounds = array<i64: 1, 32, 16>}]} {
    %c0 = arith.constant 0 : index
    %c0_0 = arith.constant 0 : index
    %c0_1 = arith.constant 0 : index
    %0 = vector.load %arg1[%c0, %c0_0, %c0_1] : memref<1x32x16xf32, #tpu.memory_space<vmem>>, vector<1x32x16xf32>
    %1 = vector.shape_cast %0 : vector<1x32x16xf32> to vector<32x16xf32>
    %2 = tpu.iota {dimensions = array<i32: 0>} : vector<32x16xi32>
    %c16_i32 = arith.constant 16 : i32
    %c0_i32 = arith.constant 0 : i32
    %3 = arith.cmpi eq, %c16_i32, %c0_i32 : i32
    %c1_i32 = arith.constant 1 : i32
    %4 = arith.select %3, %c1_i32, %c16_i32 : i32
    %5 = vector.broadcast %4 : i32 to vector<32x16xi32>
    %6 = arith.remsi %2, %5 : vector<32x16xi32>
    %c0_i32_2 = arith.constant 0 : i32
    %7 = vector.broadcast %c0_i32_2 : i32 to vector<32x16xi32>
    %8 = arith.cmpi ne, %6, %7 : vector<32x16xi32>
    %c0_i32_3 = arith.constant 0 : i32
    %9 = vector.broadcast %c0_i32_3 : i32 to vector<32x16xi32>
    %10 = arith.cmpi slt, %6, %9 : vector<32x16xi32>
    %c0_i32_4 = arith.constant 0 : i32
    %11 = arith.cmpi slt, %4, %c0_i32_4 : i32
    %12 = vector.broadcast %11 : i1 to vector<32x16xi1>
    %13 = vector.broadcast %12 : vector<32x16xi1> to vector<32x16xi1>
    %14 = arith.xori %10, %13 : vector<32x16xi1>
    %15 = arith.andi %14, %8 : vector<32x16xi1>
    %16 = vector.broadcast %4 : i32 to vector<32x16xi32>
    %17 = arith.addi %6, %16 : vector<32x16xi32>
    %18 = arith.select %15, %17, %6 : vector<32x16xi1>, vector<32x16xi32>
    %c0_5 = arith.constant 0 : index
    %19 = memref.load %arg4[%c0_5] : memref<2xf32, #tpu.memory_space<smem>>
    %cst = arith.constant 0.000000e+00 : f32
    %20 = vector.broadcast %cst : f32 to vector<32x16xf32>
    %c0_6 = arith.constant 0 : index
    %c0_7 = arith.constant 0 : index
    %21 = vector.load %arg2[%c0_6, %c0_7] : memref<112x16xf32, #tpu.memory_space<vmem>>, vector<16x16xf32>
    %cst_8 = arith.constant dense<0.000000e+00> : vector<32x16xf32>
    %22 = tpu.matmul %1, %21, %cst_8 {dimension_numbers = #tpu.dot_dimension_numbers<[1], [0], [0], [1], [0, 0, 1, 1], [], []>, precision = #tpu.contract_precision<fp32>} : vector<32x16xf32>, vector<16x16xf32>, vector<32x16xf32> -> vector<32x16xf32>
    %c3_i32 = arith.constant 3 : i32
    %23 = tpu.dynamic_rotate %22 by %c3_i32 dim 0 : vector<32x16xf32>, i32 -> vector<32x16xf32>
    %c-3_i32 = arith.constant -3 : i32
    %24 = vector.broadcast %c-3_i32 : i32 to vector<32x16xi32>
    %25 = arith.addi %18, %24 : vector<32x16xi32>
    %c0_i32_9 = arith.constant 0 : i32
    %26 = vector.broadcast %c0_i32_9 : i32 to vector<32x16xi32>
    %27 = arith.cmpi sge, %25, %26 : vector<32x16xi32>
    %c16_i32_10 = arith.constant 16 : i32
    %28 = vector.broadcast %c16_i32_10 : i32 to vector<32x16xi32>
    %29 = arith.cmpi slt, %25, %28 : vector<32x16xi32>
    %30 = arith.andi %27, %29 : vector<32x16xi1>
    %cst_11 = arith.constant 0.000000e+00 : f32
    %31 = vector.broadcast %cst_11 : f32 to vector<32x16xf32>
    %32 = arith.select %30, %23, %31 : vector<32x16xi1>, vector<32x16xf32>
    %33 = arith.addf %20, %32 : vector<32x16xf32>
    %c16 = arith.constant 16 : index
    %c0_12 = arith.constant 0 : index
    %34 = vector.load %arg2[%c16, %c0_12] : memref<112x16xf32, #tpu.memory_space<vmem>>, vector<16x16xf32>
    %cst_13 = arith.constant dense<0.000000e+00> : vector<32x16xf32>
    %35 = tpu.matmul %1, %34, %cst_13 {dimension_numbers = #tpu.dot_dimension_numbers<[1], [0], [0], [1], [0, 0, 1, 1], [], []>, precision = #tpu.contract_precision<fp32>} : vector<32x16xf32>, vector<16x16xf32>, vector<32x16xf32> -> vector<32x16xf32>
    %c2_i32 = arith.constant 2 : i32
    %36 = tpu.dynamic_rotate %35 by %c2_i32 dim 0 : vector<32x16xf32>, i32 -> vector<32x16xf32>
    %c-2_i32 = arith.constant -2 : i32
    %37 = vector.broadcast %c-2_i32 : i32 to vector<32x16xi32>
    %38 = arith.addi %18, %37 : vector<32x16xi32>
    %c0_i32_14 = arith.constant 0 : i32
    %39 = vector.broadcast %c0_i32_14 : i32 to vector<32x16xi32>
    %40 = arith.cmpi sge, %38, %39 : vector<32x16xi32>
    %c16_i32_15 = arith.constant 16 : i32
    %41 = vector.broadcast %c16_i32_15 : i32 to vector<32x16xi32>
    %42 = arith.cmpi slt, %38, %41 : vector<32x16xi32>
    %43 = arith.andi %40, %42 : vector<32x16xi1>
    %cst_16 = arith.constant 0.000000e+00 : f32
    %44 = vector.broadcast %cst_16 : f32 to vector<32x16xf32>
    %45 = arith.select %43, %36, %44 : vector<32x16xi1>, vector<32x16xf32>
    %46 = arith.addf %33, %45 : vector<32x16xf32>
    %c32 = arith.constant 32 : index
    %c0_17 = arith.constant 0 : index
    %47 = vector.load %arg2[%c32, %c0_17] : memref<112x16xf32, #tpu.memory_space<vmem>>, vector<16x16xf32>
    %cst_18 = arith.constant dense<0.000000e+00> : vector<32x16xf32>
    %48 = tpu.matmul %1, %47, %cst_18 {dimension_numbers = #tpu.dot_dimension_numbers<[1], [0], [0], [1], [0, 0, 1, 1], [], []>, precision = #tpu.contract_precision<fp32>} : vector<32x16xf32>, vector<16x16xf32>, vector<32x16xf32> -> vector<32x16xf32>
    %c1_i32_19 = arith.constant 1 : i32
    %49 = tpu.dynamic_rotate %48 by %c1_i32_19 dim 0 : vector<32x16xf32>, i32 -> vector<32x16xf32>
    %c-1_i32 = arith.constant -1 : i32
    %50 = vector.broadcast %c-1_i32 : i32 to vector<32x16xi32>
    %51 = arith.addi %18, %50 : vector<32x16xi32>
    %c0_i32_20 = arith.constant 0 : i32
    %52 = vector.broadcast %c0_i32_20 : i32 to vector<32x16xi32>
    %53 = arith.cmpi sge, %51, %52 : vector<32x16xi32>
    %c16_i32_21 = arith.constant 16 : i32
    %54 = vector.broadcast %c16_i32_21 : i32 to vector<32x16xi32>
    %55 = arith.cmpi slt, %51, %54 : vector<32x16xi32>
    %56 = arith.andi %53, %55 : vector<32x16xi1>
    %cst_22 = arith.constant 0.000000e+00 : f32
    %57 = vector.broadcast %cst_22 : f32 to vector<32x16xf32>
    %58 = arith.select %56, %49, %57 : vector<32x16xi1>, vector<32x16xf32>
    %59 = arith.addf %46, %58 : vector<32x16xf32>
    %c48 = arith.constant 48 : index
    %c0_23 = arith.constant 0 : index
    %60 = vector.load %arg2[%c48, %c0_23] : memref<112x16xf32, #tpu.memory_space<vmem>>, vector<16x16xf32>
    %cst_24 = arith.constant dense<0.000000e+00> : vector<32x16xf32>
    %61 = tpu.matmul %1, %60, %cst_24 {dimension_numbers = #tpu.dot_dimension_numbers<[1], [0], [0], [1], [0, 0, 1, 1], [], []>, precision = #tpu.contract_precision<fp32>} : vector<32x16xf32>, vector<16x16xf32>, vector<32x16xf32> -> vector<32x16xf32>
    %62 = arith.addf %59, %61 : vector<32x16xf32>
    %c64 = arith.constant 64 : index
    %c0_25 = arith.constant 0 : index
    %63 = vector.load %arg2[%c64, %c0_25] : memref<112x16xf32, #tpu.memory_space<vmem>>, vector<16x16xf32>
    %cst_26 = arith.constant dense<0.000000e+00> : vector<32x16xf32>
    %64 = tpu.matmul %1, %63, %cst_26 {dimension_numbers = #tpu.dot_dimension_numbers<[1], [0], [0], [1], [0, 0, 1, 1], [], []>, precision = #tpu.contract_precision<fp32>} : vector<32x16xf32>, vector<16x16xf32>, vector<32x16xf32> -> vector<32x16xf32>
    %c31_i32 = arith.constant 31 : i32
    %65 = tpu.dynamic_rotate %64 by %c31_i32 dim 0 : vector<32x16xf32>, i32 -> vector<32x16xf32>
    %c1_i32_27 = arith.constant 1 : i32
    %66 = vector.broadcast %c1_i32_27 : i32 to vector<32x16xi32>
    %67 = arith.addi %18, %66 : vector<32x16xi32>
    %c0_i32_28 = arith.constant 0 : i32
    %68 = vector.broadcast %c0_i32_28 : i32 to vector<32x16xi32>
    %69 = arith.cmpi sge, %67, %68 : vector<32x16xi32>
    %c16_i32_29 = arith.constant 16 : i32
    %70 = vector.broadcast %c16_i32_29 : i32 to vector<32x16xi32>
    %71 = arith.cmpi slt, %67, %70 : vector<32x16xi32>
    %72 = arith.andi %69, %71 : vector<32x16xi1>
    %cst_30 = arith.constant 0.000000e+00 : f32
    %73 = vector.broadcast %cst_30 : f32 to vector<32x16xf32>
    %74 = arith.select %72, %65, %73 : vector<32x16xi1>, vector<32x16xf32>
    %75 = arith.addf %62, %74 : vector<32x16xf32>
    %c80 = arith.constant 80 : index
    %c0_31 = arith.constant 0 : index
    %76 = vector.load %arg2[%c80, %c0_31] : memref<112x16xf32, #tpu.memory_space<vmem>>, vector<16x16xf32>
    %cst_32 = arith.constant dense<0.000000e+00> : vector<32x16xf32>
    %77 = tpu.matmul %1, %76, %cst_32 {dimension_numbers = #tpu.dot_dimension_numbers<[1], [0], [0], [1], [0, 0, 1, 1], [], []>, precision = #tpu.contract_precision<fp32>} : vector<32x16xf32>, vector<16x16xf32>, vector<32x16xf32> -> vector<32x16xf32>
    %c30_i32 = arith.constant 30 : i32
    %78 = tpu.dynamic_rotate %77 by %c30_i32 dim 0 : vector<32x16xf32>, i32 -> vector<32x16xf32>
    %c2_i32_33 = arith.constant 2 : i32
    %79 = vector.broadcast %c2_i32_33 : i32 to vector<32x16xi32>
    %80 = arith.addi %18, %79 : vector<32x16xi32>
    %c0_i32_34 = arith.constant 0 : i32
    %81 = vector.broadcast %c0_i32_34 : i32 to vector<32x16xi32>
    %82 = arith.cmpi sge, %80, %81 : vector<32x16xi32>
    %c16_i32_35 = arith.constant 16 : i32
    %83 = vector.broadcast %c16_i32_35 : i32 to vector<32x16xi32>
    %84 = arith.cmpi slt, %80, %83 : vector<32x16xi32>
    %85 = arith.andi %82, %84 : vector<32x16xi1>
    %cst_36 = arith.constant 0.000000e+00 : f32
    %86 = vector.broadcast %cst_36 : f32 to vector<32x16xf32>
    %87 = arith.select %85, %78, %86 : vector<32x16xi1>, vector<32x16xf32>
    %88 = arith.addf %75, %87 : vector<32x16xf32>
    %c96 = arith.constant 96 : index
    %c0_37 = arith.constant 0 : index
    %89 = vector.load %arg2[%c96, %c0_37] : memref<112x16xf32, #tpu.memory_space<vmem>>, vector<16x16xf32>
    %cst_38 = arith.constant dense<0.000000e+00> : vector<32x16xf32>
    %90 = tpu.matmul %1, %89, %cst_38 {dimension_numbers = #tpu.dot_dimension_numbers<[1], [0], [0], [1], [0, 0, 1, 1], [], []>, precision = #tpu.contract_precision<fp32>} : vector<32x16xf32>, vector<16x16xf32>, vector<32x16xf32> -> vector<32x16xf32>
    %c29_i32 = arith.constant 29 : i32
    %91 = tpu.dynamic_rotate %90 by %c29_i32 dim 0 : vector<32x16xf32>, i32 -> vector<32x16xf32>
    %c3_i32_39 = arith.constant 3 : i32
    %92 = vector.broadcast %c3_i32_39 : i32 to vector<32x16xi32>
    %93 = arith.addi %18, %92 : vector<32x16xi32>
    %c0_i32_40 = arith.constant 0 : i32
    %94 = vector.broadcast %c0_i32_40 : i32 to vector<32x16xi32>
    %95 = arith.cmpi sge, %93, %94 : vector<32x16xi32>
    %c16_i32_41 = arith.constant 16 : i32
    %96 = vector.broadcast %c16_i32_41 : i32 to vector<32x16xi32>
    %97 = arith.cmpi slt, %93, %96 : vector<32x16xi32>
    %98 = arith.andi %95, %97 : vector<32x16xi1>
    %cst_42 = arith.constant 0.000000e+00 : f32
    %99 = vector.broadcast %cst_42 : f32 to vector<32x16xf32>
    %100 = arith.select %98, %91, %99 : vector<32x16xi1>, vector<32x16xf32>
    %101 = arith.addf %88, %100 : vector<32x16xf32>
    %102 = vector.broadcast %19 : f32 to vector<32x16xf32>
    %103 = arith.addf %101, %102 : vector<32x16xf32>
    %cst_43 = arith.constant 0.000000e+00 : f32
    %104 = vector.broadcast %cst_43 : f32 to vector<32x16xf32>
    %105 = arith.maximumf %103, %104 : vector<32x16xf32>
    %c1 = arith.constant 1 : index
    %106 = memref.load %arg4[%c1] : memref<2xf32, #tpu.memory_space<smem>>
    %cst_44 = arith.constant 0.000000e+00 : f32
    %107 = vector.broadcast %cst_44 : f32 to vector<32x16xf32>
    %c0_45 = arith.constant 0 : index
    %c0_46 = arith.constant 0 : index
    %108 = vector.load %arg3[%c0_45, %c0_46] : memref<112x16xf32, #tpu.memory_space<vmem>>, vector<16x16xf32>
    %cst_47 = arith.constant dense<0.000000e+00> : vector<32x16xf32>
    %109 = tpu.matmul %105, %108, %cst_47 {dimension_numbers = #tpu.dot_dimension_numbers<[1], [0], [0], [1], [0, 0, 1, 1], [], []>, precision = #tpu.contract_precision<fp32>} : vector<32x16xf32>, vector<16x16xf32>, vector<32x16xf32> -> vector<32x16xf32>
    %c3_i32_48 = arith.constant 3 : i32
    %110 = tpu.dynamic_rotate %109 by %c3_i32_48 dim 0 : vector<32x16xf32>, i32 -> vector<32x16xf32>
    %c-3_i32_49 = arith.constant -3 : i32
    %111 = vector.broadcast %c-3_i32_49 : i32 to vector<32x16xi32>
    %112 = arith.addi %18, %111 : vector<32x16xi32>
    %c0_i32_50 = arith.constant 0 : i32
    %113 = vector.broadcast %c0_i32_50 : i32 to vector<32x16xi32>
    %114 = arith.cmpi sge, %112, %113 : vector<32x16xi32>
    %c16_i32_51 = arith.constant 16 : i32
    %115 = vector.broadcast %c16_i32_51 : i32 to vector<32x16xi32>
    %116 = arith.cmpi slt, %112, %115 : vector<32x16xi32>
    %117 = arith.andi %114, %116 : vector<32x16xi1>
    %cst_52 = arith.constant 0.000000e+00 : f32
    %118 = vector.broadcast %cst_52 : f32 to vector<32x16xf32>
    %119 = arith.select %117, %110, %118 : vector<32x16xi1>, vector<32x16xf32>
    %120 = arith.addf %107, %119 : vector<32x16xf32>
    %c16_53 = arith.constant 16 : index
    %c0_54 = arith.constant 0 : index
    %121 = vector.load %arg3[%c16_53, %c0_54] : memref<112x16xf32, #tpu.memory_space<vmem>>, vector<16x16xf32>
    %cst_55 = arith.constant dense<0.000000e+00> : vector<32x16xf32>
    %122 = tpu.matmul %105, %121, %cst_55 {dimension_numbers = #tpu.dot_dimension_numbers<[1], [0], [0], [1], [0, 0, 1, 1], [], []>, precision = #tpu.contract_precision<fp32>} : vector<32x16xf32>, vector<16x16xf32>, vector<32x16xf32> -> vector<32x16xf32>
    %c2_i32_56 = arith.constant 2 : i32
    %123 = tpu.dynamic_rotate %122 by %c2_i32_56 dim 0 : vector<32x16xf32>, i32 -> vector<32x16xf32>
    %c-2_i32_57 = arith.constant -2 : i32
    %124 = vector.broadcast %c-2_i32_57 : i32 to vector<32x16xi32>
    %125 = arith.addi %18, %124 : vector<32x16xi32>
    %c0_i32_58 = arith.constant 0 : i32
    %126 = vector.broadcast %c0_i32_58 : i32 to vector<32x16xi32>
    %127 = arith.cmpi sge, %125, %126 : vector<32x16xi32>
    %c16_i32_59 = arith.constant 16 : i32
    %128 = vector.broadcast %c16_i32_59 : i32 to vector<32x16xi32>
    %129 = arith.cmpi slt, %125, %128 : vector<32x16xi32>
    %130 = arith.andi %127, %129 : vector<32x16xi1>
    %cst_60 = arith.constant 0.000000e+00 : f32
    %131 = vector.broadcast %cst_60 : f32 to vector<32x16xf32>
    %132 = arith.select %130, %123, %131 : vector<32x16xi1>, vector<32x16xf32>
    %133 = arith.addf %120, %132 : vector<32x16xf32>
    %c32_61 = arith.constant 32 : index
    %c0_62 = arith.constant 0 : index
    %134 = vector.load %arg3[%c32_61, %c0_62] : memref<112x16xf32, #tpu.memory_space<vmem>>, vector<16x16xf32>
    %cst_63 = arith.constant dense<0.000000e+00> : vector<32x16xf32>
    %135 = tpu.matmul %105, %134, %cst_63 {dimension_numbers = #tpu.dot_dimension_numbers<[1], [0], [0], [1], [0, 0, 1, 1], [], []>, precision = #tpu.contract_precision<fp32>} : vector<32x16xf32>, vector<16x16xf32>, vector<32x16xf32> -> vector<32x16xf32>
    %c1_i32_64 = arith.constant 1 : i32
    %136 = tpu.dynamic_rotate %135 by %c1_i32_64 dim 0 : vector<32x16xf32>, i32 -> vector<32x16xf32>
    %c-1_i32_65 = arith.constant -1 : i32
    %137 = vector.broadcast %c-1_i32_65 : i32 to vector<32x16xi32>
    %138 = arith.addi %18, %137 : vector<32x16xi32>
    %c0_i32_66 = arith.constant 0 : i32
    %139 = vector.broadcast %c0_i32_66 : i32 to vector<32x16xi32>
    %140 = arith.cmpi sge, %138, %139 : vector<32x16xi32>
    %c16_i32_67 = arith.constant 16 : i32
    %141 = vector.broadcast %c16_i32_67 : i32 to vector<32x16xi32>
    %142 = arith.cmpi slt, %138, %141 : vector<32x16xi32>
    %143 = arith.andi %140, %142 : vector<32x16xi1>
    %cst_68 = arith.constant 0.000000e+00 : f32
    %144 = vector.broadcast %cst_68 : f32 to vector<32x16xf32>
    %145 = arith.select %143, %136, %144 : vector<32x16xi1>, vector<32x16xf32>
    %146 = arith.addf %133, %145 : vector<32x16xf32>
    %c48_69 = arith.constant 48 : index
    %c0_70 = arith.constant 0 : index
    %147 = vector.load %arg3[%c48_69, %c0_70] : memref<112x16xf32, #tpu.memory_space<vmem>>, vector<16x16xf32>
    %cst_71 = arith.constant dense<0.000000e+00> : vector<32x16xf32>
    %148 = tpu.matmul %105, %147, %cst_71 {dimension_numbers = #tpu.dot_dimension_numbers<[1], [0], [0], [1], [0, 0, 1, 1], [], []>, precision = #tpu.contract_precision<fp32>} : vector<32x16xf32>, vector<16x16xf32>, vector<32x16xf32> -> vector<32x16xf32>
    %149 = arith.addf %146, %148 : vector<32x16xf32>
    %c64_72 = arith.constant 64 : index
    %c0_73 = arith.constant 0 : index
    %150 = vector.load %arg3[%c64_72, %c0_73] : memref<112x16xf32, #tpu.memory_space<vmem>>, vector<16x16xf32>
    %cst_74 = arith.constant dense<0.000000e+00> : vector<32x16xf32>
    %151 = tpu.matmul %105, %150, %cst_74 {dimension_numbers = #tpu.dot_dimension_numbers<[1], [0], [0], [1], [0, 0, 1, 1], [], []>, precision = #tpu.contract_precision<fp32>} : vector<32x16xf32>, vector<16x16xf32>, vector<32x16xf32> -> vector<32x16xf32>
    %c31_i32_75 = arith.constant 31 : i32
    %152 = tpu.dynamic_rotate %151 by %c31_i32_75 dim 0 : vector<32x16xf32>, i32 -> vector<32x16xf32>
    %c1_i32_76 = arith.constant 1 : i32
    %153 = vector.broadcast %c1_i32_76 : i32 to vector<32x16xi32>
    %154 = arith.addi %18, %153 : vector<32x16xi32>
    %c0_i32_77 = arith.constant 0 : i32
    %155 = vector.broadcast %c0_i32_77 : i32 to vector<32x16xi32>
    %156 = arith.cmpi sge, %154, %155 : vector<32x16xi32>
    %c16_i32_78 = arith.constant 16 : i32
    %157 = vector.broadcast %c16_i32_78 : i32 to vector<32x16xi32>
    %158 = arith.cmpi slt, %154, %157 : vector<32x16xi32>
    %159 = arith.andi %156, %158 : vector<32x16xi1>
    %cst_79 = arith.constant 0.000000e+00 : f32
    %160 = vector.broadcast %cst_79 : f32 to vector<32x16xf32>
    %161 = arith.select %159, %152, %160 : vector<32x16xi1>, vector<32x16xf32>
    %162 = arith.addf %149, %161 : vector<32x16xf32>
    %c80_80 = arith.constant 80 : index
    %c0_81 = arith.constant 0 : index
    %163 = vector.load %arg3[%c80_80, %c0_81] : memref<112x16xf32, #tpu.memory_space<vmem>>, vector<16x16xf32>
    %cst_82 = arith.constant dense<0.000000e+00> : vector<32x16xf32>
    %164 = tpu.matmul %105, %163, %cst_82 {dimension_numbers = #tpu.dot_dimension_numbers<[1], [0], [0], [1], [0, 0, 1, 1], [], []>, precision = #tpu.contract_precision<fp32>} : vector<32x16xf32>, vector<16x16xf32>, vector<32x16xf32> -> vector<32x16xf32>
    %c30_i32_83 = arith.constant 30 : i32
    %165 = tpu.dynamic_rotate %164 by %c30_i32_83 dim 0 : vector<32x16xf32>, i32 -> vector<32x16xf32>
    %c2_i32_84 = arith.constant 2 : i32
    %166 = vector.broadcast %c2_i32_84 : i32 to vector<32x16xi32>
    %167 = arith.addi %18, %166 : vector<32x16xi32>
    %c0_i32_85 = arith.constant 0 : i32
    %168 = vector.broadcast %c0_i32_85 : i32 to vector<32x16xi32>
    %169 = arith.cmpi sge, %167, %168 : vector<32x16xi32>
    %c16_i32_86 = arith.constant 16 : i32
    %170 = vector.broadcast %c16_i32_86 : i32 to vector<32x16xi32>
    %171 = arith.cmpi slt, %167, %170 : vector<32x16xi32>
    %172 = arith.andi %169, %171 : vector<32x16xi1>
    %cst_87 = arith.constant 0.000000e+00 : f32
    %173 = vector.broadcast %cst_87 : f32 to vector<32x16xf32>
    %174 = arith.select %172, %165, %173 : vector<32x16xi1>, vector<32x16xf32>
    %175 = arith.addf %162, %174 : vector<32x16xf32>
    %c96_88 = arith.constant 96 : index
    %c0_89 = arith.constant 0 : index
    %176 = vector.load %arg3[%c96_88, %c0_89] : memref<112x16xf32, #tpu.memory_space<vmem>>, vector<16x16xf32>
    %cst_90 = arith.constant dense<0.000000e+00> : vector<32x16xf32>
    %177 = tpu.matmul %105, %176, %cst_90 {dimension_numbers = #tpu.dot_dimension_numbers<[1], [0], [0], [1], [0, 0, 1, 1], [], []>, precision = #tpu.contract_precision<fp32>} : vector<32x16xf32>, vector<16x16xf32>, vector<32x16xf32> -> vector<32x16xf32>
    %c29_i32_91 = arith.constant 29 : i32
    %178 = tpu.dynamic_rotate %177 by %c29_i32_91 dim 0 : vector<32x16xf32>, i32 -> vector<32x16xf32>
    %c3_i32_92 = arith.constant 3 : i32
    %179 = vector.broadcast %c3_i32_92 : i32 to vector<32x16xi32>
    %180 = arith.addi %18, %179 : vector<32x16xi32>
    %c0_i32_93 = arith.constant 0 : i32
    %181 = vector.broadcast %c0_i32_93 : i32 to vector<32x16xi32>
    %182 = arith.cmpi sge, %180, %181 : vector<32x16xi32>
    %c16_i32_94 = arith.constant 16 : i32
    %183 = vector.broadcast %c16_i32_94 : i32 to vector<32x16xi32>
    %184 = arith.cmpi slt, %180, %183 : vector<32x16xi32>
    %185 = arith.andi %182, %184 : vector<32x16xi1>
    %cst_95 = arith.constant 0.000000e+00 : f32
    %186 = vector.broadcast %cst_95 : f32 to vector<32x16xf32>
    %187 = arith.select %185, %178, %186 : vector<32x16xi1>, vector<32x16xf32>
    %188 = arith.addf %175, %187 : vector<32x16xf32>
    %189 = vector.broadcast %106 : f32 to vector<32x16xf32>
    %190 = arith.addf %188, %189 : vector<32x16xf32>
    %191 = arith.negf %190 : vector<32x16xf32>
    %192 = math.exp %191 : vector<32x16xf32>
    %cst_96 = arith.constant 1.000000e+00 : f32
    %193 = vector.broadcast %cst_96 : f32 to vector<32x16xf32>
    %194 = arith.addf %193, %192 : vector<32x16xf32>
    %195 = arith.divf %193, %194 : vector<32x16xf32>
    %196 = arith.mulf %195, %1 : vector<32x16xf32>
    %c0_97 = arith.constant 0 : index
    %c0_98 = arith.constant 0 : index
    %c0_99 = arith.constant 0 : index
    %197 = vector.load %arg5[%c0_97, %c0_98, %c0_99] : memref<1x32x16xf32, #tpu.memory_space<vmem>>, vector<1x32x16xf32>
    %198 = vector.shape_cast %197 : vector<1x32x16xf32> to vector<32x16xf32>
    %199 = vector.shape_cast %196 : vector<32x16xf32> to vector<1x32x16xf32>
    tpu.vector_store %arg5[%c0_97, %c0_98, %c0_99], %199 {strides = array<i32>} : memref<1x32x16xf32, #tpu.memory_space<vmem>>, vector<1x32x16xf32>,
    return
  }
  func.func @transform_0(%arg0: i32) -> (i32, i32, i32) {
    %c0_i32 = arith.constant 0 : i32
    %c0_i32_0 = arith.constant 0 : i32
    %c0_i32_1 = arith.constant 0 : i32
    return %arg0, %c0_i32, %c0_i32_0 : i32, i32, i32
  }
  func.func @transform_1(%arg0: i32) -> (i32, i32) {
    %c0_i32 = arith.constant 0 : i32
    %c0_i32_0 = arith.constant 0 : i32
    %c0_i32_1 = arith.constant 0 : i32
    return %c0_i32, %c0_i32_0 : i32, i32
  }
  func.func @transform_2(%arg0: i32) -> (i32, i32) {
    %c0_i32 = arith.constant 0 : i32
    %c0_i32_0 = arith.constant 0 : i32
    %c0_i32_1 = arith.constant 0 : i32
    return %c0_i32, %c0_i32_0 : i32, i32
  }
  func.func @transform_3(%arg0: i32) -> i32 {
    %c0_i32 = arith.constant 0 : i32
    %c0_i32_0 = arith.constant 0 : i32
    return %c0_i32 : i32
  }
  func.func @transform_4(%arg0: i32) -> (i32, i32, i32) {
    %c0_i32 = arith.constant 0 : i32
    %c0_i32_0 = arith.constant 0 : i32
    %c0_i32_1 = arith.constant 0 : i32
    return %arg0, %c0_i32, %c0_i32_0 : i32, i32, i32
  }
}

</mosaic_0001>

<llo_original>
// kernel: pa_layer.1
$region0: #{pa_layer.1}
  #allocation0 [shape = 'u32[]', space=smem, size = 0x4, offset = 0x4, fixed_abs, tag = 'smem constant byte address 0x4 - core index']
  #allocation1 [shape = 'u32[72,128]{1,0:T(1,128)}', space=vmem, size = 0x9000, scoped, tag = 'internal scratch']
  %s0 = inlined_call_operand.vmem [shape: f32[1,32,16], index: 0, kind: input, shape index: {}]
  %s1 = inlined_call_operand.vmem [shape: f32[112,16], index: 1, kind: input, shape index: {}]
  %s2 = inlined_call_operand.vmem [shape: f32[112,16], index: 2, kind: input, shape index: {}]
  %s3 = inlined_call_operand.vmem [shape: f32[2], index: 3, kind: input, shape index: {}]
  %s4 = inlined_call_operand.hbm [shape: f32[1,32,16], index: 4, kind: output, shape index: {}]
  %s5 = sld [smem:[#allocation0]]
  $region30: #{pa_layer.1} parent=0
    _
  %s7 = ssub.s32 1, %s5
  %s8 = scalar_select 0, %s7, %s5
  $region1: #{pa_layer.1} parent=0
    #allocation2 [shape = 'u8[512]{0}', space=smem, size = 0x200, scoped, tag = 'input window, operand 3, single buffered']
    #allocation3 [shape = 's32[1]{0}', space=sflag, size = 0x4, scoped, tag = 'scoped memory for pa_layer.1']
    #allocation4 [shape = 's32[1]{0}', space=sflag, size = 0x4, scoped, tag = 'scoped memory for pa_layer.1']
    #allocation5 [shape = 'u8[16384]{0}', space=vmem, size = 0x4000, scoped, tag = 'output window, operand 0, single buffered']
    %9 = vsyncpa [#allocation4], 0
    %10 = vsyncpa [#allocation3], 0
    // Predicated region
    $region2: #{pa_layer.1} parent=1 // pred_check
      _
    $region3: #{pa_layer.1} parent=1 // pred_check_branch
      %12 = sbr.rel (0) target = $region5
    $region4: #{pa_layer.1} parent=1 // pred_region
      _
    $region5: #{pa_layer.1} parent=1 // pred_fallthru
      _
    // Predicated region
    $region6: #{pa_layer.1} parent=1 // pred_check
      _
    $region7: #{pa_layer.1} parent=1 // pred_check_branch
      %14 = sbr.rel (0) target = $region9
    $region8: #{pa_layer.1} parent=1 // pred_region
      _
    $region9: #{pa_layer.1} parent=1 // pred_fallthru
      _
    // Predicated region
    $region10: #{pa_layer.1} parent=1 // pred_check
      _
    $region11: #{pa_layer.1} parent=1 // pred_check_branch
      %16 = sbr.rel (0) target = $region13
    $region12: #{pa_layer.1} parent=1 // pred_region
      _
    $region13: #{pa_layer.1} parent=1 // pred_fallthru
      _
    // Predicated region
    $region14: #{pa_layer.1} parent=1 // pred_check
      _
    $region15: #{pa_layer.1} parent=1 // pred_check_branch
      %18 = sbr.rel (0) target = $region17
    $region16: #{pa_layer.1} parent=1 // pred_region
      %20 = vsyncadd [#allocation4], 0
      %s22 = sshll.u32 %s3, 4
      %s23 = int_to_ptr.vmem [resolvable:$true] %s22
      %25 = dma.vmem_to_smem %s23, 16, [#allocation2], [#allocation4]
    $region17: #{pa_layer.1} parent=1 // pred_fallthru
      _
    // Predicated region
    $region18: #{pa_layer.1} parent=1 // pred_check
      _
    $region19: #{pa_layer.1} parent=1 // pred_check_branch
      %27 = sbr.rel (0) target = $region21
    $region20: #{pa_layer.1} parent=1 // pred_region
      %29 = dma.done [#allocation4], 16
    $region21: #{pa_layer.1} parent=1 // pred_fallthru
      _
    %30 = sfence
    %v31 = vld [vmem:[%s0] sm:$0xff]
    %v32 = vld [vmem:[%s0 + $0x8] sm:$0xff]
    %v33 = vld [vmem:[%s0 + $0x10] sm:$0xff]
    %v34 = vld [vmem:[%s0 + $0x18] sm:$0xff]
    %v35 = vlaneseq
    %v36 = vshrl.u32 %v35, 7
    %v37 = vadd.s32 %v36, 8
    %v38 = vadd.s32 %v36, 16
    %v39 = vadd.s32 %v36, 24
    %vm40 = vcmp.lt.s32.totalorder %v36, 0
    %v41 = vsub.s32 0, %v36
    %v42 = vsel %vm40, %v41, %v36
    %v43 = vshrl.u32 %v42, 4
    %v44 = vand.u32 %v42, 15
    %v45 = vsub.s32 0, %v44
    %v46 = vsel %vm40, %v45, %v44
    %vm47 = vcmp.lt.s32.totalorder %v37, 0
    %v48 = vsub.s32 0, %v37
    %v49 = vsel %vm47, %v48, %v37
    %v50 = vshrl.u32 %v49, 4
    %v51 = vand.u32 %v49, 15
    %v52 = vsub.s32 0, %v51
    %v53 = vsel %vm47, %v52, %v51
    %vm54 = vcmp.lt.s32.totalorder %v38, 0
    %v55 = vsub.s32 0, %v38
    %v56 = vsel %vm54, %v55, %v38
    %v57 = vshrl.u32 %v56, 4
    %v58 = vand.u32 %v56, 15
    %v59 = vsub.s32 0, %v58
    %v60 = vsel %vm54, %v59, %v58
    %vm61 = vcmp.lt.s32.totalorder %v39, 0
    %v62 = vsub.s32 0, %v39
    %v63 = vsel %vm61, %v62, %v39
    %v64 = vshrl.u32 %v63, 4
    %v65 = vand.u32 %v63, 15
    %v66 = vsub.s32 0, %v65
    %v67 = vsel %vm61, %v66, %v65
    %vm68 = vcmp.ne.s32.totalorder %v46, 0
    %vm69 = vcmp.ne.s32.totalorder %v53, 0
    %vm70 = vcmp.ne.s32.totalorder %v60, 0
    %vm71 = vcmp.ne.s32.totalorder %v67, 0
    %vm72 = vcmp.lt.s32.totalorder %v46, 0
    %vm73 = vcmp.lt.s32.totalorder %v53, 0
    %vm74 = vcmp.lt.s32.totalorder %v60, 0
    %vm75 = vcmp.lt.s32.totalorder %v67, 0
    %vm76 = vmand %vm72, %vm68
    %vm77 = vmand %vm73, %vm69
    %vm78 = vmand %vm74, %vm70
    %vm79 = vmand %vm75, %vm71
    %v80 = vadd.s32 %v46, 16
    %v81 = vadd.s32 %v53, 16
    %v82 = vadd.s32 %v60, 16
    %v83 = vadd.s32 %v67, 16
    %v84 = vsel %vm76, %v80, %v46
    %v85 = vsel %vm77, %v81, %v53
    %v86 = vsel %vm78, %v82, %v60
    %v87 = vsel %vm79, %v83, %v67
    %s88 = sld [smem:[#allocation2]]
    %v89 = vld [vmem:[%s1] sm:$0xff]
    %v90 = vld [vmem:[%s1 + $0x8] sm:$0xff]
    %vm91 = vcmask 130048
    %v93 = vsel %vm91, %v31, 0
    %v96 = vsel %vm91, %v32, 0
    %v99 = vsel %vm91, %v33, 0
    %v102 = vsel %vm91, %v34, 0
    %104 = vmatpush.msra.mxu0 0.0
    %105 = vmatpush.msra.mxu0 0.0
    %106 = vmatpush.msra.mxu0 0.0
    %107 = vmatpush.msra.mxu0 0.0
    %108 = vmatpush.msra.mxu0 0.0
    %109 = vmatpush.msra.mxu0 0.0
    %110 = vmatpush.msra.mxu0 0.0
    %111 = vmatpush.msra.mxu0 0.0
    %112 = vmatpush.msra.mxu0 0.0
    %113 = vmatpush.msra.mxu0 0.0
    %114 = vmatpush.msra.mxu0 0.0
    %115 = vmatpush.msra.mxu0 0.0
    %116 = vmatpush.msra.mxu0 0.0
    %117 = vmatpush.msra.mxu0 0.0
    %v118 = vand.u32 %v90, 4294901760
    %119 = vmatpush.msra.mxu0 %v118
    %v120 = vand.u32 %v89, 4294901760
    %121 = vmatpush.msra.mxu0 %v120
    %v122 = vand.u32 %v93, 4294901760
    %v123 = vsub.f32 %v93, %v122
    %v124 = vand.u32 %v123, 4294901760
    %v125 = vsub.f32 %v123, %v124
    %v126 = vand.u32 %v125, 4294901760
    %127 = vmatmul.f32.gmra.mxu0 %v126
    %v128 = vpop.f32.mrf.mxu0
    %v129 = vadd.f32 0.0, %v128
    %v130 = vand.u32 %v96, 4294901760
    %v131 = vsub.f32 %v96, %v130
    %v132 = vand.u32 %v131, 4294901760
    %v133 = vsub.f32 %v131, %v132
    %v134 = vand.u32 %v133, 4294901760
    %135 = vmatmul.f32.gmra.mxu0 %v134
    %v136 = vpop.f32.mrf.mxu0
    %v137 = vadd.f32 0.0, %v136
    %v138 = vand.u32 %v99, 4294901760
    %v139 = vsub.f32 %v99, %v138
    %v140 = vand.u32 %v139, 4294901760
    %v141 = vsub.f32 %v139, %v140
    %v142 = vand.u32 %v141, 4294901760
    %143 = vmatmul.f32.gmra.mxu0 %v142
    %v144 = vpop.f32.mrf.mxu0
    %v145 = vadd.f32 0.0, %v144
    %v146 = vand.u32 %v102, 4294901760
    %v147 = vsub.f32 %v102, %v146
    %v148 = vand.u32 %v147, 4294901760
    %v149 = vsub.f32 %v147, %v148
    %v150 = vand.u32 %v149, 4294901760
    %151 = vmatmul.f32.gmra.mxu0 %v150
    %v152 = vpop.f32.mrf.mxu0
    %v153 = vadd.f32 0.0, %v152
    %154 = vdwg.mxu0
    %155 = vmatpush.msra.mxu0 0.0
    %156 = vmatpush.msra.mxu0 0.0
    %157 = vmatpush.msra.mxu0 0.0
    %158 = vmatpush.msra.mxu0 0.0
    %159 = vmatpush.msra.mxu0 0.0
    %160 = vmatpush.msra.mxu0 0.0
    %161 = vmatpush.msra.mxu0 0.0
    %162 = vmatpush.msra.mxu0 0.0
    %163 = vmatpush.msra.mxu0 0.0
    %164 = vmatpush.msra.mxu0 0.0
    %165 = vmatpush.msra.mxu0 0.0
    %166 = vmatpush.msra.mxu0 0.0
    %167 = vmatpush.msra.mxu0 0.0
    %168 = vmatpush.msra.mxu0 0.0
    %v169 = vand.u32 %v90, 4294901760
    %v170 = vsub.f32 %v90, %v169
    %v171 = vand.u32 %v170, 4294901760
    %v172 = vsub.f32 %v170, %v171
    %v173 = vand.u32 %v172, 4294901760
    %174 = vmatpush.msra.mxu0 %v173
    %v175 = vand.u32 %v89, 4294901760
    %v176 = vsub.f32 %v89, %v175
    %v177 = vand.u32 %v176, 4294901760
    %v178 = vsub.f32 %v176, %v177
    %v179 = vand.u32 %v178, 4294901760
    %180 = vmatpush.msra.mxu0 %v179
    %v181 = vand.u32 %v93, 4294901760
    %182 = vmatmul.f32.gmra.mxu0 %v181
    %v183 = vpop.f32.mrf.mxu0
    %v184 = vadd.f32 %v129, %v183
    %v185 = vand.u32 %v96, 4294901760
    %186 = vmatmul.f32.gmra.mxu0 %v185
    %v187 = vpop.f32.mrf.mxu0
    %v188 = vadd.f32 %v137, %v187
    %v189 = vand.u32 %v99, 4294901760
    %190 = vmatmul.f32.gmra.mxu0 %v189
    %v191 = vpop.f32.mrf.mxu0
    %v192 = vadd.f32 %v145, %v191
    %v193 = vand.u32 %v102, 4294901760
    %194 = vmatmul.f32.gmra.mxu0 %v193
    %v195 = vpop.f32.mrf.mxu0
    %v196 = vadd.f32 %v153, %v195
    %197 = vdwg.mxu0
    %198 = vmatpush.msra.mxu0 0.0
    %199 = vmatpush.msra.mxu0 0.0
    %200 = vmatpush.msra.mxu0 0.0
    %201 = vmatpush.msra.mxu0 0.0
    %202 = vmatpush.msra.mxu0 0.0
    %203 = vmatpush.msra.mxu0 0.0
    %204 = vmatpush.msra.mxu0 0.0
    %205 = vmatpush.msra.mxu0 0.0
    %206 = vmatpush.msra.mxu0 0.0
    %207 = vmatpush.msra.mxu0 0.0
    %208 = vmatpush.msra.mxu0 0.0
    %209 = vmatpush.msra.mxu0 0.0
    %210 = vmatpush.msra.mxu0 0.0
    %211 = vmatpush.msra.mxu0 0.0
    %v212 = vand.u32 %v90, 4294901760
    %v213 = vsub.f32 %v90, %v212
    %214 = vmatpush.msra.mxu0 %v213
    %v215 = vand.u32 %v89, 4294901760
    %v216 = vsub.f32 %v89, %v215
    %217 = vmatpush.msra.mxu0 %v216
    %v218 = vand.u32 %v93, 4294901760
    %v219 = vsub.f32 %v93, %v218
    %220 = vmatmul.f32.gmra.mxu0 %v219
    %v221 = vpop.f32.mrf.mxu0
    %v222 = vadd.f32 %v184, %v221
    %v223 = vand.u32 %v96, 4294901760
    %v224 = vsub.f32 %v96, %v223
    %225 = vmatmul.f32.gmra.mxu0 %v224
    %v226 = vpop.f32.mrf.mxu0
    %v227 = vadd.f32 %v188, %v226
    %v228 = vand.u32 %v99, 4294901760
    %v229 = vsub.f32 %v99, %v228
    %230 = vmatmul.f32.gmra.mxu0 %v229
    %v231 = vpop.f32.mrf.mxu0
    %v232 = vadd.f32 %v192, %v231
    %v233 = vand.u32 %v102, 4294901760
    %v234 = vsub.f32 %v102, %v233
    %235 = vmatmul.f32.gmra.mxu0 %v234
    %v236 = vpop.f32.mrf.mxu0
    %v237 = vadd.f32 %v196, %v236
    %238 = vdwg.mxu0
    %239 = vmatpush.msra.mxu0 0.0
    %240 = vmatpush.msra.mxu0 0.0
    %241 = vmatpush.msra.mxu0 0.0
    %242 = vmatpush.msra.mxu0 0.0
    %243 = vmatpush.msra.mxu0 0.0
    %244 = vmatpush.msra.mxu0 0.0
    %245 = vmatpush.msra.mxu0 0.0
    %246 = vmatpush.msra.mxu0 0.0
    %247 = vmatpush.msra.mxu0 0.0
    %248 = vmatpush.msra.mxu0 0.0
    %249 = vmatpush.msra.mxu0 0.0
    %250 = vmatpush.msra.mxu0 0.0
    %251 = vmatpush.msra.mxu0 0.0
    %252 = vmatpush.msra.mxu0 0.0
    %v253 = vand.u32 %v90, 4294901760
    %254 = vmatpush.msra.mxu0 %v253
    %v255 = vand.u32 %v89, 4294901760
    %256 = vmatpush.msra.mxu0 %v255
    %v257 = vand.u32 %v93, 4294901760
    %v258 = vsub.f32 %v93, %v257
    %v259 = vand.u32 %v258, 4294901760
    %260 = vmatmul.f32.gmra.mxu0 %v259
    %v261 = vpop.f32.mrf.mxu0
    %v262 = vadd.f32 %v222, %v261
    %v263 = vand.u32 %v96, 4294901760
    %v264 = vsub.f32 %v96, %v263
    %v265 = vand.u32 %v264, 4294901760
    %266 = vmatmul.f32.gmra.mxu0 %v265
    %v267 = vpop.f32.mrf.mxu0
    %v268 = vadd.f32 %v227, %v267
    %v269 = vand.u32 %v99, 4294901760
    %v270 = vsub.f32 %v99, %v269
    %v271 = vand.u32 %v270, 4294901760
    %272 = vmatmul.f32.gmra.mxu0 %v271
    %v273 = vpop.f32.mrf.mxu0
    %v274 = vadd.f32 %v232, %v273
    %v275 = vand.u32 %v102, 4294901760
    %v276 = vsub.f32 %v102, %v275
    %v277 = vand.u32 %v276, 4294901760
    %278 = vmatmul.f32.gmra.mxu0 %v277
    %v279 = vpop.f32.mrf.mxu0
    %v280 = vadd.f32 %v237, %v279
    %281 = vdwg.mxu0
    %282 = vmatpush.msra.mxu0 0.0
    %283 = vmatpush.msra.mxu0 0.0
    %284 = vmatpush.msra.mxu0 0.0
    %285 = vmatpush.msra.mxu0 0.0
    %286 = vmatpush.msra.mxu0 0.0
    %287 = vmatpush.msra.mxu0 0.0
    %288 = vmatpush.msra.mxu0 0.0
    %289 = vmatpush.msra.mxu0 0.0
    %290 = vmatpush.msra.mxu0 0.0
    %291 = vmatpush.msra.mxu0 0.0
    %292 = vmatpush.msra.mxu0 0.0
    %293 = vmatpush.msra.mxu0 0.0
    %294 = vmatpush.msra.mxu0 0.0
    %295 = vmatpush.msra.mxu0 0.0
    %v296 = vand.u32 %v90, 4294901760
    %v297 = vsub.f32 %v90, %v296
    %v298 = vand.u32 %v297, 4294901760
    %299 = vmatpush.msra.mxu0 %v298
    %v300 = vand.u32 %v89, 4294901760
    %v301 = vsub.f32 %v89, %v300
    %v302 = vand.u32 %v301, 4294901760
    %303 = vmatpush.msra.mxu0 %v302
    %v304 = vand.u32 %v93, 4294901760
    %305 = vmatmul.f32.gmra.mxu0 %v304
    %v306 = vpop.f32.mrf.mxu0
    %v307 = vadd.f32 %v262, %v306
    %v308 = vand.u32 %v96, 4294901760
    %309 = vmatmul.f32.gmra.mxu0 %v308
    %v310 = vpop.f32.mrf.mxu0
    %v311 = vadd.f32 %v268, %v310
    %v312 = vand.u32 %v99, 4294901760
    %313 = vmatmul.f32.gmra.mxu0 %v312
    %v314 = vpop.f32.mrf.mxu0
    %v315 = vadd.f32 %v274, %v314
    %v316 = vand.u32 %v102, 4294901760
    %317 = vmatmul.f32.gmra.mxu0 %v316
    %v318 = vpop.f32.mrf.mxu0
    %v319 = vadd.f32 %v280, %v318
    %320 = vdwg.mxu0
    %321 = vmatpush.msra.mxu0 0.0
    %322 = vmatpush.msra.mxu0 0.0
    %323 = vmatpush.msra.mxu0 0.0
    %324 = vmatpush.msra.mxu0 0.0
    %325 = vmatpush.msra.mxu0 0.0
    %326 = vmatpush.msra.mxu0 0.0
    %327 = vmatpush.msra.mxu0 0.0
    %328 = vmatpush.msra.mxu0 0.0
    %329 = vmatpush.msra.mxu0 0.0
    %330 = vmatpush.msra.mxu0 0.0
    %331 = vmatpush.msra.mxu0 0.0
    %332 = vmatpush.msra.mxu0 0.0
    %333 = vmatpush.msra.mxu0 0.0
    %334 = vmatpush.msra.mxu0 0.0
    %v335 = vand.u32 %v90, 4294901760
    %336 = vmatpush.msra.mxu0 %v335
    %v337 = vand.u32 %v89, 4294901760
    %338 = vmatpush.msra.mxu0 %v337
    %v339 = vand.u32 %v93, 4294901760
    %340 = vmatmul.f32.gmra.mxu0 %v339
    %v341 = vpop.f32.mrf.mxu0
    %v342 = vadd.f32 %v307, %v341
    %v343 = vand.u32 %v96, 4294901760
    %344 = vmatmul.f32.gmra.mxu0 %v343
    %v345 = vpop.f32.mrf.mxu0
    %v346 = vadd.f32 %v311, %v345
    %v347 = vand.u32 %v99, 4294901760
    %348 = vmatmul.f32.gmra.mxu0 %v347
    %v349 = vpop.f32.mrf.mxu0
    %v350 = vadd.f32 %v315, %v349
    %v351 = vand.u32 %v102, 4294901760
    %352 = vmatmul.f32.gmra.mxu0 %v351
    %v353 = vpop.f32.mrf.mxu0
    %v354 = vadd.f32 %v319, %v353
    %355 = vdwg.mxu0
    %v356 = vrot.slane %v342, 5
    %v357 = vrot.slane %v346, 5
    %v358 = vrot.slane %v350, 5
    %v359 = vrot.slane %v354, 5
    %vm360 = vcmp.lt.s32.totalorder %v36, 3
    %v361 = vsel %vm360, %v358, %v359
    %v362 = vsel %vm360, %v357, %v358
    %v363 = vsel %vm360, %v356, %v357
    %v364 = vsel %vm360, %v359, %v356
    %v365 = vadd.s32 %v84, 4294967293
    %v366 = vadd.s32 %v85, 4294967293
    %v367 = vadd.s32 %v86, 4294967293
    %v368 = vadd.s32 %v87, 4294967293
    %vm369 = vcmp.ge.s32.totalorder %v365, 0
    %vm370 = vcmp.ge.s32.totalorder %v366, 0
    %vm371 = vcmp.ge.s32.totalorder %v367, 0
    %vm372 = vcmp.ge.s32.totalorder %v368, 0
    %vm373 = vcmp.lt.s32.totalorder %v365, 16
    %vm374 = vcmp.lt.s32.totalorder %v366, 16
    %vm375 = vcmp.lt.s32.totalorder %v367, 16
    %vm376 = vcmp.lt.s32.totalorder %v368, 16
    %vm377 = vmand %vm369, %vm373
    %vm378 = vmand %vm370, %vm374
    %vm379 = vmand %vm371, %vm375
    %vm380 = vmand %vm372, %vm376
    %v381 = vsel %vm377, %v364, 0.0
    %v382 = vsel %vm378, %v363, 0.0
    %v383 = vsel %vm379, %v362, 0.0
    %v384 = vsel %vm380, %v361, 0.0
    %v385 = vadd.f32 %v381, 0.0
    %v386 = vadd.f32 %v382, 0.0
    %v387 = vadd.f32 %v383, 0.0
    %v388 = vadd.f32 %v384, 0.0
    %v389 = vld [vmem:[%s1 + $0x10] sm:$0xff]
    %v390 = vld [vmem:[%s1 + $0x18] sm:$0xff]
    %391 = vmatpush.msra.mxu0 0.0
    %392 = vmatpush.msra.mxu0 0.0
    %393 = vmatpush.msra.mxu0 0.0
    %394 = vmatpush.msra.mxu0 0.0
    %395 = vmatpush.msra.mxu0 0.0
    %396 = vmatpush.msra.mxu0 0.0
    %397 = vmatpush.msra.mxu0 0.0
    %398 = vmatpush.msra.mxu0 0.0
    %399 = vmatpush.msra.mxu0 0.0
    %400 = vmatpush.msra.mxu0 0.0
    %401 = vmatpush.msra.mxu0 0.0
    %402 = vmatpush.msra.mxu0 0.0
    %403 = vmatpush.msra.mxu0 0.0
    %404 = vmatpush.msra.mxu0 0.0
    %v405 = vand.u32 %v390, 4294901760
    %406 = vmatpush.msra.mxu0 %v405
    %v407 = vand.u32 %v389, 4294901760
    %408 = vmatpush.msra.mxu0 %v407
    %v409 = vand.u32 %v93, 4294901760
    %v410 = vsub.f32 %v93, %v409
    %v411 = vand.u32 %v410, 4294901760
    %v412 = vsub.f32 %v410, %v411
    %v413 = vand.u32 %v412, 4294901760
    %414 = vmatmul.f32.gmra.mxu0 %v413
    %v415 = vpop.f32.mrf.mxu0
    %v416 = vadd.f32 0.0, %v415
    %v417 = vand.u32 %v96, 4294901760
    %v418 = vsub.f32 %v96, %v417
    %v419 = vand.u32 %v418, 4294901760
    %v420 = vsub.f32 %v418, %v419
    %v421 = vand.u32 %v420, 4294901760
    %422 = vmatmul.f32.gmra.mxu0 %v421
    %v423 = vpop.f32.mrf.mxu0
    %v424 = vadd.f32 0.0, %v423
    %v425 = vand.u32 %v99, 4294901760
    %v426 = vsub.f32 %v99, %v425
    %v427 = vand.u32 %v426, 4294901760
    %v428 = vsub.f32 %v426, %v427
    %v429 = vand.u32 %v428, 4294901760
    %430 = vmatmul.f32.gmra.mxu0 %v429
    %v431 = vpop.f32.mrf.mxu0
    %v432 = vadd.f32 0.0, %v431
    %v433 = vand.u32 %v102, 4294901760
    %v434 = vsub.f32 %v102, %v433
    %v435 = vand.u32 %v434, 4294901760
    %v436 = vsub.f32 %v434, %v435
    %v437 = vand.u32 %v436, 4294901760
    %438 = vmatmul.f32.gmra.mxu0 %v437
    %v439 = vpop.f32.mrf.mxu0
    %v440 = vadd.f32 0.0, %v439
    %441 = vdwg.mxu0
    %442 = vmatpush.msra.mxu0 0.0
    %443 = vmatpush.msra.mxu0 0.0
    %444 = vmatpush.msra.mxu0 0.0
    %445 = vmatpush.msra.mxu0 0.0
    %446 = vmatpush.msra.mxu0 0.0
    %447 = vmatpush.msra.mxu0 0.0
    %448 = vmatpush.msra.mxu0 0.0
    %449 = vmatpush.msra.mxu0 0.0
    %450 = vmatpush.msra.mxu0 0.0
    %451 = vmatpush.msra.mxu0 0.0
    %452 = vmatpush.msra.mxu0 0.0
    %453 = vmatpush.msra.mxu0 0.0
    %454 = vmatpush.msra.mxu0 0.0
    %455 = vmatpush.msra.mxu0 0.0
    %v456 = vand.u32 %v390, 4294901760
    %v457 = vsub.f32 %v390, %v456
    %v458 = vand.u32 %v457, 4294901760
    %v459 = vsub.f32 %v457, %v458
    %v460 = vand.u32 %v459, 4294901760
    %461 = vmatpush.msra.mxu0 %v460
    %v462 = vand.u32 %v389, 4294901760
    %v463 = vsub.f32 %v389, %v462
    %v464 = vand.u32 %v463, 4294901760
    %v465 = vsub.f32 %v463, %v464
    %v466 = vand.u32 %v465, 4294901760
    %467 = vmatpush.msra.mxu0 %v466
    %v468 = vand.u32 %v93, 4294901760
    %469 = vmatmul.f32.gmra.mxu0 %v468
    %v470 = vpop.f32.mrf.mxu0
    %v471 = vadd.f32 %v416, %v470
    %v472 = vand.u32 %v96, 4294901760
    %473 = vmatmul.f32.gmra.mxu0 %v472
    %v474 = vpop.f32.mrf.mxu0
    %v475 = vadd.f32 %v424, %v474
    %v476 = vand.u32 %v99, 4294901760
    %477 = vmatmul.f32.gmra.mxu0 %v476
    %v478 = vpop.f32.mrf.mxu0
    %v479 = vadd.f32 %v432, %v478
    %v480 = vand.u32 %v102, 4294901760
    %481 = vmatmul.f32.gmra.mxu0 %v480
    %v482 = vpop.f32.mrf.mxu0
    %v483 = vadd.f32 %v440, %v482
    %484 = vdwg.mxu0
    %485 = vmatpush.msra.mxu0 0.0
    %486 = vmatpush.msra.mxu0 0.0
    %487 = vmatpush.msra.mxu0 0.0
    %488 = vmatpush.msra.mxu0 0.0
    %489 = vmatpush.msra.mxu0 0.0
    %490 = vmatpush.msra.mxu0 0.0
    %491 = vmatpush.msra.mxu0 0.0
    %492 = vmatpush.msra.mxu0 0.0
    %493 = vmatpush.msra.mxu0 0.0
    %494 = vmatpush.msra.mxu0 0.0
    %495 = vmatpush.msra.mxu0 0.0
    %496 = vmatpush.msra.mxu0 0.0
    %497 = vmatpush.msra.mxu0 0.0
    %498 = vmatpush.msra.mxu0 0.0
    %v499 = vand.u32 %v390, 4294901760
    %v500 = vsub.f32 %v390, %v499
    %501 = vmatpush.msra.mxu0 %v500
    %v502 = vand.u32 %v389, 4294901760
    %v503 = vsub.f32 %v389, %v502
    %504 = vmatpush.msra.mxu0 %v503
    %v505 = vand.u32 %v93, 4294901760
    %v506 = vsub.f32 %v93, %v505
    %507 = vmatmul.f32.gmra.mxu0 %v506
    %v508 = vpop.f32.mrf.mxu0
    %v509 = vadd.f32 %v471, %v508
    %v510 = vand.u32 %v96, 4294901760
    %v511 = vsub.f32 %v96, %v510
    %512 = vmatmul.f32.gmra.mxu0 %v511
    %v513 = vpop.f32.mrf.mxu0
    %v514 = vadd.f32 %v475, %v513
    %v515 = vand.u32 %v99, 4294901760
    %v516 = vsub.f32 %v99, %v515
    %517 = vmatmul.f32.gmra.mxu0 %v516
    %v518 = vpop.f32.mrf.mxu0
    %v519 = vadd.f32 %v479, %v518
    %v520 = vand.u32 %v102, 4294901760
    %v521 = vsub.f32 %v102, %v520
    %522 = vmatmul.f32.gmra.mxu0 %v521
    %v523 = vpop.f32.mrf.mxu0
    %v524 = vadd.f32 %v483, %v523
    %525 = vdwg.mxu0
    %526 = vmatpush.msra.mxu0 0.0
    %527 = vmatpush.msra.mxu0 0.0
    %528 = vmatpush.msra.mxu0 0.0
    %529 = vmatpush.msra.mxu0 0.0
    %530 = vmatpush.msra.mxu0 0.0
    %531 = vmatpush.msra.mxu0 0.0
    %532 = vmatpush.msra.mxu0 0.0
    %533 = vmatpush.msra.mxu0 0.0
    %534 = vmatpush.msra.mxu0 0.0
    %535 = vmatpush.msra.mxu0 0.0
    %536 = vmatpush.msra.mxu0 0.0
    %537 = vmatpush.msra.mxu0 0.0
    %538 = vmatpush.msra.mxu0 0.0
    %539 = vmatpush.msra.mxu0 0.0
    %v540 = vand.u32 %v390, 4294901760
    %541 = vmatpush.msra.mxu0 %v540
    %v542 = vand.u32 %v389, 4294901760
    %543 = vmatpush.msra.mxu0 %v542
    %v544 = vand.u32 %v93, 4294901760
    %v545 = vsub.f32 %v93, %v544
    %v546 = vand.u32 %v545, 4294901760
    %547 = vmatmul.f32.gmra.mxu0 %v546
    %v548 = vpop.f32.mrf.mxu0
    %v549 = vadd.f32 %v509, %v548
    %v550 = vand.u32 %v96, 4294901760
    %v551 = vsub.f32 %v96, %v550
    %v552 = vand.u32 %v551, 4294901760
    %553 = vmatmul.f32.gmra.mxu0 %v552
    %v554 = vpop.f32.mrf.mxu0
    %v555 = vadd.f32 %v514, %v554
    %v556 = vand.u32 %v99, 4294901760
    %v557 = vsub.f32 %v99, %v556
    %v558 = vand.u32 %v557, 4294901760
    %559 = vmatmul.f32.gmra.mxu0 %v558
    %v560 = vpop.f32.mrf.mxu0
    %v561 = vadd.f32 %v519, %v560
    %v562 = vand.u32 %v102, 4294901760
    %v563 = vsub.f32 %v102, %v562
    %v564 = vand.u32 %v563, 4294901760
    %565 = vmatmul.f32.gmra.mxu0 %v564
    %v566 = vpop.f32.mrf.mxu0
    %v567 = vadd.f32 %v524, %v566
    %568 = vdwg.mxu0
    %569 = vmatpush.msra.mxu0 0.0
    %570 = vmatpush.msra.mxu0 0.0
    %571 = vmatpush.msra.mxu0 0.0
    %572 = vmatpush.msra.mxu0 0.0
    %573 = vmatpush.msra.mxu0 0.0
    %574 = vmatpush.msra.mxu0 0.0
    %575 = vmatpush.msra.mxu0 0.0
    %576 = vmatpush.msra.mxu0 0.0
    %577 = vmatpush.msra.mxu0 0.0
    %578 = vmatpush.msra.mxu0 0.0
    %579 = vmatpush.msra.mxu0 0.0
    %580 = vmatpush.msra.mxu0 0.0
    %581 = vmatpush.msra.mxu0 0.0
    %582 = vmatpush.msra.mxu0 0.0
    %v583 = vand.u32 %v390, 4294901760
    %v584 = vsub.f32 %v390, %v583
    %v585 = vand.u32 %v584, 4294901760
    %586 = vmatpush.msra.mxu0 %v585
    %v587 = vand.u32 %v389, 4294901760
    %v588 = vsub.f32 %v389, %v587
    %v589 = vand.u32 %v588, 4294901760
    %590 = vmatpush.msra.mxu0 %v589
    %v591 = vand.u32 %v93, 4294901760
    %592 = vmatmul.f32.gmra.mxu0 %v591
    %v593 = vpop.f32.mrf.mxu0
    %v594 = vadd.f32 %v549, %v593
    %v595 = vand.u32 %v96, 4294901760
    %596 = vmatmul.f32.gmra.mxu0 %v595
    %v597 = vpop.f32.mrf.mxu0
    %v598 = vadd.f32 %v555, %v597
    %v599 = vand.u32 %v99, 4294901760
    %600 = vmatmul.f32.gmra.mxu0 %v599
    %v601 = vpop.f32.mrf.mxu0
    %v602 = vadd.f32 %v561, %v601
    %v603 = vand.u32 %v102, 4294901760
    %604 = vmatmul.f32.gmra.mxu0 %v603
    %v605 = vpop.f32.mrf.mxu0
    %v606 = vadd.f32 %v567, %v605
    %607 = vdwg.mxu0
    %608 = vmatpush.msra.mxu0 0.0
    %609 = vmatpush.msra.mxu0 0.0
    %610 = vmatpush.msra.mxu0 0.0
    %611 = vmatpush.msra.mxu0 0.0
    %612 = vmatpush.msra.mxu0 0.0
    %613 = vmatpush.msra.mxu0 0.0
    %614 = vmatpush.msra.mxu0 0.0
    %615 = vmatpush.msra.mxu0 0.0
    %616 = vmatpush.msra.mxu0 0.0
    %617 = vmatpush.msra.mxu0 0.0
    %618 = vmatpush.msra.mxu0 0.0
    %619 = vmatpush.msra.mxu0 0.0
    %620 = vmatpush.msra.mxu0 0.0
    %621 = vmatpush.msra.mxu0 0.0
    %v622 = vand.u32 %v390, 4294901760
    %623 = vmatpush.msra.mxu0 %v622
    %v624 = vand.u32 %v389, 4294901760
    %625 = vmatpush.msra.mxu0 %v624
    %v626 = vand.u32 %v93, 4294901760
    %627 = vmatmul.f32.gmra.mxu0 %v626
    %v628 = vpop.f32.mrf.mxu0
    %v629 = vadd.f32 %v594, %v628
    %v630 = vand.u32 %v96, 4294901760
    %631 = vmatmul.f32.gmra.mxu0 %v630
    %v632 = vpop.f32.mrf.mxu0
    %v633 = vadd.f32 %v598, %v632
    %v634 = vand.u32 %v99, 4294901760
    %635 = vmatmul.f32.gmra.mxu0 %v634
    %v636 = vpop.f32.mrf.mxu0
    %v637 = vadd.f32 %v602, %v636
    %v638 = vand.u32 %v102, 4294901760
    %639 = vmatmul.f32.gmra.mxu0 %v638
    %v640 = vpop.f32.mrf.mxu0
    %v641 = vadd.f32 %v606, %v640
    %642 = vdwg.mxu0
    %v643 = vrot.slane %v629, 6
    %v644 = vrot.slane %v633, 6
    %v645 = vrot.slane %v637, 6
    %v646 = vrot.slane %v641, 6
    %vm647 = vcmp.lt.s32.totalorder %v36, 2
    %v648 = vsel %vm647, %v645, %v646
    %v649 = vsel %vm647, %v644, %v645
    %v650 = vsel %vm647, %v643, %v644
    %v651 = vsel %vm647, %v646, %v643
    %v652 = vadd.s32 %v84, 4294967294
    %v653 = vadd.s32 %v85, 4294967294
    %v654 = vadd.s32 %v86, 4294967294
    %v655 = vadd.s32 %v87, 4294967294
    %vm656 = vcmp.ge.s32.totalorder %v652, 0
    %vm657 = vcmp.ge.s32.totalorder %v653, 0
    %vm658 = vcmp.ge.s32.totalorder %v654, 0
    %vm659 = vcmp.ge.s32.totalorder %v655, 0
    %vm660 = vcmp.lt.s32.totalorder %v652, 16
    %vm661 = vcmp.lt.s32.totalorder %v653, 16
    %vm662 = vcmp.lt.s32.totalorder %v654, 16
    %vm663 = vcmp.lt.s32.totalorder %v655, 16
    %vm664 = vmand %vm656, %vm660
    %vm665 = vmand %vm657, %vm661
    %vm666 = vmand %vm658, %vm662
    %vm667 = vmand %vm659, %vm663
    %v668 = vsel %vm664, %v651, 0.0
    %v669 = vsel %vm665, %v650, 0.0
    %v670 = vsel %vm666, %v649, 0.0
    %v671 = vsel %vm667, %v648, 0.0
    %v672 = vadd.f32 %v385, %v668
    %v673 = vadd.f32 %v386, %v669
    %v674 = vadd.f32 %v387, %v670
    %v675 = vadd.f32 %v388, %v671
    %v676 = vld [vmem:[%s1 + $0x20] sm:$0xff]
    %v677 = vld [vmem:[%s1 + $0x28] sm:$0xff]
    %678 = vmatpush.msra.mxu0 0.0
    %679 = vmatpush.msra.mxu0 0.0
    %680 = vmatpush.msra.mxu0 0.0
    %681 = vmatpush.msra.mxu0 0.0
    %682 = vmatpush.msra.mxu0 0.0
    %683 = vmatpush.msra.mxu0 0.0
    %684 = vmatpush.msra.mxu0 0.0
    %685 = vmatpush.msra.mxu0 0.0
    %686 = vmatpush.msra.mxu0 0.0
    %687 = vmatpush.msra.mxu0 0.0
    %688 = vmatpush.msra.mxu0 0.0
    %689 = vmatpush.msra.mxu0 0.0
    %690 = vmatpush.msra.mxu0 0.0
    %691 = vmatpush.msra.mxu0 0.0
    %v692 = vand.u32 %v677, 4294901760
    %693 = vmatpush.msra.mxu0 %v692
    %v694 = vand.u32 %v676, 4294901760
    %695 = vmatpush.msra.mxu0 %v694
    %v696 = vand.u32 %v93, 4294901760
    %v697 = vsub.f32 %v93, %v696
    %v698 = vand.u32 %v697, 4294901760
    %v699 = vsub.f32 %v697, %v698
    %v700 = vand.u32 %v699, 4294901760
    %701 = vmatmul.f32.gmra.mxu0 %v700
    %v702 = vpop.f32.mrf.mxu0
    %v703 = vadd.f32 0.0, %v702
    %v704 = vand.u32 %v96, 4294901760
    %v705 = vsub.f32 %v96, %v704
    %v706 = vand.u32 %v705, 4294901760
    %v707 = vsub.f32 %v705, %v706
    %v708 = vand.u32 %v707, 4294901760
    %709 = vmatmul.f32.gmra.mxu0 %v708
    %v710 = vpop.f32.mrf.mxu0
    %v711 = vadd.f32 0.0, %v710
    %v712 = vand.u32 %v99, 4294901760
    %v713 = vsub.f32 %v99, %v712
    %v714 = vand.u32 %v713, 4294901760
    %v715 = vsub.f32 %v713, %v714
    %v716 = vand.u32 %v715, 4294901760
    %717 = vmatmul.f32.gmra.mxu0 %v716
    %v718 = vpop.f32.mrf.mxu0
    %v719 = vadd.f32 0.0, %v718
    %v720 = vand.u32 %v102, 4294901760
    %v721 = vsub.f32 %v102, %v720
    %v722 = vand.u32 %v721, 4294901760
    %v723 = vsub.f32 %v721, %v722
    %v724 = vand.u32 %v723, 4294901760
    %725 = vmatmul.f32.gmra.mxu0 %v724
    %v726 = vpop.f32.mrf.mxu0
    %v727 = vadd.f32 0.0, %v726
    %728 = vdwg.mxu0
    %729 = vmatpush.msra.mxu0 0.0
    %730 = vmatpush.msra.mxu0 0.0
    %731 = vmatpush.msra.mxu0 0.0
    %732 = vmatpush.msra.mxu0 0.0
    %733 = vmatpush.msra.mxu0 0.0
    %734 = vmatpush.msra.mxu0 0.0
    %735 = vmatpush.msra.mxu0 0.0
    %736 = vmatpush.msra.mxu0 0.0
    %737 = vmatpush.msra.mxu0 0.0
    %738 = vmatpush.msra.mxu0 0.0
    %739 = vmatpush.msra.mxu0 0.0
    %740 = vmatpush.msra.mxu0 0.0
    %741 = vmatpush.msra.mxu0 0.0
    %742 = vmatpush.msra.mxu0 0.0
    %v743 = vand.u32 %v677, 4294901760
    %v744 = vsub.f32 %v677, %v743
    %v745 = vand.u32 %v744, 4294901760
    %v746 = vsub.f32 %v744, %v745
    %v747 = vand.u32 %v746, 4294901760
    %748 = vmatpush.msra.mxu0 %v747
    %v749 = vand.u32 %v676, 4294901760
    %v750 = vsub.f32 %v676, %v749
    %v751 = vand.u32 %v750, 4294901760
    %v752 = vsub.f32 %v750, %v751
    %v753 = vand.u32 %v752, 4294901760
    %754 = vmatpush.msra.mxu0 %v753
    %v755 = vand.u32 %v93, 4294901760
    %756 = vmatmul.f32.gmra.mxu0 %v755
    %v757 = vpop.f32.mrf.mxu0
    %v758 = vadd.f32 %v703, %v757
    %v759 = vand.u32 %v96, 4294901760
    %760 = vmatmul.f32.gmra.mxu0 %v759
    %v761 = vpop.f32.mrf.mxu0
    %v762 = vadd.f32 %v711, %v761
    %v763 = vand.u32 %v99, 4294901760
    %764 = vmatmul.f32.gmra.mxu0 %v763
    %v765 = vpop.f32.mrf.mxu0
    %v766 = vadd.f32 %v719, %v765
    %v767 = vand.u32 %v102, 4294901760
    %768 = vmatmul.f32.gmra.mxu0 %v767
    %v769 = vpop.f32.mrf.mxu0
    %v770 = vadd.f32 %v727, %v769
    %771 = vdwg.mxu0
    %772 = vmatpush.msra.mxu0 0.0
    %773 = vmatpush.msra.mxu0 0.0
    %774 = vmatpush.msra.mxu0 0.0
    %775 = vmatpush.msra.mxu0 0.0
    %776 = vmatpush.msra.mxu0 0.0
    %777 = vmatpush.msra.mxu0 0.0
    %778 = vmatpush.msra.mxu0 0.0
    %779 = vmatpush.msra.mxu0 0.0
    %780 = vmatpush.msra.mxu0 0.0
    %781 = vmatpush.msra.mxu0 0.0
    %782 = vmatpush.msra.mxu0 0.0
    %783 = vmatpush.msra.mxu0 0.0
    %784 = vmatpush.msra.mxu0 0.0
    %785 = vmatpush.msra.mxu0 0.0
    %v786 = vand.u32 %v677, 4294901760
    %v787 = vsub.f32 %v677, %v786
    %788 = vmatpush.msra.mxu0 %v787
    %v789 = vand.u32 %v676, 4294901760
    %v790 = vsub.f32 %v676, %v789
    %791 = vmatpush.msra.mxu0 %v790
    %v792 = vand.u32 %v93, 4294901760
    %v793 = vsub.f32 %v93, %v792
    %794 = vmatmul.f32.gmra.mxu0 %v793
    %v795 = vpop.f32.mrf.mxu0
    %v796 = vadd.f32 %v758, %v795
    %v797 = vand.u32 %v96, 4294901760
    %v798 = vsub.f32 %v96, %v797
    %799 = vmatmul.f32.gmra.mxu0 %v798
    %v800 = vpop.f32.mrf.mxu0
    %v801 = vadd.f32 %v762, %v800
    %v802 = vand.u32 %v99, 4294901760
    %v803 = vsub.f32 %v99, %v802
    %804 = vmatmul.f32.gmra.mxu0 %v803
    %v805 = vpop.f32.mrf.mxu0
    %v806 = vadd.f32 %v766, %v805
    %v807 = vand.u32 %v102, 4294901760
    %v808 = vsub.f32 %v102, %v807
    %809 = vmatmul.f32.gmra.mxu0 %v808
    %v810 = vpop.f32.mrf.mxu0
    %v811 = vadd.f32 %v770, %v810
    %812 = vdwg.mxu0
    %813 = vmatpush.msra.mxu0 0.0
    %814 = vmatpush.msra.mxu0 0.0
    %815 = vmatpush.msra.mxu0 0.0
    %816 = vmatpush.msra.mxu0 0.0
    %817 = vmatpush.msra.mxu0 0.0
    %818 = vmatpush.msra.mxu0 0.0
    %819 = vmatpush.msra.mxu0 0.0
    %820 = vmatpush.msra.mxu0 0.0
    %821 = vmatpush.msra.mxu0 0.0
    %822 = vmatpush.msra.mxu0 0.0
    %823 = vmatpush.msra.mxu0 0.0
    %824 = vmatpush.msra.mxu0 0.0
    %825 = vmatpush.msra.mxu0 0.0
    %826 = vmatpush.msra.mxu0 0.0
    %v827 = vand.u32 %v677, 4294901760
    %828 = vmatpush.msra.mxu0 %v827
    %v829 = vand.u32 %v676, 4294901760
    %830 = vmatpush.msra.mxu0 %v829
    %v831 = vand.u32 %v93, 4294901760
    %v832 = vsub.f32 %v93, %v831
    %v833 = vand.u32 %v832, 4294901760
    %834 = vmatmul.f32.gmra.mxu0 %v833
    %v835 = vpop.f32.mrf.mxu0
    %v836 = vadd.f32 %v796, %v835
    %v837 = vand.u32 %v96, 4294901760
    %v838 = vsub.f32 %v96, %v837
    %v839 = vand.u32 %v838, 4294901760
    %840 = vmatmul.f32.gmra.mxu0 %v839
    %v841 = vpop.f32.mrf.mxu0
    %v842 = vadd.f32 %v801, %v841
    %v843 = vand.u32 %v99, 4294901760
    %v844 = vsub.f32 %v99, %v843
    %v845 = vand.u32 %v844, 4294901760
    %846 = vmatmul.f32.gmra.mxu0 %v845
    %v847 = vpop.f32.mrf.mxu0
    %v848 = vadd.f32 %v806, %v847
    %v849 = vand.u32 %v102, 4294901760
    %v850 = vsub.f32 %v102, %v849
    %v851 = vand.u32 %v850, 4294901760
    %852 = vmatmul.f32.gmra.mxu0 %v851
    %v853 = vpop.f32.mrf.mxu0
    %v854 = vadd.f32 %v811, %v853
    %855 = vdwg.mxu0
    %856 = vmatpush.msra.mxu0 0.0
    %857 = vmatpush.msra.mxu0 0.0
    %858 = vmatpush.msra.mxu0 0.0
    %859 = vmatpush.msra.mxu0 0.0
    %860 = vmatpush.msra.mxu0 0.0
    %861 = vmatpush.msra.mxu0 0.0
    %862 = vmatpush.msra.mxu0 0.0
    %863 = vmatpush.msra.mxu0 0.0
    %864 = vmatpush.msra.mxu0 0.0
    %865 = vmatpush.msra.mxu0 0.0
    %866 = vmatpush.msra.mxu0 0.0
    %867 = vmatpush.msra.mxu0 0.0
    %868 = vmatpush.msra.mxu0 0.0
    %869 = vmatpush.msra.mxu0 0.0
    %v870 = vand.u32 %v677, 4294901760
    %v871 = vsub.f32 %v677, %v870
    %v872 = vand.u32 %v871, 4294901760
    %873 = vmatpush.msra.mxu0 %v872
    %v874 = vand.u32 %v676, 4294901760
    %v875 = vsub.f32 %v676, %v874
    %v876 = vand.u32 %v875, 4294901760
    %877 = vmatpush.msra.mxu0 %v876
    %v878 = vand.u32 %v93, 4294901760
    %879 = vmatmul.f32.gmra.mxu0 %v878
    %v880 = vpop.f32.mrf.mxu0
    %v881 = vadd.f32 %v836, %v880
    %v882 = vand.u32 %v96, 4294901760
    %883 = vmatmul.f32.gmra.mxu0 %v882
    %v884 = vpop.f32.mrf.mxu0
    %v885 = vadd.f32 %v842, %v884
    %v886 = vand.u32 %v99, 4294901760
    %887 = vmatmul.f32.gmra.mxu0 %v886
    %v888 = vpop.f32.mrf.mxu0
    %v889 = vadd.f32 %v848, %v888
    %v890 = vand.u32 %v102, 4294901760
    %891 = vmatmul.f32.gmra.mxu0 %v890
    %v892 = vpop.f32.mrf.mxu0
    %v893 = vadd.f32 %v854, %v892
    %894 = vdwg.mxu0
    %895 = vmatpush.msra.mxu0 0.0
    %896 = vmatpush.msra.mxu0 0.0
    %897 = vmatpush.msra.mxu0 0.0
    %898 = vmatpush.msra.mxu0 0.0
    %899 = vmatpush.msra.mxu0 0.0
    %900 = vmatpush.msra.mxu0 0.0
    %901 = vmatpush.msra.mxu0 0.0
    %902 = vmatpush.msra.mxu0 0.0
    %903 = vmatpush.msra.mxu0 0.0
    %904 = vmatpush.msra.mxu0 0.0
    %905 = vmatpush.msra.mxu0 0.0
    %906 = vmatpush.msra.mxu0 0.0
    %907 = vmatpush.msra.mxu0 0.0
    %908 = vmatpush.msra.mxu0 0.0
    %v909 = vand.u32 %v677, 4294901760
    %910 = vmatpush.msra.mxu0 %v909
    %v911 = vand.u32 %v676, 4294901760
    %912 = vmatpush.msra.mxu0 %v911
    %v913 = vand.u32 %v93, 4294901760
    %914 = vmatmul.f32.gmra.mxu0 %v913
    %v915 = vpop.f32.mrf.mxu0
    %v916 = vadd.f32 %v881, %v915
    %v917 = vand.u32 %v96, 4294901760
    %918 = vmatmul.f32.gmra.mxu0 %v917
    %v919 = vpop.f32.mrf.mxu0
    %v920 = vadd.f32 %v885, %v919
    %v921 = vand.u32 %v99, 4294901760
    %922 = vmatmul.f32.gmra.mxu0 %v921
    %v923 = vpop.f32.mrf.mxu0
    %v924 = vadd.f32 %v889, %v923
    %v925 = vand.u32 %v102, 4294901760
    %926 = vmatmul.f32.gmra.mxu0 %v925
    %v927 = vpop.f32.mrf.mxu0
    %v928 = vadd.f32 %v893, %v927
    %929 = vdwg.mxu0
    %v930 = vrot.slane %v916, 7
    %v931 = vrot.slane %v920, 7
    %v932 = vrot.slane %v924, 7
    %v933 = vrot.slane %v928, 7
    %vm934 = vcmp.lt.s32.totalorder %v36, 1
    %v935 = vsel %vm934, %v932, %v933
    %v936 = vsel %vm934, %v931, %v932
    %v937 = vsel %vm934, %v930, %v931
    %v938 = vsel %vm934, %v933, %v930
    %v939 = vadd.s32 %v84, 4294967295
    %v940 = vadd.s32 %v85, 4294967295
    %v941 = vadd.s32 %v86, 4294967295
    %v942 = vadd.s32 %v87, 4294967295
    %vm943 = vcmp.ge.s32.totalorder %v939, 0
    %vm944 = vcmp.ge.s32.totalorder %v940, 0
    %vm945 = vcmp.ge.s32.totalorder %v941, 0
    %vm946 = vcmp.ge.s32.totalorder %v942, 0
    %vm947 = vcmp.lt.s32.totalorder %v939, 16
    %vm948 = vcmp.lt.s32.totalorder %v940, 16
    %vm949 = vcmp.lt.s32.totalorder %v941, 16
    %vm950 = vcmp.lt.s32.totalorder %v942, 16
    %vm951 = vmand %vm943, %vm947
    %vm952 = vmand %vm944, %vm948
    %vm953 = vmand %vm945, %vm949
    %vm954 = vmand %vm946, %vm950
    %v955 = vsel %vm951, %v938, 0.0
    %v956 = vsel %vm952, %v937, 0.0
    %v957 = vsel %vm953, %v936, 0.0
    %v958 = vsel %vm954, %v935, 0.0
    %v959 = vadd.f32 %v672, %v955
    %v960 = vadd.f32 %v673, %v956
    %v961 = vadd.f32 %v674, %v957
    %v962 = vadd.f32 %v675, %v958
    %v963 = vld [vmem:[%s1 + $0x30] sm:$0xff]
    %v964 = vld [vmem:[%s1 + $0x38] sm:$0xff]
    %965 = vmatpush.msra.mxu0 0.0
    %966 = vmatpush.msra.mxu0 0.0
    %967 = vmatpush.msra.mxu0 0.0
    %968 = vmatpush.msra.mxu0 0.0
    %969 = vmatpush.msra.mxu0 0.0
    %970 = vmatpush.msra.mxu0 0.0
    %971 = vmatpush.msra.mxu0 0.0
    %972 = vmatpush.msra.mxu0 0.0
    %973 = vmatpush.msra.mxu0 0.0
    %974 = vmatpush.msra.mxu0 0.0
    %975 = vmatpush.msra.mxu0 0.0
    %976 = vmatpush.msra.mxu0 0.0
    %977 = vmatpush.msra.mxu0 0.0
    %978 = vmatpush.msra.mxu0 0.0
    %v979 = vand.u32 %v964, 4294901760
    %980 = vmatpush.msra.mxu0 %v979
    %v981 = vand.u32 %v963, 4294901760
    %982 = vmatpush.msra.mxu0 %v981
    %v983 = vand.u32 %v93, 4294901760
    %v984 = vsub.f32 %v93, %v983
    %v985 = vand.u32 %v984, 4294901760
    %v986 = vsub.f32 %v984, %v985
    %v987 = vand.u32 %v986, 4294901760
    %988 = vmatmul.f32.gmra.mxu0 %v987
    %v989 = vpop.f32.mrf.mxu0
    %v990 = vadd.f32 0.0, %v989
    %v991 = vand.u32 %v96, 4294901760
    %v992 = vsub.f32 %v96, %v991
    %v993 = vand.u32 %v992, 4294901760
    %v994 = vsub.f32 %v992, %v993
    %v995 = vand.u32 %v994, 4294901760
    %996 = vmatmul.f32.gmra.mxu0 %v995
    %v997 = vpop.f32.mrf.mxu0
    %v998 = vadd.f32 0.0, %v997
    %v999 = vand.u32 %v99, 4294901760
    %v1000 = vsub.f32 %v99, %v999
    %v1001 = vand.u32 %v1000, 4294901760
    %v1002 = vsub.f32 %v1000, %v1001
    %v1003 = vand.u32 %v1002, 4294901760
    %1004 = vmatmul.f32.gmra.mxu0 %v1003
    %v1005 = vpop.f32.mrf.mxu0
    %v1006 = vadd.f32 0.0, %v1005
    %v1007 = vand.u32 %v102, 4294901760
    %v1008 = vsub.f32 %v102, %v1007
    %v1009 = vand.u32 %v1008, 4294901760
    %v1010 = vsub.f32 %v1008, %v1009
    %v1011 = vand.u32 %v1010, 4294901760
    %1012 = vmatmul.f32.gmra.mxu0 %v1011
    %v1013 = vpop.f32.mrf.mxu0
    %v1014 = vadd.f32 0.0, %v1013
    %1015 = vdwg.mxu0
    %1016 = vmatpush.msra.mxu0 0.0
    %1017 = vmatpush.msra.mxu0 0.0
    %1018 = vmatpush.msra.mxu0 0.0
    %1019 = vmatpush.msra.mxu0 0.0
    %1020 = vmatpush.msra.mxu0 0.0
    %1021 = vmatpush.msra.mxu0 0.0
    %1022 = vmatpush.msra.mxu0 0.0
    %1023 = vmatpush.msra.mxu0 0.0
    %1024 = vmatpush.msra.mxu0 0.0
    %1025 = vmatpush.msra.mxu0 0.0
    %1026 = vmatpush.msra.mxu0 0.0
    %1027 = vmatpush.msra.mxu0 0.0
    %1028 = vmatpush.msra.mxu0 0.0
    %1029 = vmatpush.msra.mxu0 0.0
    %v1030 = vand.u32 %v964, 4294901760
    %v1031 = vsub.f32 %v964, %v1030
    %v1032 = vand.u32 %v1031, 4294901760
    %v1033 = vsub.f32 %v1031, %v1032
    %v1034 = vand.u32 %v1033, 4294901760
    %1035 = vmatpush.msra.mxu0 %v1034
    %v1036 = vand.u32 %v963, 4294901760
    %v1037 = vsub.f32 %v963, %v1036
    %v1038 = vand.u32 %v1037, 4294901760
    %v1039 = vsub.f32 %v1037, %v1038
    %v1040 = vand.u32 %v1039, 4294901760
    %1041 = vmatpush.msra.mxu0 %v1040
    %v1042 = vand.u32 %v93, 4294901760
    %1043 = vmatmul.f32.gmra.mxu0 %v1042
    %v1044 = vpop.f32.mrf.mxu0
    %v1045 = vadd.f32 %v990, %v1044
    %v1046 = vand.u32 %v96, 4294901760
    %1047 = vmatmul.f32.gmra.mxu0 %v1046
    %v1048 = vpop.f32.mrf.mxu0
    %v1049 = vadd.f32 %v998, %v1048
    %v1050 = vand.u32 %v99, 4294901760
    %1051 = vmatmul.f32.gmra.mxu0 %v1050
    %v1052 = vpop.f32.mrf.mxu0
    %v1053 = vadd.f32 %v1006, %v1052
    %v1054 = vand.u32 %v102, 4294901760
    %1055 = vmatmul.f32.gmra.mxu0 %v1054
    %v1056 = vpop.f32.mrf.mxu0
    %v1057 = vadd.f32 %v1014, %v1056
    %1058 = vdwg.mxu0
    %1059 = vmatpush.msra.mxu0 0.0
    %1060 = vmatpush.msra.mxu0 0.0
    %1061 = vmatpush.msra.mxu0 0.0
    %1062 = vmatpush.msra.mxu0 0.0
    %1063 = vmatpush.msra.mxu0 0.0
    %1064 = vmatpush.msra.mxu0 0.0
    %1065 = vmatpush.msra.mxu0 0.0
    %1066 = vmatpush.msra.mxu0 0.0
    %1067 = vmatpush.msra.mxu0 0.0
    %1068 = vmatpush.msra.mxu0 0.0
    %1069 = vmatpush.msra.mxu0 0.0
    %1070 = vmatpush.msra.mxu0 0.0
    %1071 = vmatpush.msra.mxu0 0.0
    %1072 = vmatpush.msra.mxu0 0.0
    %v1073 = vand.u32 %v964, 4294901760
    %v1074 = vsub.f32 %v964, %v1073
    %1075 = vmatpush.msra.mxu0 %v1074
    %v1076 = vand.u32 %v963, 4294901760
    %v1077 = vsub.f32 %v963, %v1076
    %1078 = vmatpush.msra.mxu0 %v1077
    %v1079 = vand.u32 %v93, 4294901760
    %v1080 = vsub.f32 %v93, %v1079
    %1081 = vmatmul.f32.gmra.mxu0 %v1080
    %v1082 = vpop.f32.mrf.mxu0
    %v1083 = vadd.f32 %v1045, %v1082
    %v1084 = vand.u32 %v96, 4294901760
    %v1085 = vsub.f32 %v96, %v1084
    %1086 = vmatmul.f32.gmra.mxu0 %v1085
    %v1087 = vpop.f32.mrf.mxu0
    %v1088 = vadd.f32 %v1049, %v1087
    %v1089 = vand.u32 %v99, 4294901760
    %v1090 = vsub.f32 %v99, %v1089
    %1091 = vmatmul.f32.gmra.mxu0 %v1090
    %v1092 = vpop.f32.mrf.mxu0
    %v1093 = vadd.f32 %v1053, %v1092
    %v1094 = vand.u32 %v102, 4294901760
    %v1095 = vsub.f32 %v102, %v1094
    %1096 = vmatmul.f32.gmra.mxu0 %v1095
    %v1097 = vpop.f32.mrf.mxu0
    %v1098 = vadd.f32 %v1057, %v1097
    %1099 = vdwg.mxu0
    %1100 = vmatpush.msra.mxu0 0.0
    %1101 = vmatpush.msra.mxu0 0.0
    %1102 = vmatpush.msra.mxu0 0.0
    %1103 = vmatpush.msra.mxu0 0.0
    %1104 = vmatpush.msra.mxu0 0.0
    %1105 = vmatpush.msra.mxu0 0.0
    %1106 = vmatpush.msra.mxu0 0.0
    %1107 = vmatpush.msra.mxu0 0.0
    %1108 = vmatpush.msra.mxu0 0.0
    %1109 = vmatpush.msra.mxu0 0.0
    %1110 = vmatpush.msra.mxu0 0.0
    %1111 = vmatpush.msra.mxu0 0.0
    %1112 = vmatpush.msra.mxu0 0.0
    %1113 = vmatpush.msra.mxu0 0.0
    %v1114 = vand.u32 %v964, 4294901760
    %1115 = vmatpush.msra.mxu0 %v1114
    %v1116 = vand.u32 %v963, 4294901760
    %1117 = vmatpush.msra.mxu0 %v1116
    %v1118 = vand.u32 %v93, 4294901760
    %v1119 = vsub.f32 %v93, %v1118
    %v1120 = vand.u32 %v1119, 4294901760
    %1121 = vmatmul.f32.gmra.mxu0 %v1120
    %v1122 = vpop.f32.mrf.mxu0
    %v1123 = vadd.f32 %v1083, %v1122
    %v1124 = vand.u32 %v96, 4294901760
    %v1125 = vsub.f32 %v96, %v1124
    %v1126 = vand.u32 %v1125, 4294901760
    %1127 = vmatmul.f32.gmra.mxu0 %v1126
    %v1128 = vpop.f32.mrf.mxu0
    %v1129 = vadd.f32 %v1088, %v1128
    %v1130 = vand.u32 %v99, 4294901760
    %v1131 = vsub.f32 %v99, %v1130
    %v1132 = vand.u32 %v1131, 4294901760
    %1133 = vmatmul.f32.gmra.mxu0 %v1132
    %v1134 = vpop.f32.mrf.mxu0
    %v1135 = vadd.f32 %v1093, %v1134
    %v1136 = vand.u32 %v102, 4294901760
    %v1137 = vsub.f32 %v102, %v1136
    %v1138 = vand.u32 %v1137, 4294901760
    %1139 = vmatmul.f32.gmra.mxu0 %v1138
    %v1140 = vpop.f32.mrf.mxu0
    %v1141 = vadd.f32 %v1098, %v1140
    %1142 = vdwg.mxu0
    %1143 = vmatpush.msra.mxu0 0.0
    %1144 = vmatpush.msra.mxu0 0.0
    %1145 = vmatpush.msra.mxu0 0.0
    %1146 = vmatpush.msra.mxu0 0.0
    %1147 = vmatpush.msra.mxu0 0.0
    %1148 = vmatpush.msra.mxu0 0.0
    %1149 = vmatpush.msra.mxu0 0.0
    %1150 = vmatpush.msra.mxu0 0.0
    %1151 = vmatpush.msra.mxu0 0.0
    %1152 = vmatpush.msra.mxu0 0.0
    %1153 = vmatpush.msra.mxu0 0.0
    %1154 = vmatpush.msra.mxu0 0.0
    %1155 = vmatpush.msra.mxu0 0.0
    %1156 = vmatpush.msra.mxu0 0.0
    %v1157 = vand.u32 %v964, 4294901760
    %v1158 = vsub.f32 %v964, %v1157
    %v1159 = vand.u32 %v1158, 4294901760
    %1160 = vmatpush.msra.mxu0 %v1159
    %v1161 = vand.u32 %v963, 4294901760
    %v1162 = vsub.f32 %v963, %v1161
    %v1163 = vand.u32 %v1162, 4294901760
    %1164 = vmatpush.msra.mxu0 %v1163
    %v1165 = vand.u32 %v93, 4294901760
    %1166 = vmatmul.f32.gmra.mxu0 %v1165
    %v1167 = vpop.f32.mrf.mxu0
    %v1168 = vadd.f32 %v1123, %v1167
    %v1169 = vand.u32 %v96, 4294901760
    %1170 = vmatmul.f32.gmra.mxu0 %v1169
    %v1171 = vpop.f32.mrf.mxu0
    %v1172 = vadd.f32 %v1129, %v1171
    %v1173 = vand.u32 %v99, 4294901760
    %1174 = vmatmul.f32.gmra.mxu0 %v1173
    %v1175 = vpop.f32.mrf.mxu0
    %v1176 = vadd.f32 %v1135, %v1175
    %v1177 = vand.u32 %v102, 4294901760
    %1178 = vmatmul.f32.gmra.mxu0 %v1177
    %v1179 = vpop.f32.mrf.mxu0
    %v1180 = vadd.f32 %v1141, %v1179
    %1181 = vdwg.mxu0
    %1182 = vmatpush.msra.mxu0 0.0
    %1183 = vmatpush.msra.mxu0 0.0
    %1184 = vmatpush.msra.mxu0 0.0
    %1185 = vmatpush.msra.mxu0 0.0
    %1186 = vmatpush.msra.mxu0 0.0
    %1187 = vmatpush.msra.mxu0 0.0
    %1188 = vmatpush.msra.mxu0 0.0
    %1189 = vmatpush.msra.mxu0 0.0
    %1190 = vmatpush.msra.mxu0 0.0
    %1191 = vmatpush.msra.mxu0 0.0
    %1192 = vmatpush.msra.mxu0 0.0
    %1193 = vmatpush.msra.mxu0 0.0
    %1194 = vmatpush.msra.mxu0 0.0
    %1195 = vmatpush.msra.mxu0 0.0
    %v1196 = vand.u32 %v964, 4294901760
    %1197 = vmatpush.msra.mxu0 %v1196
    %v1198 = vand.u32 %v963, 4294901760
    %1199 = vmatpush.msra.mxu0 %v1198
    %v1200 = vand.u32 %v93, 4294901760
    %1201 = vmatmul.f32.gmra.mxu0 %v1200
    %v1202 = vpop.f32.mrf.mxu0
    %v1203 = vadd.f32 %v1168, %v1202
    %v1204 = vand.u32 %v96, 4294901760
    %1205 = vmatmul.f32.gmra.mxu0 %v1204
    %v1206 = vpop.f32.mrf.mxu0
    %v1207 = vadd.f32 %v1172, %v1206
    %v1208 = vand.u32 %v99, 4294901760
    %1209 = vmatmul.f32.gmra.mxu0 %v1208
    %v1210 = vpop.f32.mrf.mxu0
    %v1211 = vadd.f32 %v1176, %v1210
    %v1212 = vand.u32 %v102, 4294901760
    %1213 = vmatmul.f32.gmra.mxu0 %v1212
    %v1214 = vpop.f32.mrf.mxu0
    %v1215 = vadd.f32 %v1180, %v1214
    %1216 = vdwg.mxu0
    %v1217 = vadd.f32 %v959, %v1203
    %v1218 = vadd.f32 %v960, %v1207
    %v1219 = vadd.f32 %v961, %v1211
    %v1220 = vadd.f32 %v962, %v1215
    %v1221 = vld [vmem:[%s1 + $0x40] sm:$0xff]
    %v1222 = vld [vmem:[%s1 + $0x48] sm:$0xff]
    %1223 = vmatpush.msra.mxu0 0.0
    %1224 = vmatpush.msra.mxu0 0.0
    %1225 = vmatpush.msra.mxu0 0.0
    %1226 = vmatpush.msra.mxu0 0.0
    %1227 = vmatpush.msra.mxu0 0.0
    %1228 = vmatpush.msra.mxu0 0.0
    %1229 = vmatpush.msra.mxu0 0.0
    %1230 = vmatpush.msra.mxu0 0.0
    %1231 = vmatpush.msra.mxu0 0.0
    %1232 = vmatpush.msra.mxu0 0.0
    %1233 = vmatpush.msra.mxu0 0.0
    %1234 = vmatpush.msra.mxu0 0.0
    %1235 = vmatpush.msra.mxu0 0.0
    %1236 = vmatpush.msra.mxu0 0.0
    %v1237 = vand.u32 %v1222, 4294901760
    %1238 = vmatpush.msra.mxu0 %v1237
    %v1239 = vand.u32 %v1221, 4294901760
    %1240 = vmatpush.msra.mxu0 %v1239
    %v1241 = vand.u32 %v93, 4294901760
    %v1242 = vsub.f32 %v93, %v1241
    %v1243 = vand.u32 %v1242, 4294901760
    %v1244 = vsub.f32 %v1242, %v1243
    %v1245 = vand.u32 %v1244, 4294901760
    %1246 = vmatmul.f32.gmra.mxu0 %v1245
    %v1247 = vpop.f32.mrf.mxu0
    %v1248 = vadd.f32 0.0, %v1247
    %v1249 = vand.u32 %v96, 4294901760
    %v1250 = vsub.f32 %v96, %v1249
    %v1251 = vand.u32 %v1250, 4294901760
    %v1252 = vsub.f32 %v1250, %v1251
    %v1253 = vand.u32 %v1252, 4294901760
    %1254 = vmatmul.f32.gmra.mxu0 %v1253
    %v1255 = vpop.f32.mrf.mxu0
    %v1256 = vadd.f32 0.0, %v1255
    %v1257 = vand.u32 %v99, 4294901760
    %v1258 = vsub.f32 %v99, %v1257
    %v1259 = vand.u32 %v1258, 4294901760
    %v1260 = vsub.f32 %v1258, %v1259
    %v1261 = vand.u32 %v1260, 4294901760
    %1262 = vmatmul.f32.gmra.mxu0 %v1261
    %v1263 = vpop.f32.mrf.mxu0
    %v1264 = vadd.f32 0.0, %v1263
    %v1265 = vand.u32 %v102, 4294901760
    %v1266 = vsub.f32 %v102, %v1265
    %v1267 = vand.u32 %v1266, 4294901760
    %v1268 = vsub.f32 %v1266, %v1267
    %v1269 = vand.u32 %v1268, 4294901760
    %1270 = vmatmul.f32.gmra.mxu0 %v1269
    %v1271 = vpop.f32.mrf.mxu0
    %v1272 = vadd.f32 0.0, %v1271
    %1273 = vdwg.mxu0
    %1274 = vmatpush.msra.mxu0 0.0
    %1275 = vmatpush.msra.mxu0 0.0
    %1276 = vmatpush.msra.mxu0 0.0
    %1277 = vmatpush.msra.mxu0 0.0
    %1278 = vmatpush.msra.mxu0 0.0
    %1279 = vmatpush.msra.mxu0 0.0
    %1280 = vmatpush.msra.mxu0 0.0
    %1281 = vmatpush.msra.mxu0 0.0
    %1282 = vmatpush.msra.mxu0 0.0
    %1283 = vmatpush.msra.mxu0 0.0
    %1284 = vmatpush.msra.mxu0 0.0
    %1285 = vmatpush.msra.mxu0 0.0
    %1286 = vmatpush.msra.mxu0 0.0
    %1287 = vmatpush.msra.mxu0 0.0
    %v1288 = vand.u32 %v1222, 4294901760
    %v1289 = vsub.f32 %v1222, %v1288
    %v1290 = vand.u32 %v1289, 4294901760
    %v1291 = vsub.f32 %v1289, %v1290
    %v1292 = vand.u32 %v1291, 4294901760
    %1293 = vmatpush.msra.mxu0 %v1292
    %v1294 = vand.u32 %v1221, 4294901760
    %v1295 = vsub.f32 %v1221, %v1294
    %v1296 = vand.u32 %v1295, 4294901760
    %v1297 = vsub.f32 %v1295, %v1296
    %v1298 = vand.u32 %v1297, 4294901760
    %1299 = vmatpush.msra.mxu0 %v1298
    %v1300 = vand.u32 %v93, 4294901760
    %1301 = vmatmul.f32.gmra.mxu0 %v1300
    %v1302 = vpop.f32.mrf.mxu0
    %v1303 = vadd.f32 %v1248, %v1302
    %v1304 = vand.u32 %v96, 4294901760
    %1305 = vmatmul.f32.gmra.mxu0 %v1304
    %v1306 = vpop.f32.mrf.mxu0
    %v1307 = vadd.f32 %v1256, %v1306
    %v1308 = vand.u32 %v99, 4294901760
    %1309 = vmatmul.f32.gmra.mxu0 %v1308
    %v1310 = vpop.f32.mrf.mxu0
    %v1311 = vadd.f32 %v1264, %v1310
    %v1312 = vand.u32 %v102, 4294901760
    %1313 = vmatmul.f32.gmra.mxu0 %v1312
    %v1314 = vpop.f32.mrf.mxu0
    %v1315 = vadd.f32 %v1272, %v1314
    %1316 = vdwg.mxu0
    %1317 = vmatpush.msra.mxu0 0.0
    %1318 = vmatpush.msra.mxu0 0.0
    %1319 = vmatpush.msra.mxu0 0.0
    %1320 = vmatpush.msra.mxu0 0.0
    %1321 = vmatpush.msra.mxu0 0.0
    %1322 = vmatpush.msra.mxu0 0.0
    %1323 = vmatpush.msra.mxu0 0.0
    %1324 = vmatpush.msra.mxu0 0.0
    %1325 = vmatpush.msra.mxu0 0.0
    %1326 = vmatpush.msra.mxu0 0.0
    %1327 = vmatpush.msra.mxu0 0.0
    %1328 = vmatpush.msra.mxu0 0.0
    %1329 = vmatpush.msra.mxu0 0.0
    %1330 = vmatpush.msra.mxu0 0.0
    %v1331 = vand.u32 %v1222, 4294901760
    %v1332 = vsub.f32 %v1222, %v1331
    %1333 = vmatpush.msra.mxu0 %v1332
    %v1334 = vand.u32 %v1221, 4294901760
    %v1335 = vsub.f32 %v1221, %v1334
    %1336 = vmatpush.msra.mxu0 %v1335
    %v1337 = vand.u32 %v93, 4294901760
    %v1338 = vsub.f32 %v93, %v1337
    %1339 = vmatmul.f32.gmra.mxu0 %v1338
    %v1340 = vpop.f32.mrf.mxu0
    %v1341 = vadd.f32 %v1303, %v1340
    %v1342 = vand.u32 %v96, 4294901760
    %v1343 = vsub.f32 %v96, %v1342
    %1344 = vmatmul.f32.gmra.mxu0 %v1343
    %v1345 = vpop.f32.mrf.mxu0
    %v1346 = vadd.f32 %v1307, %v1345
    %v1347 = vand.u32 %v99, 4294901760
    %v1348 = vsub.f32 %v99, %v1347
    %1349 = vmatmul.f32.gmra.mxu0 %v1348
    %v1350 = vpop.f32.mrf.mxu0
    %v1351 = vadd.f32 %v1311, %v1350
    %v1352 = vand.u32 %v102, 4294901760
    %v1353 = vsub.f32 %v102, %v1352
    %1354 = vmatmul.f32.gmra.mxu0 %v1353
    %v1355 = vpop.f32.mrf.mxu0
    %v1356 = vadd.f32 %v1315, %v1355
    %1357 = vdwg.mxu0
    %1358 = vmatpush.msra.mxu0 0.0
    %1359 = vmatpush.msra.mxu0 0.0
    %1360 = vmatpush.msra.mxu0 0.0
    %1361 = vmatpush.msra.mxu0 0.0
    %1362 = vmatpush.msra.mxu0 0.0
    %1363 = vmatpush.msra.mxu0 0.0
    %1364 = vmatpush.msra.mxu0 0.0
    %1365 = vmatpush.msra.mxu0 0.0
    %1366 = vmatpush.msra.mxu0 0.0
    %1367 = vmatpush.msra.mxu0 0.0
    %1368 = vmatpush.msra.mxu0 0.0
    %1369 = vmatpush.msra.mxu0 0.0
    %1370 = vmatpush.msra.mxu0 0.0
    %1371 = vmatpush.msra.mxu0 0.0
    %v1372 = vand.u32 %v1222, 4294901760
    %1373 = vmatpush.msra.mxu0 %v1372
    %v1374 = vand.u32 %v1221, 4294901760
    %1375 = vmatpush.msra.mxu0 %v1374
    %v1376 = vand.u32 %v93, 4294901760
    %v1377 = vsub.f32 %v93, %v1376
    %v1378 = vand.u32 %v1377, 4294901760
    %1379 = vmatmul.f32.gmra.mxu0 %v1378
    %v1380 = vpop.f32.mrf.mxu0
    %v1381 = vadd.f32 %v1341, %v1380
    %v1382 = vand.u32 %v96, 4294901760
    %v1383 = vsub.f32 %v96, %v1382
    %v1384 = vand.u32 %v1383, 4294901760
    %1385 = vmatmul.f32.gmra.mxu0 %v1384
    %v1386 = vpop.f32.mrf.mxu0
    %v1387 = vadd.f32 %v1346, %v1386
    %v1388 = vand.u32 %v99, 4294901760
    %v1389 = vsub.f32 %v99, %v1388
    %v1390 = vand.u32 %v1389, 4294901760
    %1391 = vmatmul.f32.gmra.mxu0 %v1390
    %v1392 = vpop.f32.mrf.mxu0
    %v1393 = vadd.f32 %v1351, %v1392
    %v1394 = vand.u32 %v102, 4294901760
    %v1395 = vsub.f32 %v102, %v1394
    %v1396 = vand.u32 %v1395, 4294901760
    %1397 = vmatmul.f32.gmra.mxu0 %v1396
    %v1398 = vpop.f32.mrf.mxu0
    %v1399 = vadd.f32 %v1356, %v1398
    %1400 = vdwg.mxu0
    %1401 = vmatpush.msra.mxu0 0.0
    %1402 = vmatpush.msra.mxu0 0.0
    %1403 = vmatpush.msra.mxu0 0.0
    %1404 = vmatpush.msra.mxu0 0.0
    %1405 = vmatpush.msra.mxu0 0.0
    %1406 = vmatpush.msra.mxu0 0.0
    %1407 = vmatpush.msra.mxu0 0.0
    %1408 = vmatpush.msra.mxu0 0.0
    %1409 = vmatpush.msra.mxu0 0.0
    %1410 = vmatpush.msra.mxu0 0.0
    %1411 = vmatpush.msra.mxu0 0.0
    %1412 = vmatpush.msra.mxu0 0.0
    %1413 = vmatpush.msra.mxu0 0.0
    %1414 = vmatpush.msra.mxu0 0.0
    %v1415 = vand.u32 %v1222, 4294901760
    %v1416 = vsub.f32 %v1222, %v1415
    %v1417 = vand.u32 %v1416, 4294901760
    %1418 = vmatpush.msra.mxu0 %v1417
    %v1419 = vand.u32 %v1221, 4294901760
    %v1420 = vsub.f32 %v1221, %v1419
    %v1421 = vand.u32 %v1420, 4294901760
    %1422 = vmatpush.msra.mxu0 %v1421
    %v1423 = vand.u32 %v93, 4294901760
    %1424 = vmatmul.f32.gmra.mxu0 %v1423
    %v1425 = vpop.f32.mrf.mxu0
    %v1426 = vadd.f32 %v1381, %v1425
    %v1427 = vand.u32 %v96, 4294901760
    %1428 = vmatmul.f32.gmra.mxu0 %v1427
    %v1429 = vpop.f32.mrf.mxu0
    %v1430 = vadd.f32 %v1387, %v1429
    %v1431 = vand.u32 %v99, 4294901760
    %1432 = vmatmul.f32.gmra.mxu0 %v1431
    %v1433 = vpop.f32.mrf.mxu0
    %v1434 = vadd.f32 %v1393, %v1433
    %v1435 = vand.u32 %v102, 4294901760
    %1436 = vmatmul.f32.gmra.mxu0 %v1435
    %v1437 = vpop.f32.mrf.mxu0
    %v1438 = vadd.f32 %v1399, %v1437
    %1439 = vdwg.mxu0
    %1440 = vmatpush.msra.mxu0 0.0
    %1441 = vmatpush.msra.mxu0 0.0
    %1442 = vmatpush.msra.mxu0 0.0
    %1443 = vmatpush.msra.mxu0 0.0
    %1444 = vmatpush.msra.mxu0 0.0
    %1445 = vmatpush.msra.mxu0 0.0
    %1446 = vmatpush.msra.mxu0 0.0
    %1447 = vmatpush.msra.mxu0 0.0
    %1448 = vmatpush.msra.mxu0 0.0
    %1449 = vmatpush.msra.mxu0 0.0
    %1450 = vmatpush.msra.mxu0 0.0
    %1451 = vmatpush.msra.mxu0 0.0
    %1452 = vmatpush.msra.mxu0 0.0
    %1453 = vmatpush.msra.mxu0 0.0
    %v1454 = vand.u32 %v1222, 4294901760
    %1455 = vmatpush.msra.mxu0 %v1454
    %v1456 = vand.u32 %v1221, 4294901760
    %1457 = vmatpush.msra.mxu0 %v1456
    %v1458 = vand.u32 %v93, 4294901760
    %1459 = vmatmul.f32.gmra.mxu0 %v1458
    %v1460 = vpop.f32.mrf.mxu0
    %v1461 = vadd.f32 %v1426, %v1460
    %v1462 = vand.u32 %v96, 4294901760
    %1463 = vmatmul.f32.gmra.mxu0 %v1462
    %v1464 = vpop.f32.mrf.mxu0
    %v1465 = vadd.f32 %v1430, %v1464
    %v1466 = vand.u32 %v99, 4294901760
    %1467 = vmatmul.f32.gmra.mxu0 %v1466
    %v1468 = vpop.f32.mrf.mxu0
    %v1469 = vadd.f32 %v1434, %v1468
    %v1470 = vand.u32 %v102, 4294901760
    %1471 = vmatmul.f32.gmra.mxu0 %v1470
    %v1472 = vpop.f32.mrf.mxu0
    %v1473 = vadd.f32 %v1438, %v1472
    %1474 = vdwg.mxu0
    %v1475 = vrot.slane %v1461, 1
    %v1476 = vrot.slane %v1465, 1
    %v1477 = vrot.slane %v1469, 1
    %v1478 = vrot.slane %v1473, 1
    %vm1479 = vcmp.lt.s32.totalorder %v36, 7
    %v1480 = vsel %vm1479, %v1477, %v1478
    %v1481 = vsel %vm1479, %v1476, %v1477
    %v1482 = vsel %vm1479, %v1475, %v1476
    %v1483 = vsel %vm1479, %v1478, %v1475
    %v1484 = vadd.s32 %v84, 1
    %v1485 = vadd.s32 %v85, 1
    %v1486 = vadd.s32 %v86, 1
    %v1487 = vadd.s32 %v87, 1
    %vm1488 = vcmp.ge.s32.totalorder %v1484, 0
    %vm1489 = vcmp.ge.s32.totalorder %v1485, 0
    %vm1490 = vcmp.ge.s32.totalorder %v1486, 0
    %vm1491 = vcmp.ge.s32.totalorder %v1487, 0
    %vm1492 = vcmp.lt.s32.totalorder %v1484, 16
    %vm1493 = vcmp.lt.s32.totalorder %v1485, 16
    %vm1494 = vcmp.lt.s32.totalorder %v1486, 16
    %vm1495 = vcmp.lt.s32.totalorder %v1487, 16
    %vm1496 = vmand %vm1488, %vm1492
    %vm1497 = vmand %vm1489, %vm1493
    %vm1498 = vmand %vm1490, %vm1494
    %vm1499 = vmand %vm1491, %vm1495
    %v1500 = vsel %vm1496, %v1482, 0.0
    %v1501 = vsel %vm1497, %v1481, 0.0
    %v1502 = vsel %vm1498, %v1480, 0.0
    %v1503 = vsel %vm1499, %v1483, 0.0
    %v1504 = vadd.f32 %v1217, %v1500
    %v1505 = vadd.f32 %v1218, %v1501
    %v1506 = vadd.f32 %v1219, %v1502
    %v1507 = vadd.f32 %v1220, %v1503
    %v1508 = vld [vmem:[%s1 + $0x50] sm:$0xff]
    %v1509 = vld [vmem:[%s1 + $0x58] sm:$0xff]
    %1510 = vmatpush.msra.mxu0 0.0
    %1511 = vmatpush.msra.mxu0 0.0
    %1512 = vmatpush.msra.mxu0 0.0
    %1513 = vmatpush.msra.mxu0 0.0
    %1514 = vmatpush.msra.mxu0 0.0
    %1515 = vmatpush.msra.mxu0 0.0
    %1516 = vmatpush.msra.mxu0 0.0
    %1517 = vmatpush.msra.mxu0 0.0
    %1518 = vmatpush.msra.mxu0 0.0
    %1519 = vmatpush.msra.mxu0 0.0
    %1520 = vmatpush.msra.mxu0 0.0
    %1521 = vmatpush.msra.mxu0 0.0
    %1522 = vmatpush.msra.mxu0 0.0
    %1523 = vmatpush.msra.mxu0 0.0
    %v1524 = vand.u32 %v1509, 4294901760
    %1525 = vmatpush.msra.mxu0 %v1524
    %v1526 = vand.u32 %v1508, 4294901760
    %1527 = vmatpush.msra.mxu0 %v1526
    %v1528 = vand.u32 %v93, 4294901760
    %v1529 = vsub.f32 %v93, %v1528
    %v1530 = vand.u32 %v1529, 4294901760
    %v1531 = vsub.f32 %v1529, %v1530
    %v1532 = vand.u32 %v1531, 4294901760
    %1533 = vmatmul.f32.gmra.mxu0 %v1532
    %v1534 = vpop.f32.mrf.mxu0
    %v1535 = vadd.f32 0.0, %v1534
    %v1536 = vand.u32 %v96, 4294901760
    %v1537 = vsub.f32 %v96, %v1536
    %v1538 = vand.u32 %v1537, 4294901760
    %v1539 = vsub.f32 %v1537, %v1538
    %v1540 = vand.u32 %v1539, 4294901760
    %1541 = vmatmul.f32.gmra.mxu0 %v1540
    %v1542 = vpop.f32.mrf.mxu0
    %v1543 = vadd.f32 0.0, %v1542
    %v1544 = vand.u32 %v99, 4294901760
    %v1545 = vsub.f32 %v99, %v1544
    %v1546 = vand.u32 %v1545, 4294901760
    %v1547 = vsub.f32 %v1545, %v1546
    %v1548 = vand.u32 %v1547, 4294901760
    %1549 = vmatmul.f32.gmra.mxu0 %v1548
    %v1550 = vpop.f32.mrf.mxu0
    %v1551 = vadd.f32 0.0, %v1550
    %v1552 = vand.u32 %v102, 4294901760
    %v1553 = vsub.f32 %v102, %v1552
    %v1554 = vand.u32 %v1553, 4294901760
    %v1555 = vsub.f32 %v1553, %v1554
    %v1556 = vand.u32 %v1555, 4294901760
    %1557 = vmatmul.f32.gmra.mxu0 %v1556
    %v1558 = vpop.f32.mrf.mxu0
    %v1559 = vadd.f32 0.0, %v1558
    %1560 = vdwg.mxu0
    %1561 = vmatpush.msra.mxu0 0.0
    %1562 = vmatpush.msra.mxu0 0.0
    %1563 = vmatpush.msra.mxu0 0.0
    %1564 = vmatpush.msra.mxu0 0.0
    %1565 = vmatpush.msra.mxu0 0.0
    %1566 = vmatpush.msra.mxu0 0.0
    %1567 = vmatpush.msra.mxu0 0.0
    %1568 = vmatpush.msra.mxu0 0.0
    %1569 = vmatpush.msra.mxu0 0.0
    %1570 = vmatpush.msra.mxu0 0.0
    %1571 = vmatpush.msra.mxu0 0.0
    %1572 = vmatpush.msra.mxu0 0.0
    %1573 = vmatpush.msra.mxu0 0.0
    %1574 = vmatpush.msra.mxu0 0.0
    %v1575 = vand.u32 %v1509, 4294901760
    %v1576 = vsub.f32 %v1509, %v1575
    %v1577 = vand.u32 %v1576, 4294901760
    %v1578 = vsub.f32 %v1576, %v1577
    %v1579 = vand.u32 %v1578, 4294901760
    %1580 = vmatpush.msra.mxu0 %v1579
    %v1581 = vand.u32 %v1508, 4294901760
    %v1582 = vsub.f32 %v1508, %v1581
    %v1583 = vand.u32 %v1582, 4294901760
    %v1584 = vsub.f32 %v1582, %v1583
    %v1585 = vand.u32 %v1584, 4294901760
    %1586 = vmatpush.msra.mxu0 %v1585
    %v1587 = vand.u32 %v93, 4294901760
    %1588 = vmatmul.f32.gmra.mxu0 %v1587
    %v1589 = vpop.f32.mrf.mxu0
    %v1590 = vadd.f32 %v1535, %v1589
    %v1591 = vand.u32 %v96, 4294901760
    %1592 = vmatmul.f32.gmra.mxu0 %v1591
    %v1593 = vpop.f32.mrf.mxu0
    %v1594 = vadd.f32 %v1543, %v1593
    %v1595 = vand.u32 %v99, 4294901760
    %1596 = vmatmul.f32.gmra.mxu0 %v1595
    %v1597 = vpop.f32.mrf.mxu0
    %v1598 = vadd.f32 %v1551, %v1597
    %v1599 = vand.u32 %v102, 4294901760
    %1600 = vmatmul.f32.gmra.mxu0 %v1599
    %v1601 = vpop.f32.mrf.mxu0
    %v1602 = vadd.f32 %v1559, %v1601
    %1603 = vdwg.mxu0
    %1604 = vmatpush.msra.mxu0 0.0
    %1605 = vmatpush.msra.mxu0 0.0
    %1606 = vmatpush.msra.mxu0 0.0
    %1607 = vmatpush.msra.mxu0 0.0
    %1608 = vmatpush.msra.mxu0 0.0
    %1609 = vmatpush.msra.mxu0 0.0
    %1610 = vmatpush.msra.mxu0 0.0
    %1611 = vmatpush.msra.mxu0 0.0
    %1612 = vmatpush.msra.mxu0 0.0
    %1613 = vmatpush.msra.mxu0 0.0
    %1614 = vmatpush.msra.mxu0 0.0
    %1615 = vmatpush.msra.mxu0 0.0
    %1616 = vmatpush.msra.mxu0 0.0
    %1617 = vmatpush.msra.mxu0 0.0
    %v1618 = vand.u32 %v1509, 4294901760
    %v1619 = vsub.f32 %v1509, %v1618
    %1620 = vmatpush.msra.mxu0 %v1619
    %v1621 = vand.u32 %v1508, 4294901760
    %v1622 = vsub.f32 %v1508, %v1621
    %1623 = vmatpush.msra.mxu0 %v1622
    %v1624 = vand.u32 %v93, 4294901760
    %v1625 = vsub.f32 %v93, %v1624
    %1626 = vmatmul.f32.gmra.mxu0 %v1625
    %v1627 = vpop.f32.mrf.mxu0
    %v1628 = vadd.f32 %v1590, %v1627
    %v1629 = vand.u32 %v96, 4294901760
    %v1630 = vsub.f32 %v96, %v1629
    %1631 = vmatmul.f32.gmra.mxu0 %v1630
    %v1632 = vpop.f32.mrf.mxu0
    %v1633 = vadd.f32 %v1594, %v1632
    %v1634 = vand.u32 %v99, 4294901760
    %v1635 = vsub.f32 %v99, %v1634
    %1636 = vmatmul.f32.gmra.mxu0 %v1635
    %v1637 = vpop.f32.mrf.mxu0
    %v1638 = vadd.f32 %v1598, %v1637
    %v1639 = vand.u32 %v102, 4294901760
    %v1640 = vsub.f32 %v102, %v1639
    %1641 = vmatmul.f32.gmra.mxu0 %v1640
    %v1642 = vpop.f32.mrf.mxu0
    %v1643 = vadd.f32 %v1602, %v1642
    %1644 = vdwg.mxu0
    %1645 = vmatpush.msra.mxu0 0.0
    %1646 = vmatpush.msra.mxu0 0.0
    %1647 = vmatpush.msra.mxu0 0.0
    %1648 = vmatpush.msra.mxu0 0.0
    %1649 = vmatpush.msra.mxu0 0.0
    %1650 = vmatpush.msra.mxu0 0.0
    %1651 = vmatpush.msra.mxu0 0.0
    %1652 = vmatpush.msra.mxu0 0.0
    %1653 = vmatpush.msra.mxu0 0.0
    %1654 = vmatpush.msra.mxu0 0.0
    %1655 = vmatpush.msra.mxu0 0.0
    %1656 = vmatpush.msra.mxu0 0.0
    %1657 = vmatpush.msra.mxu0 0.0
    %1658 = vmatpush.msra.mxu0 0.0
    %v1659 = vand.u32 %v1509, 4294901760
    %1660 = vmatpush.msra.mxu0 %v1659
    %v1661 = vand.u32 %v1508, 4294901760
    %1662 = vmatpush.msra.mxu0 %v1661
    %v1663 = vand.u32 %v93, 4294901760
    %v1664 = vsub.f32 %v93, %v1663
    %v1665 = vand.u32 %v1664, 4294901760
    %1666 = vmatmul.f32.gmra.mxu0 %v1665
    %v1667 = vpop.f32.mrf.mxu0
    %v1668 = vadd.f32 %v1628, %v1667
    %v1669 = vand.u32 %v96, 4294901760
    %v1670 = vsub.f32 %v96, %v1669
    %v1671 = vand.u32 %v1670, 4294901760
    %1672 = vmatmul.f32.gmra.mxu0 %v1671
    %v1673 = vpop.f32.mrf.mxu0
    %v1674 = vadd.f32 %v1633, %v1673
    %v1675 = vand.u32 %v99, 4294901760
    %v1676 = vsub.f32 %v99, %v1675
    %v1677 = vand.u32 %v1676, 4294901760
    %1678 = vmatmul.f32.gmra.mxu0 %v1677
    %v1679 = vpop.f32.mrf.mxu0
    %v1680 = vadd.f32 %v1638, %v1679
    %v1681 = vand.u32 %v102, 4294901760
    %v1682 = vsub.f32 %v102, %v1681
    %v1683 = vand.u32 %v1682, 4294901760
    %1684 = vmatmul.f32.gmra.mxu0 %v1683
    %v1685 = vpop.f32.mrf.mxu0
    %v1686 = vadd.f32 %v1643, %v1685
    %1687 = vdwg.mxu0
    %1688 = vmatpush.msra.mxu0 0.0
    %1689 = vmatpush.msra.mxu0 0.0
    %1690 = vmatpush.msra.mxu0 0.0
    %1691 = vmatpush.msra.mxu0 0.0
    %1692 = vmatpush.msra.mxu0 0.0
    %1693 = vmatpush.msra.mxu0 0.0
    %1694 = vmatpush.msra.mxu0 0.0
    %1695 = vmatpush.msra.mxu0 0.0
    %1696 = vmatpush.msra.mxu0 0.0
    %1697 = vmatpush.msra.mxu0 0.0
    %1698 = vmatpush.msra.mxu0 0.0
    %1699 = vmatpush.msra.mxu0 0.0
    %1700 = vmatpush.msra.mxu0 0.0
    %1701 = vmatpush.msra.mxu0 0.0
    %v1702 = vand.u32 %v1509, 4294901760
    %v1703 = vsub.f32 %v1509, %v1702
    %v1704 = vand.u32 %v1703, 4294901760
    %1705 = vmatpush.msra.mxu0 %v1704
    %v1706 = vand.u32 %v1508, 4294901760
    %v1707 = vsub.f32 %v1508, %v1706
    %v1708 = vand.u32 %v1707, 4294901760
    %1709 = vmatpush.msra.mxu0 %v1708
    %v1710 = vand.u32 %v93, 4294901760
    %1711 = vmatmul.f32.gmra.mxu0 %v1710
    %v1712 = vpop.f32.mrf.mxu0
    %v1713 = vadd.f32 %v1668, %v1712
    %v1714 = vand.u32 %v96, 4294901760
    %1715 = vmatmul.f32.gmra.mxu0 %v1714
    %v1716 = vpop.f32.mrf.mxu0
    %v1717 = vadd.f32 %v1674, %v1716
    %v1718 = vand.u32 %v99, 4294901760
    %1719 = vmatmul.f32.gmra.mxu0 %v1718
    %v1720 = vpop.f32.mrf.mxu0
    %v1721 = vadd.f32 %v1680, %v1720
    %v1722 = vand.u32 %v102, 4294901760
    %1723 = vmatmul.f32.gmra.mxu0 %v1722
    %v1724 = vpop.f32.mrf.mxu0
    %v1725 = vadd.f32 %v1686, %v1724
    %1726 = vdwg.mxu0
    %1727 = vmatpush.msra.mxu0 0.0
    %1728 = vmatpush.msra.mxu0 0.0
    %1729 = vmatpush.msra.mxu0 0.0
    %1730 = vmatpush.msra.mxu0 0.0
    %1731 = vmatpush.msra.mxu0 0.0
    %1732 = vmatpush.msra.mxu0 0.0
    %1733 = vmatpush.msra.mxu0 0.0
    %1734 = vmatpush.msra.mxu0 0.0
    %1735 = vmatpush.msra.mxu0 0.0
    %1736 = vmatpush.msra.mxu0 0.0
    %1737 = vmatpush.msra.mxu0 0.0
    %1738 = vmatpush.msra.mxu0 0.0
    %1739 = vmatpush.msra.mxu0 0.0
    %1740 = vmatpush.msra.mxu0 0.0
    %v1741 = vand.u32 %v1509, 4294901760
    %1742 = vmatpush.msra.mxu0 %v1741
    %v1743 = vand.u32 %v1508, 4294901760
    %1744 = vmatpush.msra.mxu0 %v1743
    %v1745 = vand.u32 %v93, 4294901760
    %1746 = vmatmul.f32.gmra.mxu0 %v1745
    %v1747 = vpop.f32.mrf.mxu0
    %v1748 = vadd.f32 %v1713, %v1747
    %v1749 = vand.u32 %v96, 4294901760
    %1750 = vmatmul.f32.gmra.mxu0 %v1749
    %v1751 = vpop.f32.mrf.mxu0
    %v1752 = vadd.f32 %v1717, %v1751
    %v1753 = vand.u32 %v99, 4294901760
    %1754 = vmatmul.f32.gmra.mxu0 %v1753
    %v1755 = vpop.f32.mrf.mxu0
    %v1756 = vadd.f32 %v1721, %v1755
    %v1757 = vand.u32 %v102, 4294901760
    %1758 = vmatmul.f32.gmra.mxu0 %v1757
    %v1759 = vpop.f32.mrf.mxu0
    %v1760 = vadd.f32 %v1725, %v1759
    %1761 = vdwg.mxu0
    %v1762 = vrot.slane %v1748, 2
    %v1763 = vrot.slane %v1752, 2
    %v1764 = vrot.slane %v1756, 2
    %v1765 = vrot.slane %v1760, 2
    %vm1766 = vcmp.lt.s32.totalorder %v36, 6
    %v1767 = vsel %vm1766, %v1764, %v1765
    %v1768 = vsel %vm1766, %v1763, %v1764
    %v1769 = vsel %vm1766, %v1762, %v1763
    %v1770 = vsel %vm1766, %v1765, %v1762
    %v1771 = vadd.s32 %v84, 2
    %v1772 = vadd.s32 %v85, 2
    %v1773 = vadd.s32 %v86, 2
    %v1774 = vadd.s32 %v87, 2
    %vm1775 = vcmp.ge.s32.totalorder %v1771, 0
    %vm1776 = vcmp.ge.s32.totalorder %v1772, 0
    %vm1777 = vcmp.ge.s32.totalorder %v1773, 0
    %vm1778 = vcmp.ge.s32.totalorder %v1774, 0
    %vm1779 = vcmp.lt.s32.totalorder %v1771, 16
    %vm1780 = vcmp.lt.s32.totalorder %v1772, 16
    %vm1781 = vcmp.lt.s32.totalorder %v1773, 16
    %vm1782 = vcmp.lt.s32.totalorder %v1774, 16
    %vm1783 = vmand %vm1775, %vm1779
    %vm1784 = vmand %vm1776, %vm1780
    %vm1785 = vmand %vm1777, %vm1781
    %vm1786 = vmand %vm1778, %vm1782
    %v1787 = vsel %vm1783, %v1769, 0.0
    %v1788 = vsel %vm1784, %v1768, 0.0
    %v1789 = vsel %vm1785, %v1767, 0.0
    %v1790 = vsel %vm1786, %v1770, 0.0
    %v1791 = vadd.f32 %v1504, %v1787
    %v1792 = vadd.f32 %v1505, %v1788
    %v1793 = vadd.f32 %v1506, %v1789
    %v1794 = vadd.f32 %v1507, %v1790
    %v1795 = vld [vmem:[%s1 + $0x60] sm:$0xff]
    %v1796 = vld [vmem:[%s1 + $0x68] sm:$0xff]
    %1797 = vmatpush.msra.mxu0 0.0
    %1798 = vmatpush.msra.mxu0 0.0
    %1799 = vmatpush.msra.mxu0 0.0
    %1800 = vmatpush.msra.mxu0 0.0
    %1801 = vmatpush.msra.mxu0 0.0
    %1802 = vmatpush.msra.mxu0 0.0
    %1803 = vmatpush.msra.mxu0 0.0
    %1804 = vmatpush.msra.mxu0 0.0
    %1805 = vmatpush.msra.mxu0 0.0
    %1806 = vmatpush.msra.mxu0 0.0
    %1807 = vmatpush.msra.mxu0 0.0
    %1808 = vmatpush.msra.mxu0 0.0
    %1809 = vmatpush.msra.mxu0 0.0
    %1810 = vmatpush.msra.mxu0 0.0
    %v1811 = vand.u32 %v1796, 4294901760
    %1812 = vmatpush.msra.mxu0 %v1811
    %v1813 = vand.u32 %v1795, 4294901760
    %1814 = vmatpush.msra.mxu0 %v1813
    %v1815 = vand.u32 %v93, 4294901760
    %v1816 = vsub.f32 %v93, %v1815
    %v1817 = vand.u32 %v1816, 4294901760
    %v1818 = vsub.f32 %v1816, %v1817
    %v1819 = vand.u32 %v1818, 4294901760
    %1820 = vmatmul.f32.gmra.mxu0 %v1819
    %v1821 = vpop.f32.mrf.mxu0
    %v1822 = vadd.f32 0.0, %v1821
    %v1823 = vand.u32 %v96, 4294901760
    %v1824 = vsub.f32 %v96, %v1823
    %v1825 = vand.u32 %v1824, 4294901760
    %v1826 = vsub.f32 %v1824, %v1825
    %v1827 = vand.u32 %v1826, 4294901760
    %1828 = vmatmul.f32.gmra.mxu0 %v1827
    %v1829 = vpop.f32.mrf.mxu0
    %v1830 = vadd.f32 0.0, %v1829
    %v1831 = vand.u32 %v99, 4294901760
    %v1832 = vsub.f32 %v99, %v1831
    %v1833 = vand.u32 %v1832, 4294901760
    %v1834 = vsub.f32 %v1832, %v1833
    %v1835 = vand.u32 %v1834, 4294901760
    %1836 = vmatmul.f32.gmra.mxu0 %v1835
    %v1837 = vpop.f32.mrf.mxu0
    %v1838 = vadd.f32 0.0, %v1837
    %v1839 = vand.u32 %v102, 4294901760
    %v1840 = vsub.f32 %v102, %v1839
    %v1841 = vand.u32 %v1840, 4294901760
    %v1842 = vsub.f32 %v1840, %v1841
    %v1843 = vand.u32 %v1842, 4294901760
    %1844 = vmatmul.f32.gmra.mxu0 %v1843
    %v1845 = vpop.f32.mrf.mxu0
    %v1846 = vadd.f32 0.0, %v1845
    %1847 = vdwg.mxu0
    %1848 = vmatpush.msra.mxu0 0.0
    %1849 = vmatpush.msra.mxu0 0.0
    %1850 = vmatpush.msra.mxu0 0.0
    %1851 = vmatpush.msra.mxu0 0.0
    %1852 = vmatpush.msra.mxu0 0.0
    %1853 = vmatpush.msra.mxu0 0.0
    %1854 = vmatpush.msra.mxu0 0.0
    %1855 = vmatpush.msra.mxu0 0.0
    %1856 = vmatpush.msra.mxu0 0.0
    %1857 = vmatpush.msra.mxu0 0.0
    %1858 = vmatpush.msra.mxu0 0.0
    %1859 = vmatpush.msra.mxu0 0.0
    %1860 = vmatpush.msra.mxu0 0.0
    %1861 = vmatpush.msra.mxu0 0.0
    %v1862 = vand.u32 %v1796, 4294901760
    %v1863 = vsub.f32 %v1796, %v1862
    %v1864 = vand.u32 %v1863, 4294901760
    %v1865 = vsub.f32 %v1863, %v1864
    %v1866 = vand.u32 %v1865, 4294901760
    %1867 = vmatpush.msra.mxu0 %v1866
    %v1868 = vand.u32 %v1795, 4294901760
    %v1869 = vsub.f32 %v1795, %v1868
    %v1870 = vand.u32 %v1869, 4294901760
    %v1871 = vsub.f32 %v1869, %v1870
    %v1872 = vand.u32 %v1871, 4294901760
    %1873 = vmatpush.msra.mxu0 %v1872
    %v1874 = vand.u32 %v93, 4294901760
    %1875 = vmatmul.f32.gmra.mxu0 %v1874
    %v1876 = vpop.f32.mrf.mxu0
    %v1877 = vadd.f32 %v1822, %v1876
    %v1878 = vand.u32 %v96, 4294901760
    %1879 = vmatmul.f32.gmra.mxu0 %v1878
    %v1880 = vpop.f32.mrf.mxu0
    %v1881 = vadd.f32 %v1830, %v1880
    %v1882 = vand.u32 %v99, 4294901760
    %1883 = vmatmul.f32.gmra.mxu0 %v1882
    %v1884 = vpop.f32.mrf.mxu0
    %v1885 = vadd.f32 %v1838, %v1884
    %v1886 = vand.u32 %v102, 4294901760
    %1887 = vmatmul.f32.gmra.mxu0 %v1886
    %v1888 = vpop.f32.mrf.mxu0
    %v1889 = vadd.f32 %v1846, %v1888
    %1890 = vdwg.mxu0
    %1891 = vmatpush.msra.mxu0 0.0
    %1892 = vmatpush.msra.mxu0 0.0
    %1893 = vmatpush.msra.mxu0 0.0
    %1894 = vmatpush.msra.mxu0 0.0
    %1895 = vmatpush.msra.mxu0 0.0
    %1896 = vmatpush.msra.mxu0 0.0
    %1897 = vmatpush.msra.mxu0 0.0
    %1898 = vmatpush.msra.mxu0 0.0
    %1899 = vmatpush.msra.mxu0 0.0
    %1900 = vmatpush.msra.mxu0 0.0
    %1901 = vmatpush.msra.mxu0 0.0
    %1902 = vmatpush.msra.mxu0 0.0
    %1903 = vmatpush.msra.mxu0 0.0
    %1904 = vmatpush.msra.mxu0 0.0
    %v1905 = vand.u32 %v1796, 4294901760
    %v1906 = vsub.f32 %v1796, %v1905
    %1907 = vmatpush.msra.mxu0 %v1906
    %v1908 = vand.u32 %v1795, 4294901760
    %v1909 = vsub.f32 %v1795, %v1908
    %1910 = vmatpush.msra.mxu0 %v1909
    %v1911 = vand.u32 %v93, 4294901760
    %v1912 = vsub.f32 %v93, %v1911
    %1913 = vmatmul.f32.gmra.mxu0 %v1912
    %v1914 = vpop.f32.mrf.mxu0
    %v1915 = vadd.f32 %v1877, %v1914
    %v1916 = vand.u32 %v96, 4294901760
    %v1917 = vsub.f32 %v96, %v1916
    %1918 = vmatmul.f32.gmra.mxu0 %v1917
    %v1919 = vpop.f32.mrf.mxu0
    %v1920 = vadd.f32 %v1881, %v1919
    %v1921 = vand.u32 %v99, 4294901760
    %v1922 = vsub.f32 %v99, %v1921
    %1923 = vmatmul.f32.gmra.mxu0 %v1922
    %v1924 = vpop.f32.mrf.mxu0
    %v1925 = vadd.f32 %v1885, %v1924
    %v1926 = vand.u32 %v102, 4294901760
    %v1927 = vsub.f32 %v102, %v1926
    %1928 = vmatmul.f32.gmra.mxu0 %v1927
    %v1929 = vpop.f32.mrf.mxu0
    %v1930 = vadd.f32 %v1889, %v1929
    %1931 = vdwg.mxu0
    %1932 = vmatpush.msra.mxu0 0.0
    %1933 = vmatpush.msra.mxu0 0.0
    %1934 = vmatpush.msra.mxu0 0.0
    %1935 = vmatpush.msra.mxu0 0.0
    %1936 = vmatpush.msra.mxu0 0.0
    %1937 = vmatpush.msra.mxu0 0.0
    %1938 = vmatpush.msra.mxu0 0.0
    %1939 = vmatpush.msra.mxu0 0.0
    %1940 = vmatpush.msra.mxu0 0.0
    %1941 = vmatpush.msra.mxu0 0.0
    %1942 = vmatpush.msra.mxu0 0.0
    %1943 = vmatpush.msra.mxu0 0.0
    %1944 = vmatpush.msra.mxu0 0.0
    %1945 = vmatpush.msra.mxu0 0.0
    %v1946 = vand.u32 %v1796, 4294901760
    %1947 = vmatpush.msra.mxu0 %v1946
    %v1948 = vand.u32 %v1795, 4294901760
    %1949 = vmatpush.msra.mxu0 %v1948
    %v1950 = vand.u32 %v93, 4294901760
    %v1951 = vsub.f32 %v93, %v1950
    %v1952 = vand.u32 %v1951, 4294901760
    %1953 = vmatmul.f32.gmra.mxu0 %v1952
    %v1954 = vpop.f32.mrf.mxu0
    %v1955 = vadd.f32 %v1915, %v1954
    %v1956 = vand.u32 %v96, 4294901760
    %v1957 = vsub.f32 %v96, %v1956
    %v1958 = vand.u32 %v1957, 4294901760
    %1959 = vmatmul.f32.gmra.mxu0 %v1958
    %v1960 = vpop.f32.mrf.mxu0
    %v1961 = vadd.f32 %v1920, %v1960
    %v1962 = vand.u32 %v99, 4294901760
    %v1963 = vsub.f32 %v99, %v1962
    %v1964 = vand.u32 %v1963, 4294901760
    %1965 = vmatmul.f32.gmra.mxu0 %v1964
    %v1966 = vpop.f32.mrf.mxu0
    %v1967 = vadd.f32 %v1925, %v1966
    %v1968 = vand.u32 %v102, 4294901760
    %v1969 = vsub.f32 %v102, %v1968
    %v1970 = vand.u32 %v1969, 4294901760
    %1971 = vmatmul.f32.gmra.mxu0 %v1970
    %v1972 = vpop.f32.mrf.mxu0
    %v1973 = vadd.f32 %v1930, %v1972
    %1974 = vdwg.mxu0
    %1975 = vmatpush.msra.mxu0 0.0
    %1976 = vmatpush.msra.mxu0 0.0
    %1977 = vmatpush.msra.mxu0 0.0
    %1978 = vmatpush.msra.mxu0 0.0
    %1979 = vmatpush.msra.mxu0 0.0
    %1980 = vmatpush.msra.mxu0 0.0
    %1981 = vmatpush.msra.mxu0 0.0
    %1982 = vmatpush.msra.mxu0 0.0
    %1983 = vmatpush.msra.mxu0 0.0
    %1984 = vmatpush.msra.mxu0 0.0
    %1985 = vmatpush.msra.mxu0 0.0
    %1986 = vmatpush.msra.mxu0 0.0
    %1987 = vmatpush.msra.mxu0 0.0
    %1988 = vmatpush.msra.mxu0 0.0
    %v1989 = vand.u32 %v1796, 4294901760
    %v1990 = vsub.f32 %v1796, %v1989
    %v1991 = vand.u32 %v1990, 4294901760
    %1992 = vmatpush.msra.mxu0 %v1991
    %v1993 = vand.u32 %v1795, 4294901760
    %v1994 = vsub.f32 %v1795, %v1993
    %v1995 = vand.u32 %v1994, 4294901760
    %1996 = vmatpush.msra.mxu0 %v1995
    %v1997 = vand.u32 %v93, 4294901760
    %1998 = vmatmul.f32.gmra.mxu0 %v1997
    %v1999 = vpop.f32.mrf.mxu0
    %v2000 = vadd.f32 %v1955, %v1999
    %v2001 = vand.u32 %v96, 4294901760
    %2002 = vmatmul.f32.gmra.mxu0 %v2001
    %v2003 = vpop.f32.mrf.mxu0
    %v2004 = vadd.f32 %v1961, %v2003
    %v2005 = vand.u32 %v99, 4294901760
    %2006 = vmatmul.f32.gmra.mxu0 %v2005
    %v2007 = vpop.f32.mrf.mxu0
    %v2008 = vadd.f32 %v1967, %v2007
    %v2009 = vand.u32 %v102, 4294901760
    %2010 = vmatmul.f32.gmra.mxu0 %v2009
    %v2011 = vpop.f32.mrf.mxu0
    %v2012 = vadd.f32 %v1973, %v2011
    %2013 = vdwg.mxu0
    %2014 = vmatpush.msra.mxu0 0.0
    %2015 = vmatpush.msra.mxu0 0.0
    %2016 = vmatpush.msra.mxu0 0.0
    %2017 = vmatpush.msra.mxu0 0.0
    %2018 = vmatpush.msra.mxu0 0.0
    %2019 = vmatpush.msra.mxu0 0.0
    %2020 = vmatpush.msra.mxu0 0.0
    %2021 = vmatpush.msra.mxu0 0.0
    %2022 = vmatpush.msra.mxu0 0.0
    %2023 = vmatpush.msra.mxu0 0.0
    %2024 = vmatpush.msra.mxu0 0.0
    %2025 = vmatpush.msra.mxu0 0.0
    %2026 = vmatpush.msra.mxu0 0.0
    %2027 = vmatpush.msra.mxu0 0.0
    %v2028 = vand.u32 %v1796, 4294901760
    %2029 = vmatpush.msra.mxu0 %v2028
    %v2030 = vand.u32 %v1795, 4294901760
    %2031 = vmatpush.msra.mxu0 %v2030
    %v2032 = vand.u32 %v93, 4294901760
    %2033 = vmatmul.f32.gmra.mxu0 %v2032
    %v2034 = vpop.f32.mrf.mxu0
    %v2035 = vadd.f32 %v2000, %v2034
    %v2036 = vand.u32 %v96, 4294901760
    %2037 = vmatmul.f32.gmra.mxu0 %v2036
    %v2038 = vpop.f32.mrf.mxu0
    %v2039 = vadd.f32 %v2004, %v2038
    %v2040 = vand.u32 %v99, 4294901760
    %2041 = vmatmul.f32.gmra.mxu0 %v2040
    %v2042 = vpop.f32.mrf.mxu0
    %v2043 = vadd.f32 %v2008, %v2042
    %v2044 = vand.u32 %v102, 4294901760
    %2045 = vmatmul.f32.gmra.mxu0 %v2044
    %v2046 = vpop.f32.mrf.mxu0
    %v2047 = vadd.f32 %v2012, %v2046
    %2048 = vdwg.mxu0
    %v2049 = vrot.slane %v2035, 3
    %v2050 = vrot.slane %v2039, 3
    %v2051 = vrot.slane %v2043, 3
    %v2052 = vrot.slane %v2047, 3
    %vm2053 = vcmp.lt.s32.totalorder %v36, 5
    %v2054 = vsel %vm2053, %v2051, %v2052
    %v2055 = vsel %vm2053, %v2050, %v2051
    %v2056 = vsel %vm2053, %v2049, %v2050
    %v2057 = vsel %vm2053, %v2052, %v2049
    %v2058 = vadd.s32 %v84, 3
    %v2059 = vadd.s32 %v85, 3
    %v2060 = vadd.s32 %v86, 3
    %v2061 = vadd.s32 %v87, 3
    %vm2062 = vcmp.ge.s32.totalorder %v2058, 0
    %vm2063 = vcmp.ge.s32.totalorder %v2059, 0
    %vm2064 = vcmp.ge.s32.totalorder %v2060, 0
    %vm2065 = vcmp.ge.s32.totalorder %v2061, 0
    %vm2066 = vcmp.lt.s32.totalorder %v2058, 16
    %vm2067 = vcmp.lt.s32.totalorder %v2059, 16
    %vm2068 = vcmp.lt.s32.totalorder %v2060, 16
    %vm2069 = vcmp.lt.s32.totalorder %v2061, 16
    %vm2070 = vmand %vm2062, %vm2066
    %vm2071 = vmand %vm2063, %vm2067
    %vm2072 = vmand %vm2064, %vm2068
    %vm2073 = vmand %vm2065, %vm2069
    %v2074 = vsel %vm2070, %v2056, 0.0
    %v2075 = vsel %vm2071, %v2055, 0.0
    %v2076 = vsel %vm2072, %v2054, 0.0
    %v2077 = vsel %vm2073, %v2057, 0.0
    %v2078 = vadd.f32 %v1791, %v2074
    %v2079 = vadd.f32 %v1792, %v2075
    %v2080 = vadd.f32 %v1793, %v2076
    %v2081 = vadd.f32 %v1794, %v2077
    %v2082 = vstv %s88
    %v2083 = vadd.f32 %v2078, %v2082
    %v2084 = vadd.f32 %v2079, %v2082
    %v2085 = vadd.f32 %v2080, %v2082
    %v2086 = vadd.f32 %v2081, %v2082
    %v2087 = vmax.f32 %v2083, 0.0
    %v2088 = vmax.f32 %v2084, 0.0
    %v2089 = vmax.f32 %v2085, 0.0
    %v2090 = vmax.f32 %v2086, 0.0
    %s2091 = sld [smem:[#allocation2 + $0x1]]
    %v2092 = vld [vmem:[%s2] sm:$0xff]
    %v2093 = vld [vmem:[%s2 + $0x8] sm:$0xff]
    %v2095 = vsel %vm91, %v2087, 0
    %v2098 = vsel %vm91, %v2088, 0
    %v2101 = vsel %vm91, %v2089, 0
    %v2104 = vsel %vm91, %v2090, 0
    %2106 = vmatpush.msra.mxu0 0.0
    %2107 = vmatpush.msra.mxu0 0.0
    %2108 = vmatpush.msra.mxu0 0.0
    %2109 = vmatpush.msra.mxu0 0.0
    %2110 = vmatpush.msra.mxu0 0.0
    %2111 = vmatpush.msra.mxu0 0.0
    %2112 = vmatpush.msra.mxu0 0.0
    %2113 = vmatpush.msra.mxu0 0.0
    %2114 = vmatpush.msra.mxu0 0.0
    %2115 = vmatpush.msra.mxu0 0.0
    %2116 = vmatpush.msra.mxu0 0.0
    %2117 = vmatpush.msra.mxu0 0.0
    %2118 = vmatpush.msra.mxu0 0.0
    %2119 = vmatpush.msra.mxu0 0.0
    %v2120 = vand.u32 %v2093, 4294901760
    %2121 = vmatpush.msra.mxu0 %v2120
    %v2122 = vand.u32 %v2092, 4294901760
    %2123 = vmatpush.msra.mxu0 %v2122
    %v2124 = vand.u32 %v2095, 4294901760
    %v2125 = vsub.f32 %v2095, %v2124
    %v2126 = vand.u32 %v2125, 4294901760
    %v2127 = vsub.f32 %v2125, %v2126
    %v2128 = vand.u32 %v2127, 4294901760
    %2129 = vmatmul.f32.gmra.mxu0 %v2128
    %v2130 = vpop.f32.mrf.mxu0
    %v2131 = vadd.f32 0.0, %v2130
    %v2132 = vand.u32 %v2098, 4294901760
    %v2133 = vsub.f32 %v2098, %v2132
    %v2134 = vand.u32 %v2133, 4294901760
    %v2135 = vsub.f32 %v2133, %v2134
    %v2136 = vand.u32 %v2135, 4294901760
    %2137 = vmatmul.f32.gmra.mxu0 %v2136
    %v2138 = vpop.f32.mrf.mxu0
    %v2139 = vadd.f32 0.0, %v2138
    %v2140 = vand.u32 %v2101, 4294901760
    %v2141 = vsub.f32 %v2101, %v2140
    %v2142 = vand.u32 %v2141, 4294901760
    %v2143 = vsub.f32 %v2141, %v2142
    %v2144 = vand.u32 %v2143, 4294901760
    %2145 = vmatmul.f32.gmra.mxu0 %v2144
    %v2146 = vpop.f32.mrf.mxu0
    %v2147 = vadd.f32 0.0, %v2146
    %v2148 = vand.u32 %v2104, 4294901760
    %v2149 = vsub.f32 %v2104, %v2148
    %v2150 = vand.u32 %v2149, 4294901760
    %v2151 = vsub.f32 %v2149, %v2150
    %v2152 = vand.u32 %v2151, 4294901760
    %2153 = vmatmul.f32.gmra.mxu0 %v2152
    %v2154 = vpop.f32.mrf.mxu0
    %v2155 = vadd.f32 0.0, %v2154
    %2156 = vdwg.mxu0
    %2157 = vmatpush.msra.mxu0 0.0
    %2158 = vmatpush.msra.mxu0 0.0
    %2159 = vmatpush.msra.mxu0 0.0
    %2160 = vmatpush.msra.mxu0 0.0
    %2161 = vmatpush.msra.mxu0 0.0
    %2162 = vmatpush.msra.mxu0 0.0
    %2163 = vmatpush.msra.mxu0 0.0
    %2164 = vmatpush.msra.mxu0 0.0
    %2165 = vmatpush.msra.mxu0 0.0
    %2166 = vmatpush.msra.mxu0 0.0
    %2167 = vmatpush.msra.mxu0 0.0
    %2168 = vmatpush.msra.mxu0 0.0
    %2169 = vmatpush.msra.mxu0 0.0
    %2170 = vmatpush.msra.mxu0 0.0
    %v2171 = vand.u32 %v2093, 4294901760
    %v2172 = vsub.f32 %v2093, %v2171
    %v2173 = vand.u32 %v2172, 4294901760
    %v2174 = vsub.f32 %v2172, %v2173
    %v2175 = vand.u32 %v2174, 4294901760
    %2176 = vmatpush.msra.mxu0 %v2175
    %v2177 = vand.u32 %v2092, 4294901760
    %v2178 = vsub.f32 %v2092, %v2177
    %v2179 = vand.u32 %v2178, 4294901760
    %v2180 = vsub.f32 %v2178, %v2179
    %v2181 = vand.u32 %v2180, 4294901760
    %2182 = vmatpush.msra.mxu0 %v2181
    %v2183 = vand.u32 %v2095, 4294901760
    %2184 = vmatmul.f32.gmra.mxu0 %v2183
    %v2185 = vpop.f32.mrf.mxu0
    %v2186 = vadd.f32 %v2131, %v2185
    %v2187 = vand.u32 %v2098, 4294901760
    %2188 = vmatmul.f32.gmra.mxu0 %v2187
    %v2189 = vpop.f32.mrf.mxu0
    %v2190 = vadd.f32 %v2139, %v2189
    %v2191 = vand.u32 %v2101, 4294901760
    %2192 = vmatmul.f32.gmra.mxu0 %v2191
    %v2193 = vpop.f32.mrf.mxu0
    %v2194 = vadd.f32 %v2147, %v2193
    %v2195 = vand.u32 %v2104, 4294901760
    %2196 = vmatmul.f32.gmra.mxu0 %v2195
    %v2197 = vpop.f32.mrf.mxu0
    %v2198 = vadd.f32 %v2155, %v2197
    %2199 = vdwg.mxu0
    %2200 = vmatpush.msra.mxu0 0.0
    %2201 = vmatpush.msra.mxu0 0.0
    %2202 = vmatpush.msra.mxu0 0.0
    %2203 = vmatpush.msra.mxu0 0.0
    %2204 = vmatpush.msra.mxu0 0.0
    %2205 = vmatpush.msra.mxu0 0.0
    %2206 = vmatpush.msra.mxu0 0.0
    %2207 = vmatpush.msra.mxu0 0.0
    %2208 = vmatpush.msra.mxu0 0.0
    %2209 = vmatpush.msra.mxu0 0.0
    %2210 = vmatpush.msra.mxu0 0.0
    %2211 = vmatpush.msra.mxu0 0.0
    %2212 = vmatpush.msra.mxu0 0.0
    %2213 = vmatpush.msra.mxu0 0.0
    %v2214 = vand.u32 %v2093, 4294901760
    %v2215 = vsub.f32 %v2093, %v2214
    %2216 = vmatpush.msra.mxu0 %v2215
    %v2217 = vand.u32 %v2092, 4294901760
    %v2218 = vsub.f32 %v2092, %v2217
    %2219 = vmatpush.msra.mxu0 %v2218
    %v2220 = vand.u32 %v2095, 4294901760
    %v2221 = vsub.f32 %v2095, %v2220
    %2222 = vmatmul.f32.gmra.mxu0 %v2221
    %v2223 = vpop.f32.mrf.mxu0
    %v2224 = vadd.f32 %v2186, %v2223
    %v2225 = vand.u32 %v2098, 4294901760
    %v2226 = vsub.f32 %v2098, %v2225
    %2227 = vmatmul.f32.gmra.mxu0 %v2226
    %v2228 = vpop.f32.mrf.mxu0
    %v2229 = vadd.f32 %v2190, %v2228
    %v2230 = vand.u32 %v2101, 4294901760
    %v2231 = vsub.f32 %v2101, %v2230
    %2232 = vmatmul.f32.gmra.mxu0 %v2231
    %v2233 = vpop.f32.mrf.mxu0
    %v2234 = vadd.f32 %v2194, %v2233
    %v2235 = vand.u32 %v2104, 4294901760
    %v2236 = vsub.f32 %v2104, %v2235
    %2237 = vmatmul.f32.gmra.mxu0 %v2236
    %v2238 = vpop.f32.mrf.mxu0
    %v2239 = vadd.f32 %v2198, %v2238
    %2240 = vdwg.mxu0
    %2241 = vmatpush.msra.mxu0 0.0
    %2242 = vmatpush.msra.mxu0 0.0
    %2243 = vmatpush.msra.mxu0 0.0
    %2244 = vmatpush.msra.mxu0 0.0
    %2245 = vmatpush.msra.mxu0 0.0
    %2246 = vmatpush.msra.mxu0 0.0
    %2247 = vmatpush.msra.mxu0 0.0
    %2248 = vmatpush.msra.mxu0 0.0
    %2249 = vmatpush.msra.mxu0 0.0
    %2250 = vmatpush.msra.mxu0 0.0
    %2251 = vmatpush.msra.mxu0 0.0
    %2252 = vmatpush.msra.mxu0 0.0
    %2253 = vmatpush.msra.mxu0 0.0
    %2254 = vmatpush.msra.mxu0 0.0
    %v2255 = vand.u32 %v2093, 4294901760
    %2256 = vmatpush.msra.mxu0 %v2255
    %v2257 = vand.u32 %v2092, 4294901760
    %2258 = vmatpush.msra.mxu0 %v2257
    %v2259 = vand.u32 %v2095, 4294901760
    %v2260 = vsub.f32 %v2095, %v2259
    %v2261 = vand.u32 %v2260, 4294901760
    %2262 = vmatmul.f32.gmra.mxu0 %v2261
    %v2263 = vpop.f32.mrf.mxu0
    %v2264 = vadd.f32 %v2224, %v2263
    %v2265 = vand.u32 %v2098, 4294901760
    %v2266 = vsub.f32 %v2098, %v2265
    %v2267 = vand.u32 %v2266, 4294901760
    %2268 = vmatmul.f32.gmra.mxu0 %v2267
    %v2269 = vpop.f32.mrf.mxu0
    %v2270 = vadd.f32 %v2229, %v2269
    %v2271 = vand.u32 %v2101, 4294901760
    %v2272 = vsub.f32 %v2101, %v2271
    %v2273 = vand.u32 %v2272, 4294901760
    %2274 = vmatmul.f32.gmra.mxu0 %v2273
    %v2275 = vpop.f32.mrf.mxu0
    %v2276 = vadd.f32 %v2234, %v2275
    %v2277 = vand.u32 %v2104, 4294901760
    %v2278 = vsub.f32 %v2104, %v2277
    %v2279 = vand.u32 %v2278, 4294901760
    %2280 = vmatmul.f32.gmra.mxu0 %v2279
    %v2281 = vpop.f32.mrf.mxu0
    %v2282 = vadd.f32 %v2239, %v2281
    %2283 = vdwg.mxu0
    %2284 = vmatpush.msra.mxu0 0.0
    %2285 = vmatpush.msra.mxu0 0.0
    %2286 = vmatpush.msra.mxu0 0.0
    %2287 = vmatpush.msra.mxu0 0.0
    %2288 = vmatpush.msra.mxu0 0.0
    %2289 = vmatpush.msra.mxu0 0.0
    %2290 = vmatpush.msra.mxu0 0.0
    %2291 = vmatpush.msra.mxu0 0.0
    %2292 = vmatpush.msra.mxu0 0.0
    %2293 = vmatpush.msra.mxu0 0.0
    %2294 = vmatpush.msra.mxu0 0.0
    %2295 = vmatpush.msra.mxu0 0.0
    %2296 = vmatpush.msra.mxu0 0.0
    %2297 = vmatpush.msra.mxu0 0.0
    %v2298 = vand.u32 %v2093, 4294901760
    %v2299 = vsub.f32 %v2093, %v2298
    %v2300 = vand.u32 %v2299, 4294901760
    %2301 = vmatpush.msra.mxu0 %v2300
    %v2302 = vand.u32 %v2092, 4294901760
    %v2303 = vsub.f32 %v2092, %v2302
    %v2304 = vand.u32 %v2303, 4294901760
    %2305 = vmatpush.msra.mxu0 %v2304
    %v2306 = vand.u32 %v2095, 4294901760
    %2307 = vmatmul.f32.gmra.mxu0 %v2306
    %v2308 = vpop.f32.mrf.mxu0
    %v2309 = vadd.f32 %v2264, %v2308
    %v2310 = vand.u32 %v2098, 4294901760
    %2311 = vmatmul.f32.gmra.mxu0 %v2310
    %v2312 = vpop.f32.mrf.mxu0
    %v2313 = vadd.f32 %v2270, %v2312
    %v2314 = vand.u32 %v2101, 4294901760
    %2315 = vmatmul.f32.gmra.mxu0 %v2314
    %v2316 = vpop.f32.mrf.mxu0
    %v2317 = vadd.f32 %v2276, %v2316
    %v2318 = vand.u32 %v2104, 4294901760
    %2319 = vmatmul.f32.gmra.mxu0 %v2318
    %v2320 = vpop.f32.mrf.mxu0
    %v2321 = vadd.f32 %v2282, %v2320
    %2322 = vdwg.mxu0
    %2323 = vmatpush.msra.mxu0 0.0
    %2324 = vmatpush.msra.mxu0 0.0
    %2325 = vmatpush.msra.mxu0 0.0
    %2326 = vmatpush.msra.mxu0 0.0
    %2327 = vmatpush.msra.mxu0 0.0
    %2328 = vmatpush.msra.mxu0 0.0
    %2329 = vmatpush.msra.mxu0 0.0
    %2330 = vmatpush.msra.mxu0 0.0
    %2331 = vmatpush.msra.mxu0 0.0
    %2332 = vmatpush.msra.mxu0 0.0
    %2333 = vmatpush.msra.mxu0 0.0
    %2334 = vmatpush.msra.mxu0 0.0
    %2335 = vmatpush.msra.mxu0 0.0
    %2336 = vmatpush.msra.mxu0 0.0
    %v2337 = vand.u32 %v2093, 4294901760
    %2338 = vmatpush.msra.mxu0 %v2337
    %v2339 = vand.u32 %v2092, 4294901760
    %2340 = vmatpush.msra.mxu0 %v2339
    %v2341 = vand.u32 %v2095, 4294901760
    %2342 = vmatmul.f32.gmra.mxu0 %v2341
    %v2343 = vpop.f32.mrf.mxu0
    %v2344 = vadd.f32 %v2309, %v2343
    %v2345 = vand.u32 %v2098, 4294901760
    %2346 = vmatmul.f32.gmra.mxu0 %v2345
    %v2347 = vpop.f32.mrf.mxu0
    %v2348 = vadd.f32 %v2313, %v2347
    %v2349 = vand.u32 %v2101, 4294901760
    %2350 = vmatmul.f32.gmra.mxu0 %v2349
    %v2351 = vpop.f32.mrf.mxu0
    %v2352 = vadd.f32 %v2317, %v2351
    %v2353 = vand.u32 %v2104, 4294901760
    %2354 = vmatmul.f32.gmra.mxu0 %v2353
    %v2355 = vpop.f32.mrf.mxu0
    %v2356 = vadd.f32 %v2321, %v2355
    %2357 = vdwg.mxu0
    %v2358 = vrot.slane %v2344, 5
    %v2359 = vrot.slane %v2348, 5
    %v2360 = vrot.slane %v2352, 5
    %v2361 = vrot.slane %v2356, 5
    %v2362 = vsel %vm360, %v2360, %v2361
    %v2363 = vsel %vm360, %v2359, %v2360
    %v2364 = vsel %vm360, %v2358, %v2359
    %v2365 = vsel %vm360, %v2361, %v2358
    %v2366 = vsel %vm377, %v2365, 0.0
    %v2367 = vsel %vm378, %v2364, 0.0
    %v2368 = vsel %vm379, %v2363, 0.0
    %v2369 = vsel %vm380, %v2362, 0.0
    %v2370 = vadd.f32 %v2366, 0.0
    %v2371 = vadd.f32 %v2367, 0.0
    %v2372 = vadd.f32 %v2368, 0.0
    %v2373 = vadd.f32 %v2369, 0.0
    %v2374 = vld [vmem:[%s2 + $0x10] sm:$0xff]
    %v2375 = vld [vmem:[%s2 + $0x18] sm:$0xff]
    %2376 = vmatpush.msra.mxu0 0.0
    %2377 = vmatpush.msra.mxu0 0.0
    %2378 = vmatpush.msra.mxu0 0.0
    %2379 = vmatpush.msra.mxu0 0.0
    %2380 = vmatpush.msra.mxu0 0.0
    %2381 = vmatpush.msra.mxu0 0.0
    %2382 = vmatpush.msra.mxu0 0.0
    %2383 = vmatpush.msra.mxu0 0.0
    %2384 = vmatpush.msra.mxu0 0.0
    %2385 = vmatpush.msra.mxu0 0.0
    %2386 = vmatpush.msra.mxu0 0.0
    %2387 = vmatpush.msra.mxu0 0.0
    %2388 = vmatpush.msra.mxu0 0.0
    %2389 = vmatpush.msra.mxu0 0.0
    %v2390 = vand.u32 %v2375, 4294901760
    %2391 = vmatpush.msra.mxu0 %v2390
    %v2392 = vand.u32 %v2374, 4294901760
    %2393 = vmatpush.msra.mxu0 %v2392
    %v2394 = vand.u32 %v2095, 4294901760
    %v2395 = vsub.f32 %v2095, %v2394
    %v2396 = vand.u32 %v2395, 4294901760
    %v2397 = vsub.f32 %v2395, %v2396
    %v2398 = vand.u32 %v2397, 4294901760
    %2399 = vmatmul.f32.gmra.mxu0 %v2398
    %v2400 = vpop.f32.mrf.mxu0
    %v2401 = vadd.f32 0.0, %v2400
    %v2402 = vand.u32 %v2098, 4294901760
    %v2403 = vsub.f32 %v2098, %v2402
    %v2404 = vand.u32 %v2403, 4294901760
    %v2405 = vsub.f32 %v2403, %v2404
    %v2406 = vand.u32 %v2405, 4294901760
    %2407 = vmatmul.f32.gmra.mxu0 %v2406
    %v2408 = vpop.f32.mrf.mxu0
    %v2409 = vadd.f32 0.0, %v2408
    %v2410 = vand.u32 %v2101, 4294901760
    %v2411 = vsub.f32 %v2101, %v2410
    %v2412 = vand.u32 %v2411, 4294901760
    %v2413 = vsub.f32 %v2411, %v2412
    %v2414 = vand.u32 %v2413, 4294901760
    %2415 = vmatmul.f32.gmra.mxu0 %v2414
    %v2416 = vpop.f32.mrf.mxu0
    %v2417 = vadd.f32 0.0, %v2416
    %v2418 = vand.u32 %v2104, 4294901760
    %v2419 = vsub.f32 %v2104, %v2418
    %v2420 = vand.u32 %v2419, 4294901760
    %v2421 = vsub.f32 %v2419, %v2420
    %v2422 = vand.u32 %v2421, 4294901760
    %2423 = vmatmul.f32.gmra.mxu0 %v2422
    %v2424 = vpop.f32.mrf.mxu0
    %v2425 = vadd.f32 0.0, %v2424
    %2426 = vdwg.mxu0
    %2427 = vmatpush.msra.mxu0 0.0
    %2428 = vmatpush.msra.mxu0 0.0
    %2429 = vmatpush.msra.mxu0 0.0
    %2430 = vmatpush.msra.mxu0 0.0
    %2431 = vmatpush.msra.mxu0 0.0
    %2432 = vmatpush.msra.mxu0 0.0
    %2433 = vmatpush.msra.mxu0 0.0
    %2434 = vmatpush.msra.mxu0 0.0
    %2435 = vmatpush.msra.mxu0 0.0
    %2436 = vmatpush.msra.mxu0 0.0
    %2437 = vmatpush.msra.mxu0 0.0
    %2438 = vmatpush.msra.mxu0 0.0
    %2439 = vmatpush.msra.mxu0 0.0
    %2440 = vmatpush.msra.mxu0 0.0
    %v2441 = vand.u32 %v2375, 4294901760
    %v2442 = vsub.f32 %v2375, %v2441
    %v2443 = vand.u32 %v2442, 4294901760
    %v2444 = vsub.f32 %v2442, %v2443
    %v2445 = vand.u32 %v2444, 4294901760
    %2446 = vmatpush.msra.mxu0 %v2445
    %v2447 = vand.u32 %v2374, 4294901760
    %v2448 = vsub.f32 %v2374, %v2447
    %v2449 = vand.u32 %v2448, 4294901760
    %v2450 = vsub.f32 %v2448, %v2449
    %v2451 = vand.u32 %v2450, 4294901760
    %2452 = vmatpush.msra.mxu0 %v2451
    %v2453 = vand.u32 %v2095, 4294901760
    %2454 = vmatmul.f32.gmra.mxu0 %v2453
    %v2455 = vpop.f32.mrf.mxu0
    %v2456 = vadd.f32 %v2401, %v2455
    %v2457 = vand.u32 %v2098, 4294901760
    %2458 = vmatmul.f32.gmra.mxu0 %v2457
    %v2459 = vpop.f32.mrf.mxu0
    %v2460 = vadd.f32 %v2409, %v2459
    %v2461 = vand.u32 %v2101, 4294901760
    %2462 = vmatmul.f32.gmra.mxu0 %v2461
    %v2463 = vpop.f32.mrf.mxu0
    %v2464 = vadd.f32 %v2417, %v2463
    %v2465 = vand.u32 %v2104, 4294901760
    %2466 = vmatmul.f32.gmra.mxu0 %v2465
    %v2467 = vpop.f32.mrf.mxu0
    %v2468 = vadd.f32 %v2425, %v2467
    %2469 = vdwg.mxu0
    %2470 = vmatpush.msra.mxu0 0.0
    %2471 = vmatpush.msra.mxu0 0.0
    %2472 = vmatpush.msra.mxu0 0.0
    %2473 = vmatpush.msra.mxu0 0.0
    %2474 = vmatpush.msra.mxu0 0.0
    %2475 = vmatpush.msra.mxu0 0.0
    %2476 = vmatpush.msra.mxu0 0.0
    %2477 = vmatpush.msra.mxu0 0.0
    %2478 = vmatpush.msra.mxu0 0.0
    %2479 = vmatpush.msra.mxu0 0.0
    %2480 = vmatpush.msra.mxu0 0.0
    %2481 = vmatpush.msra.mxu0 0.0
    %2482 = vmatpush.msra.mxu0 0.0
    %2483 = vmatpush.msra.mxu0 0.0
    %v2484 = vand.u32 %v2375, 4294901760
    %v2485 = vsub.f32 %v2375, %v2484
    %2486 = vmatpush.msra.mxu0 %v2485
    %v2487 = vand.u32 %v2374, 4294901760
    %v2488 = vsub.f32 %v2374, %v2487
    %2489 = vmatpush.msra.mxu0 %v2488
    %v2490 = vand.u32 %v2095, 4294901760
    %v2491 = vsub.f32 %v2095, %v2490
    %2492 = vmatmul.f32.gmra.mxu0 %v2491
    %v2493 = vpop.f32.mrf.mxu0
    %v2494 = vadd.f32 %v2456, %v2493
    %v2495 = vand.u32 %v2098, 4294901760
    %v2496 = vsub.f32 %v2098, %v2495
    %2497 = vmatmul.f32.gmra.mxu0 %v2496
    %v2498 = vpop.f32.mrf.mxu0
    %v2499 = vadd.f32 %v2460, %v2498
    %v2500 = vand.u32 %v2101, 4294901760
    %v2501 = vsub.f32 %v2101, %v2500
    %2502 = vmatmul.f32.gmra.mxu0 %v2501
    %v2503 = vpop.f32.mrf.mxu0
    %v2504 = vadd.f32 %v2464, %v2503
    %v2505 = vand.u32 %v2104, 4294901760
    %v2506 = vsub.f32 %v2104, %v2505
    %2507 = vmatmul.f32.gmra.mxu0 %v2506
    %v2508 = vpop.f32.mrf.mxu0
    %v2509 = vadd.f32 %v2468, %v2508
    %2510 = vdwg.mxu0
    %2511 = vmatpush.msra.mxu0 0.0
    %2512 = vmatpush.msra.mxu0 0.0
    %2513 = vmatpush.msra.mxu0 0.0
    %2514 = vmatpush.msra.mxu0 0.0
    %2515 = vmatpush.msra.mxu0 0.0
    %2516 = vmatpush.msra.mxu0 0.0
    %2517 = vmatpush.msra.mxu0 0.0
    %2518 = vmatpush.msra.mxu0 0.0
    %2519 = vmatpush.msra.mxu0 0.0
    %2520 = vmatpush.msra.mxu0 0.0
    %2521 = vmatpush.msra.mxu0 0.0
    %2522 = vmatpush.msra.mxu0 0.0
    %2523 = vmatpush.msra.mxu0 0.0
    %2524 = vmatpush.msra.mxu0 0.0
    %v2525 = vand.u32 %v2375, 4294901760
    %2526 = vmatpush.msra.mxu0 %v2525
    %v2527 = vand.u32 %v2374, 4294901760
    %2528 = vmatpush.msra.mxu0 %v2527
    %v2529 = vand.u32 %v2095, 4294901760
    %v2530 = vsub.f32 %v2095, %v2529
    %v2531 = vand.u32 %v2530, 4294901760
    %2532 = vmatmul.f32.gmra.mxu0 %v2531
    %v2533 = vpop.f32.mrf.mxu0
    %v2534 = vadd.f32 %v2494, %v2533
    %v2535 = vand.u32 %v2098, 4294901760
    %v2536 = vsub.f32 %v2098, %v2535
    %v2537 = vand.u32 %v2536, 4294901760
    %2538 = vmatmul.f32.gmra.mxu0 %v2537
    %v2539 = vpop.f32.mrf.mxu0
    %v2540 = vadd.f32 %v2499, %v2539
    %v2541 = vand.u32 %v2101, 4294901760
    %v2542 = vsub.f32 %v2101, %v2541
    %v2543 = vand.u32 %v2542, 4294901760
    %2544 = vmatmul.f32.gmra.mxu0 %v2543
    %v2545 = vpop.f32.mrf.mxu0
    %v2546 = vadd.f32 %v2504, %v2545
    %v2547 = vand.u32 %v2104, 4294901760
    %v2548 = vsub.f32 %v2104, %v2547
    %v2549 = vand.u32 %v2548, 4294901760
    %2550 = vmatmul.f32.gmra.mxu0 %v2549
    %v2551 = vpop.f32.mrf.mxu0
    %v2552 = vadd.f32 %v2509, %v2551
    %2553 = vdwg.mxu0
    %2554 = vmatpush.msra.mxu0 0.0
    %2555 = vmatpush.msra.mxu0 0.0
    %2556 = vmatpush.msra.mxu0 0.0
    %2557 = vmatpush.msra.mxu0 0.0
    %2558 = vmatpush.msra.mxu0 0.0
    %2559 = vmatpush.msra.mxu0 0.0
    %2560 = vmatpush.msra.mxu0 0.0
    %2561 = vmatpush.msra.mxu0 0.0
    %2562 = vmatpush.msra.mxu0 0.0
    %2563 = vmatpush.msra.mxu0 0.0
    %2564 = vmatpush.msra.mxu0 0.0
    %2565 = vmatpush.msra.mxu0 0.0
    %2566 = vmatpush.msra.mxu0 0.0
    %2567 = vmatpush.msra.mxu0 0.0
    %v2568 = vand.u32 %v2375, 4294901760
    %v2569 = vsub.f32 %v2375, %v2568
    %v2570 = vand.u32 %v2569, 4294901760
    %2571 = vmatpush.msra.mxu0 %v2570
    %v2572 = vand.u32 %v2374, 4294901760
    %v2573 = vsub.f32 %v2374, %v2572
    %v2574 = vand.u32 %v2573, 4294901760
    %2575 = vmatpush.msra.mxu0 %v2574
    %v2576 = vand.u32 %v2095, 4294901760
    %2577 = vmatmul.f32.gmra.mxu0 %v2576
    %v2578 = vpop.f32.mrf.mxu0
    %v2579 = vadd.f32 %v2534, %v2578
    %v2580 = vand.u32 %v2098, 4294901760
    %2581 = vmatmul.f32.gmra.mxu0 %v2580
    %v2582 = vpop.f32.mrf.mxu0
    %v2583 = vadd.f32 %v2540, %v2582
    %v2584 = vand.u32 %v2101, 4294901760
    %2585 = vmatmul.f32.gmra.mxu0 %v2584
    %v2586 = vpop.f32.mrf.mxu0
    %v2587 = vadd.f32 %v2546, %v2586
    %v2588 = vand.u32 %v2104, 4294901760
    %2589 = vmatmul.f32.gmra.mxu0 %v2588
    %v2590 = vpop.f32.mrf.mxu0
    %v2591 = vadd.f32 %v2552, %v2590
    %2592 = vdwg.mxu0
    %2593 = vmatpush.msra.mxu0 0.0
    %2594 = vmatpush.msra.mxu0 0.0
    %2595 = vmatpush.msra.mxu0 0.0
    %2596 = vmatpush.msra.mxu0 0.0
    %2597 = vmatpush.msra.mxu0 0.0
    %2598 = vmatpush.msra.mxu0 0.0
    %2599 = vmatpush.msra.mxu0 0.0
    %2600 = vmatpush.msra.mxu0 0.0
    %2601 = vmatpush.msra.mxu0 0.0
    %2602 = vmatpush.msra.mxu0 0.0
    %2603 = vmatpush.msra.mxu0 0.0
    %2604 = vmatpush.msra.mxu0 0.0
    %2605 = vmatpush.msra.mxu0 0.0
    %2606 = vmatpush.msra.mxu0 0.0
    %v2607 = vand.u32 %v2375, 4294901760
    %2608 = vmatpush.msra.mxu0 %v2607
    %v2609 = vand.u32 %v2374, 4294901760
    %2610 = vmatpush.msra.mxu0 %v2609
    %v2611 = vand.u32 %v2095, 4294901760
    %2612 = vmatmul.f32.gmra.mxu0 %v2611
    %v2613 = vpop.f32.mrf.mxu0
    %v2614 = vadd.f32 %v2579, %v2613
    %v2615 = vand.u32 %v2098, 4294901760
    %2616 = vmatmul.f32.gmra.mxu0 %v2615
    %v2617 = vpop.f32.mrf.mxu0
    %v2618 = vadd.f32 %v2583, %v2617
    %v2619 = vand.u32 %v2101, 4294901760
    %2620 = vmatmul.f32.gmra.mxu0 %v2619
    %v2621 = vpop.f32.mrf.mxu0
    %v2622 = vadd.f32 %v2587, %v2621
    %v2623 = vand.u32 %v2104, 4294901760
    %2624 = vmatmul.f32.gmra.mxu0 %v2623
    %v2625 = vpop.f32.mrf.mxu0
    %v2626 = vadd.f32 %v2591, %v2625
    %2627 = vdwg.mxu0
    %v2628 = vrot.slane %v2614, 6
    %v2629 = vrot.slane %v2618, 6
    %v2630 = vrot.slane %v2622, 6
    %v2631 = vrot.slane %v2626, 6
    %v2632 = vsel %vm647, %v2630, %v2631
    %v2633 = vsel %vm647, %v2629, %v2630
    %v2634 = vsel %vm647, %v2628, %v2629
    %v2635 = vsel %vm647, %v2631, %v2628
    %v2636 = vsel %vm664, %v2635, 0.0
    %v2637 = vsel %vm665, %v2634, 0.0
    %v2638 = vsel %vm666, %v2633, 0.0
    %v2639 = vsel %vm667, %v2632, 0.0
    %v2640 = vadd.f32 %v2370, %v2636
    %v2641 = vadd.f32 %v2371, %v2637
    %v2642 = vadd.f32 %v2372, %v2638
    %v2643 = vadd.f32 %v2373, %v2639
    %v2644 = vld [vmem:[%s2 + $0x20] sm:$0xff]
    %v2645 = vld [vmem:[%s2 + $0x28] sm:$0xff]
    %2646 = vmatpush.msra.mxu0 0.0
    %2647 = vmatpush.msra.mxu0 0.0
    %2648 = vmatpush.msra.mxu0 0.0
    %2649 = vmatpush.msra.mxu0 0.0
    %2650 = vmatpush.msra.mxu0 0.0
    %2651 = vmatpush.msra.mxu0 0.0
    %2652 = vmatpush.msra.mxu0 0.0
    %2653 = vmatpush.msra.mxu0 0.0
    %2654 = vmatpush.msra.mxu0 0.0
    %2655 = vmatpush.msra.mxu0 0.0
    %2656 = vmatpush.msra.mxu0 0.0
    %2657 = vmatpush.msra.mxu0 0.0
    %2658 = vmatpush.msra.mxu0 0.0
    %2659 = vmatpush.msra.mxu0 0.0
    %v2660 = vand.u32 %v2645, 4294901760
    %2661 = vmatpush.msra.mxu0 %v2660
    %v2662 = vand.u32 %v2644, 4294901760
    %2663 = vmatpush.msra.mxu0 %v2662
    %v2664 = vand.u32 %v2095, 4294901760
    %v2665 = vsub.f32 %v2095, %v2664
    %v2666 = vand.u32 %v2665, 4294901760
    %v2667 = vsub.f32 %v2665, %v2666
    %v2668 = vand.u32 %v2667, 4294901760
    %2669 = vmatmul.f32.gmra.mxu0 %v2668
    %v2670 = vpop.f32.mrf.mxu0
    %v2671 = vadd.f32 0.0, %v2670
    %v2672 = vand.u32 %v2098, 4294901760
    %v2673 = vsub.f32 %v2098, %v2672
    %v2674 = vand.u32 %v2673, 4294901760
    %v2675 = vsub.f32 %v2673, %v2674
    %v2676 = vand.u32 %v2675, 4294901760
    %2677 = vmatmul.f32.gmra.mxu0 %v2676
    %v2678 = vpop.f32.mrf.mxu0
    %v2679 = vadd.f32 0.0, %v2678
    %v2680 = vand.u32 %v2101, 4294901760
    %v2681 = vsub.f32 %v2101, %v2680
    %v2682 = vand.u32 %v2681, 4294901760
    %v2683 = vsub.f32 %v2681, %v2682
    %v2684 = vand.u32 %v2683, 4294901760
    %2685 = vmatmul.f32.gmra.mxu0 %v2684
    %v2686 = vpop.f32.mrf.mxu0
    %v2687 = vadd.f32 0.0, %v2686
    %v2688 = vand.u32 %v2104, 4294901760
    %v2689 = vsub.f32 %v2104, %v2688
    %v2690 = vand.u32 %v2689, 4294901760
    %v2691 = vsub.f32 %v2689, %v2690
    %v2692 = vand.u32 %v2691, 4294901760
    %2693 = vmatmul.f32.gmra.mxu0 %v2692
    %v2694 = vpop.f32.mrf.mxu0
    %v2695 = vadd.f32 0.0, %v2694
    %2696 = vdwg.mxu0
    %2697 = vmatpush.msra.mxu0 0.0
    %2698 = vmatpush.msra.mxu0 0.0
    %2699 = vmatpush.msra.mxu0 0.0
    %2700 = vmatpush.msra.mxu0 0.0
    %2701 = vmatpush.msra.mxu0 0.0
    %2702 = vmatpush.msra.mxu0 0.0
    %2703 = vmatpush.msra.mxu0 0.0
    %2704 = vmatpush.msra.mxu0 0.0
    %2705 = vmatpush.msra.mxu0 0.0
    %2706 = vmatpush.msra.mxu0 0.0
    %2707 = vmatpush.msra.mxu0 0.0
    %2708 = vmatpush.msra.mxu0 0.0
    %2709 = vmatpush.msra.mxu0 0.0
    %2710 = vmatpush.msra.mxu0 0.0
    %v2711 = vand.u32 %v2645, 4294901760
    %v2712 = vsub.f32 %v2645, %v2711
    %v2713 = vand.u32 %v2712, 4294901760
    %v2714 = vsub.f32 %v2712, %v2713
    %v2715 = vand.u32 %v2714, 4294901760
    %2716 = vmatpush.msra.mxu0 %v2715
    %v2717 = vand.u32 %v2644, 4294901760
    %v2718 = vsub.f32 %v2644, %v2717
    %v2719 = vand.u32 %v2718, 4294901760
    %v2720 = vsub.f32 %v2718, %v2719
    %v2721 = vand.u32 %v2720, 4294901760
    %2722 = vmatpush.msra.mxu0 %v2721
    %v2723 = vand.u32 %v2095, 4294901760
    %2724 = vmatmul.f32.gmra.mxu0 %v2723
    %v2725 = vpop.f32.mrf.mxu0
    %v2726 = vadd.f32 %v2671, %v2725
    %v2727 = vand.u32 %v2098, 4294901760
    %2728 = vmatmul.f32.gmra.mxu0 %v2727
    %v2729 = vpop.f32.mrf.mxu0
    %v2730 = vadd.f32 %v2679, %v2729
    %v2731 = vand.u32 %v2101, 4294901760
    %2732 = vmatmul.f32.gmra.mxu0 %v2731
    %v2733 = vpop.f32.mrf.mxu0
    %v2734 = vadd.f32 %v2687, %v2733
    %v2735 = vand.u32 %v2104, 4294901760
    %2736 = vmatmul.f32.gmra.mxu0 %v2735
    %v2737 = vpop.f32.mrf.mxu0
    %v2738 = vadd.f32 %v2695, %v2737
    %2739 = vdwg.mxu0
    %2740 = vmatpush.msra.mxu0 0.0
    %2741 = vmatpush.msra.mxu0 0.0
    %2742 = vmatpush.msra.mxu0 0.0
    %2743 = vmatpush.msra.mxu0 0.0
    %2744 = vmatpush.msra.mxu0 0.0
    %2745 = vmatpush.msra.mxu0 0.0
    %2746 = vmatpush.msra.mxu0 0.0
    %2747 = vmatpush.msra.mxu0 0.0
    %2748 = vmatpush.msra.mxu0 0.0
    %2749 = vmatpush.msra.mxu0 0.0
    %2750 = vmatpush.msra.mxu0 0.0
    %2751 = vmatpush.msra.mxu0 0.0
    %2752 = vmatpush.msra.mxu0 0.0
    %2753 = vmatpush.msra.mxu0 0.0
    %v2754 = vand.u32 %v2645, 4294901760
    %v2755 = vsub.f32 %v2645, %v2754
    %2756 = vmatpush.msra.mxu0 %v2755
    %v2757 = vand.u32 %v2644, 4294901760
    %v2758 = vsub.f32 %v2644, %v2757
    %2759 = vmatpush.msra.mxu0 %v2758
    %v2760 = vand.u32 %v2095, 4294901760
    %v2761 = vsub.f32 %v2095, %v2760
    %2762 = vmatmul.f32.gmra.mxu0 %v2761
    %v2763 = vpop.f32.mrf.mxu0
    %v2764 = vadd.f32 %v2726, %v2763
    %v2765 = vand.u32 %v2098, 4294901760
    %v2766 = vsub.f32 %v2098, %v2765
    %2767 = vmatmul.f32.gmra.mxu0 %v2766
    %v2768 = vpop.f32.mrf.mxu0
    %v2769 = vadd.f32 %v2730, %v2768
    %v2770 = vand.u32 %v2101, 4294901760
    %v2771 = vsub.f32 %v2101, %v2770
    %2772 = vmatmul.f32.gmra.mxu0 %v2771
    %v2773 = vpop.f32.mrf.mxu0
    %v2774 = vadd.f32 %v2734, %v2773
    %v2775 = vand.u32 %v2104, 4294901760
    %v2776 = vsub.f32 %v2104, %v2775
    %2777 = vmatmul.f32.gmra.mxu0 %v2776
    %v2778 = vpop.f32.mrf.mxu0
    %v2779 = vadd.f32 %v2738, %v2778
    %2780 = vdwg.mxu0
    %2781 = vmatpush.msra.mxu0 0.0
    %2782 = vmatpush.msra.mxu0 0.0
    %2783 = vmatpush.msra.mxu0 0.0
    %2784 = vmatpush.msra.mxu0 0.0
    %2785 = vmatpush.msra.mxu0 0.0
    %2786 = vmatpush.msra.mxu0 0.0
    %2787 = vmatpush.msra.mxu0 0.0
    %2788 = vmatpush.msra.mxu0 0.0
    %2789 = vmatpush.msra.mxu0 0.0
    %2790 = vmatpush.msra.mxu0 0.0
    %2791 = vmatpush.msra.mxu0 0.0
    %2792 = vmatpush.msra.mxu0 0.0
    %2793 = vmatpush.msra.mxu0 0.0
    %2794 = vmatpush.msra.mxu0 0.0
    %v2795 = vand.u32 %v2645, 4294901760
    %2796 = vmatpush.msra.mxu0 %v2795
    %v2797 = vand.u32 %v2644, 4294901760
    %2798 = vmatpush.msra.mxu0 %v2797
    %v2799 = vand.u32 %v2095, 4294901760
    %v2800 = vsub.f32 %v2095, %v2799
    %v2801 = vand.u32 %v2800, 4294901760
    %2802 = vmatmul.f32.gmra.mxu0 %v2801
    %v2803 = vpop.f32.mrf.mxu0
    %v2804 = vadd.f32 %v2764, %v2803
    %v2805 = vand.u32 %v2098, 4294901760
    %v2806 = vsub.f32 %v2098, %v2805
    %v2807 = vand.u32 %v2806, 4294901760
    %2808 = vmatmul.f32.gmra.mxu0 %v2807
    %v2809 = vpop.f32.mrf.mxu0
    %v2810 = vadd.f32 %v2769, %v2809
    %v2811 = vand.u32 %v2101, 4294901760
    %v2812 = vsub.f32 %v2101, %v2811
    %v2813 = vand.u32 %v2812, 4294901760
    %2814 = vmatmul.f32.gmra.mxu0 %v2813
    %v2815 = vpop.f32.mrf.mxu0
    %v2816 = vadd.f32 %v2774, %v2815
    %v2817 = vand.u32 %v2104, 4294901760
    %v2818 = vsub.f32 %v2104, %v2817
    %v2819 = vand.u32 %v2818, 4294901760
    %2820 = vmatmul.f32.gmra.mxu0 %v2819
    %v2821 = vpop.f32.mrf.mxu0
    %v2822 = vadd.f32 %v2779, %v2821
    %2823 = vdwg.mxu0
    %2824 = vmatpush.msra.mxu0 0.0
    %2825 = vmatpush.msra.mxu0 0.0
    %2826 = vmatpush.msra.mxu0 0.0
    %2827 = vmatpush.msra.mxu0 0.0
    %2828 = vmatpush.msra.mxu0 0.0
    %2829 = vmatpush.msra.mxu0 0.0
    %2830 = vmatpush.msra.mxu0 0.0
    %2831 = vmatpush.msra.mxu0 0.0
    %2832 = vmatpush.msra.mxu0 0.0
    %2833 = vmatpush.msra.mxu0 0.0
    %2834 = vmatpush.msra.mxu0 0.0
    %2835 = vmatpush.msra.mxu0 0.0
    %2836 = vmatpush.msra.mxu0 0.0
    %2837 = vmatpush.msra.mxu0 0.0
    %v2838 = vand.u32 %v2645, 4294901760
    %v2839 = vsub.f32 %v2645, %v2838
    %v2840 = vand.u32 %v2839, 4294901760
    %2841 = vmatpush.msra.mxu0 %v2840
    %v2842 = vand.u32 %v2644, 4294901760
    %v2843 = vsub.f32 %v2644, %v2842
    %v2844 = vand.u32 %v2843, 4294901760
    %2845 = vmatpush.msra.mxu0 %v2844
    %v2846 = vand.u32 %v2095, 4294901760
    %2847 = vmatmul.f32.gmra.mxu0 %v2846
    %v2848 = vpop.f32.mrf.mxu0
    %v2849 = vadd.f32 %v2804, %v2848
    %v2850 = vand.u32 %v2098, 4294901760
    %2851 = vmatmul.f32.gmra.mxu0 %v2850
    %v2852 = vpop.f32.mrf.mxu0
    %v2853 = vadd.f32 %v2810, %v2852
    %v2854 = vand.u32 %v2101, 4294901760
    %2855 = vmatmul.f32.gmra.mxu0 %v2854
    %v2856 = vpop.f32.mrf.mxu0
    %v2857 = vadd.f32 %v2816, %v2856
    %v2858 = vand.u32 %v2104, 4294901760
    %2859 = vmatmul.f32.gmra.mxu0 %v2858
    %v2860 = vpop.f32.mrf.mxu0
    %v2861 = vadd.f32 %v2822, %v2860
    %2862 = vdwg.mxu0
    %2863 = vmatpush.msra.mxu0 0.0
    %2864 = vmatpush.msra.mxu0 0.0
    %2865 = vmatpush.msra.mxu0 0.0
    %2866 = vmatpush.msra.mxu0 0.0
    %2867 = vmatpush.msra.mxu0 0.0
    %2868 = vmatpush.msra.mxu0 0.0
    %2869 = vmatpush.msra.mxu0 0.0
    %2870 = vmatpush.msra.mxu0 0.0
    %2871 = vmatpush.msra.mxu0 0.0
    %2872 = vmatpush.msra.mxu0 0.0
    %2873 = vmatpush.msra.mxu0 0.0
    %2874 = vmatpush.msra.mxu0 0.0
    %2875 = vmatpush.msra.mxu0 0.0
    %2876 = vmatpush.msra.mxu0 0.0
    %v2877 = vand.u32 %v2645, 4294901760
    %2878 = vmatpush.msra.mxu0 %v2877
    %v2879 = vand.u32 %v2644, 4294901760
    %2880 = vmatpush.msra.mxu0 %v2879
    %v2881 = vand.u32 %v2095, 4294901760
    %2882 = vmatmul.f32.gmra.mxu0 %v2881
    %v2883 = vpop.f32.mrf.mxu0
    %v2884 = vadd.f32 %v2849, %v2883
    %v2885 = vand.u32 %v2098, 4294901760
    %2886 = vmatmul.f32.gmra.mxu0 %v2885
    %v2887 = vpop.f32.mrf.mxu0
    %v2888 = vadd.f32 %v2853, %v2887
    %v2889 = vand.u32 %v2101, 4294901760
    %2890 = vmatmul.f32.gmra.mxu0 %v2889
    %v2891 = vpop.f32.mrf.mxu0
    %v2892 = vadd.f32 %v2857, %v2891
    %v2893 = vand.u32 %v2104, 4294901760
    %2894 = vmatmul.f32.gmra.mxu0 %v2893
    %v2895 = vpop.f32.mrf.mxu0
    %v2896 = vadd.f32 %v2861, %v2895
    %2897 = vdwg.mxu0
    %v2898 = vrot.slane %v2884, 7
    %v2899 = vrot.slane %v2888, 7
    %v2900 = vrot.slane %v2892, 7
    %v2901 = vrot.slane %v2896, 7
    %v2902 = vsel %vm934, %v2900, %v2901
    %v2903 = vsel %vm934, %v2899, %v2900
    %v2904 = vsel %vm934, %v2898, %v2899
    %v2905 = vsel %vm934, %v2901, %v2898
    %v2906 = vsel %vm951, %v2905, 0.0
    %v2907 = vsel %vm952, %v2904, 0.0
    %v2908 = vsel %vm953, %v2903, 0.0
    %v2909 = vsel %vm954, %v2902, 0.0
    %v2910 = vadd.f32 %v2640, %v2906
    %v2911 = vadd.f32 %v2641, %v2907
    %v2912 = vadd.f32 %v2642, %v2908
    %v2913 = vadd.f32 %v2643, %v2909
    %v2914 = vld [vmem:[%s2 + $0x30] sm:$0xff]
    %v2915 = vld [vmem:[%s2 + $0x38] sm:$0xff]
    %2916 = vmatpush.msra.mxu0 0.0
    %2917 = vmatpush.msra.mxu0 0.0
    %2918 = vmatpush.msra.mxu0 0.0
    %2919 = vmatpush.msra.mxu0 0.0
    %2920 = vmatpush.msra.mxu0 0.0
    %2921 = vmatpush.msra.mxu0 0.0
    %2922 = vmatpush.msra.mxu0 0.0
    %2923 = vmatpush.msra.mxu0 0.0
    %2924 = vmatpush.msra.mxu0 0.0
    %2925 = vmatpush.msra.mxu0 0.0
    %2926 = vmatpush.msra.mxu0 0.0
    %2927 = vmatpush.msra.mxu0 0.0
    %2928 = vmatpush.msra.mxu0 0.0
    %2929 = vmatpush.msra.mxu0 0.0
    %v2930 = vand.u32 %v2915, 4294901760
    %2931 = vmatpush.msra.mxu0 %v2930
    %v2932 = vand.u32 %v2914, 4294901760
    %2933 = vmatpush.msra.mxu0 %v2932
    %v2934 = vand.u32 %v2095, 4294901760
    %v2935 = vsub.f32 %v2095, %v2934
    %v2936 = vand.u32 %v2935, 4294901760
    %v2937 = vsub.f32 %v2935, %v2936
    %v2938 = vand.u32 %v2937, 4294901760
    %2939 = vmatmul.f32.gmra.mxu0 %v2938
    %v2940 = vpop.f32.mrf.mxu0
    %v2941 = vadd.f32 0.0, %v2940
    %v2942 = vand.u32 %v2098, 4294901760
    %v2943 = vsub.f32 %v2098, %v2942
    %v2944 = vand.u32 %v2943, 4294901760
    %v2945 = vsub.f32 %v2943, %v2944
    %v2946 = vand.u32 %v2945, 4294901760
    %2947 = vmatmul.f32.gmra.mxu0 %v2946
    %v2948 = vpop.f32.mrf.mxu0
    %v2949 = vadd.f32 0.0, %v2948
    %v2950 = vand.u32 %v2101, 4294901760
    %v2951 = vsub.f32 %v2101, %v2950
    %v2952 = vand.u32 %v2951, 4294901760
    %v2953 = vsub.f32 %v2951, %v2952
    %v2954 = vand.u32 %v2953, 4294901760
    %2955 = vmatmul.f32.gmra.mxu0 %v2954
    %v2956 = vpop.f32.mrf.mxu0
    %v2957 = vadd.f32 0.0, %v2956
    %v2958 = vand.u32 %v2104, 4294901760
    %v2959 = vsub.f32 %v2104, %v2958
    %v2960 = vand.u32 %v2959, 4294901760
    %v2961 = vsub.f32 %v2959, %v2960
    %v2962 = vand.u32 %v2961, 4294901760
    %2963 = vmatmul.f32.gmra.mxu0 %v2962
    %v2964 = vpop.f32.mrf.mxu0
    %v2965 = vadd.f32 0.0, %v2964
    %2966 = vdwg.mxu0
    %2967 = vmatpush.msra.mxu0 0.0
    %2968 = vmatpush.msra.mxu0 0.0
    %2969 = vmatpush.msra.mxu0 0.0
    %2970 = vmatpush.msra.mxu0 0.0
    %2971 = vmatpush.msra.mxu0 0.0
    %2972 = vmatpush.msra.mxu0 0.0
    %2973 = vmatpush.msra.mxu0 0.0
    %2974 = vmatpush.msra.mxu0 0.0
    %2975 = vmatpush.msra.mxu0 0.0
    %2976 = vmatpush.msra.mxu0 0.0
    %2977 = vmatpush.msra.mxu0 0.0
    %2978 = vmatpush.msra.mxu0 0.0
    %2979 = vmatpush.msra.mxu0 0.0
    %2980 = vmatpush.msra.mxu0 0.0
    %v2981 = vand.u32 %v2915, 4294901760
    %v2982 = vsub.f32 %v2915, %v2981
    %v2983 = vand.u32 %v2982, 4294901760
    %v2984 = vsub.f32 %v2982, %v2983
    %v2985 = vand.u32 %v2984, 4294901760
    %2986 = vmatpush.msra.mxu0 %v2985
    %v2987 = vand.u32 %v2914, 4294901760
    %v2988 = vsub.f32 %v2914, %v2987
    %v2989 = vand.u32 %v2988, 4294901760
    %v2990 = vsub.f32 %v2988, %v2989
    %v2991 = vand.u32 %v2990, 4294901760
    %2992 = vmatpush.msra.mxu0 %v2991
    %v2993 = vand.u32 %v2095, 4294901760
    %2994 = vmatmul.f32.gmra.mxu0 %v2993
    %v2995 = vpop.f32.mrf.mxu0
    %v2996 = vadd.f32 %v2941, %v2995
    %v2997 = vand.u32 %v2098, 4294901760
    %2998 = vmatmul.f32.gmra.mxu0 %v2997
    %v2999 = vpop.f32.mrf.mxu0
    %v3000 = vadd.f32 %v2949, %v2999
    %v3001 = vand.u32 %v2101, 4294901760
    %3002 = vmatmul.f32.gmra.mxu0 %v3001
    %v3003 = vpop.f32.mrf.mxu0
    %v3004 = vadd.f32 %v2957, %v3003
    %v3005 = vand.u32 %v2104, 4294901760
    %3006 = vmatmul.f32.gmra.mxu0 %v3005
    %v3007 = vpop.f32.mrf.mxu0
    %v3008 = vadd.f32 %v2965, %v3007
    %3009 = vdwg.mxu0
    %3010 = vmatpush.msra.mxu0 0.0
    %3011 = vmatpush.msra.mxu0 0.0
    %3012 = vmatpush.msra.mxu0 0.0
    %3013 = vmatpush.msra.mxu0 0.0
    %3014 = vmatpush.msra.mxu0 0.0
    %3015 = vmatpush.msra.mxu0 0.0
    %3016 = vmatpush.msra.mxu0 0.0
    %3017 = vmatpush.msra.mxu0 0.0
    %3018 = vmatpush.msra.mxu0 0.0
    %3019 = vmatpush.msra.mxu0 0.0
    %3020 = vmatpush.msra.mxu0 0.0
    %3021 = vmatpush.msra.mxu0 0.0
    %3022 = vmatpush.msra.mxu0 0.0
    %3023 = vmatpush.msra.mxu0 0.0
    %v3024 = vand.u32 %v2915, 4294901760
    %v3025 = vsub.f32 %v2915, %v3024
    %3026 = vmatpush.msra.mxu0 %v3025
    %v3027 = vand.u32 %v2914, 4294901760
    %v3028 = vsub.f32 %v2914, %v3027
    %3029 = vmatpush.msra.mxu0 %v3028
    %v3030 = vand.u32 %v2095, 4294901760
    %v3031 = vsub.f32 %v2095, %v3030
    %3032 = vmatmul.f32.gmra.mxu0 %v3031
    %v3033 = vpop.f32.mrf.mxu0
    %v3034 = vadd.f32 %v2996, %v3033
    %v3035 = vand.u32 %v2098, 4294901760
    %v3036 = vsub.f32 %v2098, %v3035
    %3037 = vmatmul.f32.gmra.mxu0 %v3036
    %v3038 = vpop.f32.mrf.mxu0
    %v3039 = vadd.f32 %v3000, %v3038
    %v3040 = vand.u32 %v2101, 4294901760
    %v3041 = vsub.f32 %v2101, %v3040
    %3042 = vmatmul.f32.gmra.mxu0 %v3041
    %v3043 = vpop.f32.mrf.mxu0
    %v3044 = vadd.f32 %v3004, %v3043
    %v3045 = vand.u32 %v2104, 4294901760
    %v3046 = vsub.f32 %v2104, %v3045
    %3047 = vmatmul.f32.gmra.mxu0 %v3046
    %v3048 = vpop.f32.mrf.mxu0
    %v3049 = vadd.f32 %v3008, %v3048
    %3050 = vdwg.mxu0
    %3051 = vmatpush.msra.mxu0 0.0
    %3052 = vmatpush.msra.mxu0 0.0
    %3053 = vmatpush.msra.mxu0 0.0
    %3054 = vmatpush.msra.mxu0 0.0
    %3055 = vmatpush.msra.mxu0 0.0
    %3056 = vmatpush.msra.mxu0 0.0
    %3057 = vmatpush.msra.mxu0 0.0
    %3058 = vmatpush.msra.mxu0 0.0
    %3059 = vmatpush.msra.mxu0 0.0
    %3060 = vmatpush.msra.mxu0 0.0
    %3061 = vmatpush.msra.mxu0 0.0
    %3062 = vmatpush.msra.mxu0 0.0
    %3063 = vmatpush.msra.mxu0 0.0
    %3064 = vmatpush.msra.mxu0 0.0
    %v3065 = vand.u32 %v2915, 4294901760
    %3066 = vmatpush.msra.mxu0 %v3065
    %v3067 = vand.u32 %v2914, 4294901760
    %3068 = vmatpush.msra.mxu0 %v3067
    %v3069 = vand.u32 %v2095, 4294901760
    %v3070 = vsub.f32 %v2095, %v3069
    %v3071 = vand.u32 %v3070, 4294901760
    %3072 = vmatmul.f32.gmra.mxu0 %v3071
    %v3073 = vpop.f32.mrf.mxu0
    %v3074 = vadd.f32 %v3034, %v3073
    %v3075 = vand.u32 %v2098, 4294901760
    %v3076 = vsub.f32 %v2098, %v3075
    %v3077 = vand.u32 %v3076, 4294901760
    %3078 = vmatmul.f32.gmra.mxu0 %v3077
    %v3079 = vpop.f32.mrf.mxu0
    %v3080 = vadd.f32 %v3039, %v3079
    %v3081 = vand.u32 %v2101, 4294901760
    %v3082 = vsub.f32 %v2101, %v3081
    %v3083 = vand.u32 %v3082, 4294901760
    %3084 = vmatmul.f32.gmra.mxu0 %v3083
    %v3085 = vpop.f32.mrf.mxu0
    %v3086 = vadd.f32 %v3044, %v3085
    %v3087 = vand.u32 %v2104, 4294901760
    %v3088 = vsub.f32 %v2104, %v3087
    %v3089 = vand.u32 %v3088, 4294901760
    %3090 = vmatmul.f32.gmra.mxu0 %v3089
    %v3091 = vpop.f32.mrf.mxu0
    %v3092 = vadd.f32 %v3049, %v3091
    %3093 = vdwg.mxu0
    %3094 = vmatpush.msra.mxu0 0.0
    %3095 = vmatpush.msra.mxu0 0.0
    %3096 = vmatpush.msra.mxu0 0.0
    %3097 = vmatpush.msra.mxu0 0.0
    %3098 = vmatpush.msra.mxu0 0.0
    %3099 = vmatpush.msra.mxu0 0.0
    %3100 = vmatpush.msra.mxu0 0.0
    %3101 = vmatpush.msra.mxu0 0.0
    %3102 = vmatpush.msra.mxu0 0.0
    %3103 = vmatpush.msra.mxu0 0.0
    %3104 = vmatpush.msra.mxu0 0.0
    %3105 = vmatpush.msra.mxu0 0.0
    %3106 = vmatpush.msra.mxu0 0.0
    %3107 = vmatpush.msra.mxu0 0.0
    %v3108 = vand.u32 %v2915, 4294901760
    %v3109 = vsub.f32 %v2915, %v3108
    %v3110 = vand.u32 %v3109, 4294901760
    %3111 = vmatpush.msra.mxu0 %v3110
    %v3112 = vand.u32 %v2914, 4294901760
    %v3113 = vsub.f32 %v2914, %v3112
    %v3114 = vand.u32 %v3113, 4294901760
    %3115 = vmatpush.msra.mxu0 %v3114
    %v3116 = vand.u32 %v2095, 4294901760
    %3117 = vmatmul.f32.gmra.mxu0 %v3116
    %v3118 = vpop.f32.mrf.mxu0
    %v3119 = vadd.f32 %v3074, %v3118
    %v3120 = vand.u32 %v2098, 4294901760
    %3121 = vmatmul.f32.gmra.mxu0 %v3120
    %v3122 = vpop.f32.mrf.mxu0
    %v3123 = vadd.f32 %v3080, %v3122
    %v3124 = vand.u32 %v2101, 4294901760
    %3125 = vmatmul.f32.gmra.mxu0 %v3124
    %v3126 = vpop.f32.mrf.mxu0
    %v3127 = vadd.f32 %v3086, %v3126
    %v3128 = vand.u32 %v2104, 4294901760
    %3129 = vmatmul.f32.gmra.mxu0 %v3128
    %v3130 = vpop.f32.mrf.mxu0
    %v3131 = vadd.f32 %v3092, %v3130
    %3132 = vdwg.mxu0
    %3133 = vmatpush.msra.mxu0 0.0
    %3134 = vmatpush.msra.mxu0 0.0
    %3135 = vmatpush.msra.mxu0 0.0
    %3136 = vmatpush.msra.mxu0 0.0
    %3137 = vmatpush.msra.mxu0 0.0
    %3138 = vmatpush.msra.mxu0 0.0
    %3139 = vmatpush.msra.mxu0 0.0
    %3140 = vmatpush.msra.mxu0 0.0
    %3141 = vmatpush.msra.mxu0 0.0
    %3142 = vmatpush.msra.mxu0 0.0
    %3143 = vmatpush.msra.mxu0 0.0
    %3144 = vmatpush.msra.mxu0 0.0
    %3145 = vmatpush.msra.mxu0 0.0
    %3146 = vmatpush.msra.mxu0 0.0
    %v3147 = vand.u32 %v2915, 4294901760
    %3148 = vmatpush.msra.mxu0 %v3147
    %v3149 = vand.u32 %v2914, 4294901760
    %3150 = vmatpush.msra.mxu0 %v3149
    %v3151 = vand.u32 %v2095, 4294901760
    %3152 = vmatmul.f32.gmra.mxu0 %v3151
    %v3153 = vpop.f32.mrf.mxu0
    %v3154 = vadd.f32 %v3119, %v3153
    %v3155 = vand.u32 %v2098, 4294901760
    %3156 = vmatmul.f32.gmra.mxu0 %v3155
    %v3157 = vpop.f32.mrf.mxu0
    %v3158 = vadd.f32 %v3123, %v3157
    %v3159 = vand.u32 %v2101, 4294901760
    %3160 = vmatmul.f32.gmra.mxu0 %v3159
    %v3161 = vpop.f32.mrf.mxu0
    %v3162 = vadd.f32 %v3127, %v3161
    %v3163 = vand.u32 %v2104, 4294901760
    %3164 = vmatmul.f32.gmra.mxu0 %v3163
    %v3165 = vpop.f32.mrf.mxu0
    %v3166 = vadd.f32 %v3131, %v3165
    %3167 = vdwg.mxu0
    %v3168 = vadd.f32 %v2910, %v3154
    %v3169 = vadd.f32 %v2911, %v3158
    %v3170 = vadd.f32 %v2912, %v3162
    %v3171 = vadd.f32 %v2913, %v3166
    %v3172 = vld [vmem:[%s2 + $0x40] sm:$0xff]
    %v3173 = vld [vmem:[%s2 + $0x48] sm:$0xff]
    %3174 = vmatpush.msra.mxu0 0.0
    %3175 = vmatpush.msra.mxu0 0.0
    %3176 = vmatpush.msra.mxu0 0.0
    %3177 = vmatpush.msra.mxu0 0.0
    %3178 = vmatpush.msra.mxu0 0.0
    %3179 = vmatpush.msra.mxu0 0.0
    %3180 = vmatpush.msra.mxu0 0.0
    %3181 = vmatpush.msra.mxu0 0.0
    %3182 = vmatpush.msra.mxu0 0.0
    %3183 = vmatpush.msra.mxu0 0.0
    %3184 = vmatpush.msra.mxu0 0.0
    %3185 = vmatpush.msra.mxu0 0.0
    %3186 = vmatpush.msra.mxu0 0.0
    %3187 = vmatpush.msra.mxu0 0.0
    %v3188 = vand.u32 %v3173, 4294901760
    %3189 = vmatpush.msra.mxu0 %v3188
    %v3190 = vand.u32 %v3172, 4294901760
    %3191 = vmatpush.msra.mxu0 %v3190
    %v3192 = vand.u32 %v2095, 4294901760
    %v3193 = vsub.f32 %v2095, %v3192
    %v3194 = vand.u32 %v3193, 4294901760
    %v3195 = vsub.f32 %v3193, %v3194
    %v3196 = vand.u32 %v3195, 4294901760
    %3197 = vmatmul.f32.gmra.mxu0 %v3196
    %v3198 = vpop.f32.mrf.mxu0
    %v3199 = vadd.f32 0.0, %v3198
    %v3200 = vand.u32 %v2098, 4294901760
    %v3201 = vsub.f32 %v2098, %v3200
    %v3202 = vand.u32 %v3201, 4294901760
    %v3203 = vsub.f32 %v3201, %v3202
    %v3204 = vand.u32 %v3203, 4294901760
    %3205 = vmatmul.f32.gmra.mxu0 %v3204
    %v3206 = vpop.f32.mrf.mxu0
    %v3207 = vadd.f32 0.0, %v3206
    %v3208 = vand.u32 %v2101, 4294901760
    %v3209 = vsub.f32 %v2101, %v3208
    %v3210 = vand.u32 %v3209, 4294901760
    %v3211 = vsub.f32 %v3209, %v3210
    %v3212 = vand.u32 %v3211, 4294901760
    %3213 = vmatmul.f32.gmra.mxu0 %v3212
    %v3214 = vpop.f32.mrf.mxu0
    %v3215 = vadd.f32 0.0, %v3214
    %v3216 = vand.u32 %v2104, 4294901760
    %v3217 = vsub.f32 %v2104, %v3216
    %v3218 = vand.u32 %v3217, 4294901760
    %v3219 = vsub.f32 %v3217, %v3218
    %v3220 = vand.u32 %v3219, 4294901760
    %3221 = vmatmul.f32.gmra.mxu0 %v3220
    %v3222 = vpop.f32.mrf.mxu0
    %v3223 = vadd.f32 0.0, %v3222
    %3224 = vdwg.mxu0
    %3225 = vmatpush.msra.mxu0 0.0
    %3226 = vmatpush.msra.mxu0 0.0
    %3227 = vmatpush.msra.mxu0 0.0
    %3228 = vmatpush.msra.mxu0 0.0
    %3229 = vmatpush.msra.mxu0 0.0
    %3230 = vmatpush.msra.mxu0 0.0
    %3231 = vmatpush.msra.mxu0 0.0
    %3232 = vmatpush.msra.mxu0 0.0
    %3233 = vmatpush.msra.mxu0 0.0
    %3234 = vmatpush.msra.mxu0 0.0
    %3235 = vmatpush.msra.mxu0 0.0
    %3236 = vmatpush.msra.mxu0 0.0
    %3237 = vmatpush.msra.mxu0 0.0
    %3238 = vmatpush.msra.mxu0 0.0
    %v3239 = vand.u32 %v3173, 4294901760
    %v3240 = vsub.f32 %v3173, %v3239
    %v3241 = vand.u32 %v3240, 4294901760
    %v3242 = vsub.f32 %v3240, %v3241
    %v3243 = vand.u32 %v3242, 4294901760
    %3244 = vmatpush.msra.mxu0 %v3243
    %v3245 = vand.u32 %v3172, 4294901760
    %v3246 = vsub.f32 %v3172, %v3245
    %v3247 = vand.u32 %v3246, 4294901760
    %v3248 = vsub.f32 %v3246, %v3247
    %v3249 = vand.u32 %v3248, 4294901760
    %3250 = vmatpush.msra.mxu0 %v3249
    %v3251 = vand.u32 %v2095, 4294901760
    %3252 = vmatmul.f32.gmra.mxu0 %v3251
    %v3253 = vpop.f32.mrf.mxu0
    %v3254 = vadd.f32 %v3199, %v3253
    %v3255 = vand.u32 %v2098, 4294901760
    %3256 = vmatmul.f32.gmra.mxu0 %v3255
    %v3257 = vpop.f32.mrf.mxu0
    %v3258 = vadd.f32 %v3207, %v3257
    %v3259 = vand.u32 %v2101, 4294901760
    %3260 = vmatmul.f32.gmra.mxu0 %v3259
    %v3261 = vpop.f32.mrf.mxu0
    %v3262 = vadd.f32 %v3215, %v3261
    %v3263 = vand.u32 %v2104, 4294901760
    %3264 = vmatmul.f32.gmra.mxu0 %v3263
    %v3265 = vpop.f32.mrf.mxu0
    %v3266 = vadd.f32 %v3223, %v3265
    %3267 = vdwg.mxu0
    %3268 = vmatpush.msra.mxu0 0.0
    %3269 = vmatpush.msra.mxu0 0.0
    %3270 = vmatpush.msra.mxu0 0.0
    %3271 = vmatpush.msra.mxu0 0.0
    %3272 = vmatpush.msra.mxu0 0.0
    %3273 = vmatpush.msra.mxu0 0.0
    %3274 = vmatpush.msra.mxu0 0.0
    %3275 = vmatpush.msra.mxu0 0.0
    %3276 = vmatpush.msra.mxu0 0.0
    %3277 = vmatpush.msra.mxu0 0.0
    %3278 = vmatpush.msra.mxu0 0.0
    %3279 = vmatpush.msra.mxu0 0.0
    %3280 = vmatpush.msra.mxu0 0.0
    %3281 = vmatpush.msra.mxu0 0.0
    %v3282 = vand.u32 %v3173, 4294901760
    %v3283 = vsub.f32 %v3173, %v3282
    %3284 = vmatpush.msra.mxu0 %v3283
    %v3285 = vand.u32 %v3172, 4294901760
    %v3286 = vsub.f32 %v3172, %v3285
    %3287 = vmatpush.msra.mxu0 %v3286
    %v3288 = vand.u32 %v2095, 4294901760
    %v3289 = vsub.f32 %v2095, %v3288
    %3290 = vmatmul.f32.gmra.mxu0 %v3289
    %v3291 = vpop.f32.mrf.mxu0
    %v3292 = vadd.f32 %v3254, %v3291
    %v3293 = vand.u32 %v2098, 4294901760
    %v3294 = vsub.f32 %v2098, %v3293
    %3295 = vmatmul.f32.gmra.mxu0 %v3294
    %v3296 = vpop.f32.mrf.mxu0
    %v3297 = vadd.f32 %v3258, %v3296
    %v3298 = vand.u32 %v2101, 4294901760
    %v3299 = vsub.f32 %v2101, %v3298
    %3300 = vmatmul.f32.gmra.mxu0 %v3299
    %v3301 = vpop.f32.mrf.mxu0
    %v3302 = vadd.f32 %v3262, %v3301
    %v3303 = vand.u32 %v2104, 4294901760
    %v3304 = vsub.f32 %v2104, %v3303
    %3305 = vmatmul.f32.gmra.mxu0 %v3304
    %v3306 = vpop.f32.mrf.mxu0
    %v3307 = vadd.f32 %v3266, %v3306
    %3308 = vdwg.mxu0
    %3309 = vmatpush.msra.mxu0 0.0
    %3310 = vmatpush.msra.mxu0 0.0
    %3311 = vmatpush.msra.mxu0 0.0
    %3312 = vmatpush.msra.mxu0 0.0
    %3313 = vmatpush.msra.mxu0 0.0
    %3314 = vmatpush.msra.mxu0 0.0
    %3315 = vmatpush.msra.mxu0 0.0
    %3316 = vmatpush.msra.mxu0 0.0
    %3317 = vmatpush.msra.mxu0 0.0
    %3318 = vmatpush.msra.mxu0 0.0
    %3319 = vmatpush.msra.mxu0 0.0
    %3320 = vmatpush.msra.mxu0 0.0
    %3321 = vmatpush.msra.mxu0 0.0
    %3322 = vmatpush.msra.mxu0 0.0
    %v3323 = vand.u32 %v3173, 4294901760
    %3324 = vmatpush.msra.mxu0 %v3323
    %v3325 = vand.u32 %v3172, 4294901760
    %3326 = vmatpush.msra.mxu0 %v3325
    %v3327 = vand.u32 %v2095, 4294901760
    %v3328 = vsub.f32 %v2095, %v3327
    %v3329 = vand.u32 %v3328, 4294901760
    %3330 = vmatmul.f32.gmra.mxu0 %v3329
    %v3331 = vpop.f32.mrf.mxu0
    %v3332 = vadd.f32 %v3292, %v3331
    %v3333 = vand.u32 %v2098, 4294901760
    %v3334 = vsub.f32 %v2098, %v3333
    %v3335 = vand.u32 %v3334, 4294901760
    %3336 = vmatmul.f32.gmra.mxu0 %v3335
    %v3337 = vpop.f32.mrf.mxu0
    %v3338 = vadd.f32 %v3297, %v3337
    %v3339 = vand.u32 %v2101, 4294901760
    %v3340 = vsub.f32 %v2101, %v3339
    %v3341 = vand.u32 %v3340, 4294901760
    %3342 = vmatmul.f32.gmra.mxu0 %v3341
    %v3343 = vpop.f32.mrf.mxu0
    %v3344 = vadd.f32 %v3302, %v3343
    %v3345 = vand.u32 %v2104, 4294901760
    %v3346 = vsub.f32 %v2104, %v3345
    %v3347 = vand.u32 %v3346, 4294901760
    %3348 = vmatmul.f32.gmra.mxu0 %v3347
    %v3349 = vpop.f32.mrf.mxu0
    %v3350 = vadd.f32 %v3307, %v3349
    %3351 = vdwg.mxu0
    %3352 = vmatpush.msra.mxu0 0.0
    %3353 = vmatpush.msra.mxu0 0.0
    %3354 = vmatpush.msra.mxu0 0.0
    %3355 = vmatpush.msra.mxu0 0.0
    %3356 = vmatpush.msra.mxu0 0.0
    %3357 = vmatpush.msra.mxu0 0.0
    %3358 = vmatpush.msra.mxu0 0.0
    %3359 = vmatpush.msra.mxu0 0.0
    %3360 = vmatpush.msra.mxu0 0.0
    %3361 = vmatpush.msra.mxu0 0.0
    %3362 = vmatpush.msra.mxu0 0.0
    %3363 = vmatpush.msra.mxu0 0.0
    %3364 = vmatpush.msra.mxu0 0.0
    %3365 = vmatpush.msra.mxu0 0.0
    %v3366 = vand.u32 %v3173, 4294901760
    %v3367 = vsub.f32 %v3173, %v3366
    %v3368 = vand.u32 %v3367, 4294901760
    %3369 = vmatpush.msra.mxu0 %v3368
    %v3370 = vand.u32 %v3172, 4294901760
    %v3371 = vsub.f32 %v3172, %v3370
    %v3372 = vand.u32 %v3371, 4294901760
    %3373 = vmatpush.msra.mxu0 %v3372
    %v3374 = vand.u32 %v2095, 4294901760
    %3375 = vmatmul.f32.gmra.mxu0 %v3374
    %v3376 = vpop.f32.mrf.mxu0
    %v3377 = vadd.f32 %v3332, %v3376
    %v3378 = vand.u32 %v2098, 4294901760
    %3379 = vmatmul.f32.gmra.mxu0 %v3378
    %v3380 = vpop.f32.mrf.mxu0
    %v3381 = vadd.f32 %v3338, %v3380
    %v3382 = vand.u32 %v2101, 4294901760
    %3383 = vmatmul.f32.gmra.mxu0 %v3382
    %v3384 = vpop.f32.mrf.mxu0
    %v3385 = vadd.f32 %v3344, %v3384
    %v3386 = vand.u32 %v2104, 4294901760
    %3387 = vmatmul.f32.gmra.mxu0 %v3386
    %v3388 = vpop.f32.mrf.mxu0
    %v3389 = vadd.f32 %v3350, %v3388
    %3390 = vdwg.mxu0
    %3391 = vmatpush.msra.mxu0 0.0
    %3392 = vmatpush.msra.mxu0 0.0
    %3393 = vmatpush.msra.mxu0 0.0
    %3394 = vmatpush.msra.mxu0 0.0
    %3395 = vmatpush.msra.mxu0 0.0
    %3396 = vmatpush.msra.mxu0 0.0
    %3397 = vmatpush.msra.mxu0 0.0
    %3398 = vmatpush.msra.mxu0 0.0
    %3399 = vmatpush.msra.mxu0 0.0
    %3400 = vmatpush.msra.mxu0 0.0
    %3401 = vmatpush.msra.mxu0 0.0
    %3402 = vmatpush.msra.mxu0 0.0
    %3403 = vmatpush.msra.mxu0 0.0
    %3404 = vmatpush.msra.mxu0 0.0
    %v3405 = vand.u32 %v3173, 4294901760
    %3406 = vmatpush.msra.mxu0 %v3405
    %v3407 = vand.u32 %v3172, 4294901760
    %3408 = vmatpush.msra.mxu0 %v3407
    %v3409 = vand.u32 %v2095, 4294901760
    %3410 = vmatmul.f32.gmra.mxu0 %v3409
    %v3411 = vpop.f32.mrf.mxu0
    %v3412 = vadd.f32 %v3377, %v3411
    %v3413 = vand.u32 %v2098, 4294901760
    %3414 = vmatmul.f32.gmra.mxu0 %v3413
    %v3415 = vpop.f32.mrf.mxu0
    %v3416 = vadd.f32 %v3381, %v3415
    %v3417 = vand.u32 %v2101, 4294901760
    %3418 = vmatmul.f32.gmra.mxu0 %v3417
    %v3419 = vpop.f32.mrf.mxu0
    %v3420 = vadd.f32 %v3385, %v3419
    %v3421 = vand.u32 %v2104, 4294901760
    %3422 = vmatmul.f32.gmra.mxu0 %v3421
    %v3423 = vpop.f32.mrf.mxu0
    %v3424 = vadd.f32 %v3389, %v3423
    %3425 = vdwg.mxu0
    %v3426 = vrot.slane %v3412, 1
    %v3427 = vrot.slane %v3416, 1
    %v3428 = vrot.slane %v3420, 1
    %v3429 = vrot.slane %v3424, 1
    %v3430 = vsel %vm1479, %v3428, %v3429
    %v3431 = vsel %vm1479, %v3427, %v3428
    %v3432 = vsel %vm1479, %v3426, %v3427
    %v3433 = vsel %vm1479, %v3429, %v3426
    %v3434 = vsel %vm1496, %v3432, 0.0
    %v3435 = vsel %vm1497, %v3431, 0.0
    %v3436 = vsel %vm1498, %v3430, 0.0
    %v3437 = vsel %vm1499, %v3433, 0.0
    %v3438 = vadd.f32 %v3168, %v3434
    %v3439 = vadd.f32 %v3169, %v3435
    %v3440 = vadd.f32 %v3170, %v3436
    %v3441 = vadd.f32 %v3171, %v3437
    %v3442 = vld [vmem:[%s2 + $0x50] sm:$0xff]
    %v3443 = vld [vmem:[%s2 + $0x58] sm:$0xff]
    %3444 = vmatpush.msra.mxu0 0.0
    %3445 = vmatpush.msra.mxu0 0.0
    %3446 = vmatpush.msra.mxu0 0.0
    %3447 = vmatpush.msra.mxu0 0.0
    %3448 = vmatpush.msra.mxu0 0.0
    %3449 = vmatpush.msra.mxu0 0.0
    %3450 = vmatpush.msra.mxu0 0.0
    %3451 = vmatpush.msra.mxu0 0.0
    %3452 = vmatpush.msra.mxu0 0.0
    %3453 = vmatpush.msra.mxu0 0.0
    %3454 = vmatpush.msra.mxu0 0.0
    %3455 = vmatpush.msra.mxu0 0.0
    %3456 = vmatpush.msra.mxu0 0.0
    %3457 = vmatpush.msra.mxu0 0.0
    %v3458 = vand.u32 %v3443, 4294901760
    %3459 = vmatpush.msra.mxu0 %v3458
    %v3460 = vand.u32 %v3442, 4294901760
    %3461 = vmatpush.msra.mxu0 %v3460
    %v3462 = vand.u32 %v2095, 4294901760
    %v3463 = vsub.f32 %v2095, %v3462
    %v3464 = vand.u32 %v3463, 4294901760
    %v3465 = vsub.f32 %v3463, %v3464
    %v3466 = vand.u32 %v3465, 4294901760
    %3467 = vmatmul.f32.gmra.mxu0 %v3466
    %v3468 = vpop.f32.mrf.mxu0
    %v3469 = vadd.f32 0.0, %v3468
    %v3470 = vand.u32 %v2098, 4294901760
    %v3471 = vsub.f32 %v2098, %v3470
    %v3472 = vand.u32 %v3471, 4294901760
    %v3473 = vsub.f32 %v3471, %v3472
    %v3474 = vand.u32 %v3473, 4294901760
    %3475 = vmatmul.f32.gmra.mxu0 %v3474
    %v3476 = vpop.f32.mrf.mxu0
    %v3477 = vadd.f32 0.0, %v3476
    %v3478 = vand.u32 %v2101, 4294901760
    %v3479 = vsub.f32 %v2101, %v3478
    %v3480 = vand.u32 %v3479, 4294901760
    %v3481 = vsub.f32 %v3479, %v3480
    %v3482 = vand.u32 %v3481, 4294901760
    %3483 = vmatmul.f32.gmra.mxu0 %v3482
    %v3484 = vpop.f32.mrf.mxu0
    %v3485 = vadd.f32 0.0, %v3484
    %v3486 = vand.u32 %v2104, 4294901760
    %v3487 = vsub.f32 %v2104, %v3486
    %v3488 = vand.u32 %v3487, 4294901760
    %v3489 = vsub.f32 %v3487, %v3488
    %v3490 = vand.u32 %v3489, 4294901760
    %3491 = vmatmul.f32.gmra.mxu0 %v3490
    %v3492 = vpop.f32.mrf.mxu0
    %v3493 = vadd.f32 0.0, %v3492
    %3494 = vdwg.mxu0
    %3495 = vmatpush.msra.mxu0 0.0
    %3496 = vmatpush.msra.mxu0 0.0
    %3497 = vmatpush.msra.mxu0 0.0
    %3498 = vmatpush.msra.mxu0 0.0
    %3499 = vmatpush.msra.mxu0 0.0
    %3500 = vmatpush.msra.mxu0 0.0
    %3501 = vmatpush.msra.mxu0 0.0
    %3502 = vmatpush.msra.mxu0 0.0
    %3503 = vmatpush.msra.mxu0 0.0
    %3504 = vmatpush.msra.mxu0 0.0
    %3505 = vmatpush.msra.mxu0 0.0
    %3506 = vmatpush.msra.mxu0 0.0
    %3507 = vmatpush.msra.mxu0 0.0
    %3508 = vmatpush.msra.mxu0 0.0
    %v3509 = vand.u32 %v3443, 4294901760
    %v3510 = vsub.f32 %v3443, %v3509
    %v3511 = vand.u32 %v3510, 4294901760
    %v3512 = vsub.f32 %v3510, %v3511
    %v3513 = vand.u32 %v3512, 4294901760
    %3514 = vmatpush.msra.mxu0 %v3513
    %v3515 = vand.u32 %v3442, 4294901760
    %v3516 = vsub.f32 %v3442, %v3515
    %v3517 = vand.u32 %v3516, 4294901760
    %v3518 = vsub.f32 %v3516, %v3517
    %v3519 = vand.u32 %v3518, 4294901760
    %3520 = vmatpush.msra.mxu0 %v3519
    %v3521 = vand.u32 %v2095, 4294901760
    %3522 = vmatmul.f32.gmra.mxu0 %v3521
    %v3523 = vpop.f32.mrf.mxu0
    %v3524 = vadd.f32 %v3469, %v3523
    %v3525 = vand.u32 %v2098, 4294901760
    %3526 = vmatmul.f32.gmra.mxu0 %v3525
    %v3527 = vpop.f32.mrf.mxu0
    %v3528 = vadd.f32 %v3477, %v3527
    %v3529 = vand.u32 %v2101, 4294901760
    %3530 = vmatmul.f32.gmra.mxu0 %v3529
    %v3531 = vpop.f32.mrf.mxu0
    %v3532 = vadd.f32 %v3485, %v3531
    %v3533 = vand.u32 %v2104, 4294901760
    %3534 = vmatmul.f32.gmra.mxu0 %v3533
    %v3535 = vpop.f32.mrf.mxu0
    %v3536 = vadd.f32 %v3493, %v3535
    %3537 = vdwg.mxu0
    %3538 = vmatpush.msra.mxu0 0.0
    %3539 = vmatpush.msra.mxu0 0.0
    %3540 = vmatpush.msra.mxu0 0.0
    %3541 = vmatpush.msra.mxu0 0.0
    %3542 = vmatpush.msra.mxu0 0.0
    %3543 = vmatpush.msra.mxu0 0.0
    %3544 = vmatpush.msra.mxu0 0.0
    %3545 = vmatpush.msra.mxu0 0.0
    %3546 = vmatpush.msra.mxu0 0.0
    %3547 = vmatpush.msra.mxu0 0.0
    %3548 = vmatpush.msra.mxu0 0.0
    %3549 = vmatpush.msra.mxu0 0.0
    %3550 = vmatpush.msra.mxu0 0.0
    %3551 = vmatpush.msra.mxu0 0.0
    %v3552 = vand.u32 %v3443, 4294901760
    %v3553 = vsub.f32 %v3443, %v3552
    %3554 = vmatpush.msra.mxu0 %v3553
    %v3555 = vand.u32 %v3442, 4294901760
    %v3556 = vsub.f32 %v3442, %v3555
    %3557 = vmatpush.msra.mxu0 %v3556
    %v3558 = vand.u32 %v2095, 4294901760
    %v3559 = vsub.f32 %v2095, %v3558
    %3560 = vmatmul.f32.gmra.mxu0 %v3559
    %v3561 = vpop.f32.mrf.mxu0
    %v3562 = vadd.f32 %v3524, %v3561
    %v3563 = vand.u32 %v2098, 4294901760
    %v3564 = vsub.f32 %v2098, %v3563
    %3565 = vmatmul.f32.gmra.mxu0 %v3564
    %v3566 = vpop.f32.mrf.mxu0
    %v3567 = vadd.f32 %v3528, %v3566
    %v3568 = vand.u32 %v2101, 4294901760
    %v3569 = vsub.f32 %v2101, %v3568
    %3570 = vmatmul.f32.gmra.mxu0 %v3569
    %v3571 = vpop.f32.mrf.mxu0
    %v3572 = vadd.f32 %v3532, %v3571
    %v3573 = vand.u32 %v2104, 4294901760
    %v3574 = vsub.f32 %v2104, %v3573
    %3575 = vmatmul.f32.gmra.mxu0 %v3574
    %v3576 = vpop.f32.mrf.mxu0
    %v3577 = vadd.f32 %v3536, %v3576
    %3578 = vdwg.mxu0
    %3579 = vmatpush.msra.mxu0 0.0
    %3580 = vmatpush.msra.mxu0 0.0
    %3581 = vmatpush.msra.mxu0 0.0
    %3582 = vmatpush.msra.mxu0 0.0
    %3583 = vmatpush.msra.mxu0 0.0
    %3584 = vmatpush.msra.mxu0 0.0
    %3585 = vmatpush.msra.mxu0 0.0
    %3586 = vmatpush.msra.mxu0 0.0
    %3587 = vmatpush.msra.mxu0 0.0
    %3588 = vmatpush.msra.mxu0 0.0
    %3589 = vmatpush.msra.mxu0 0.0
    %3590 = vmatpush.msra.mxu0 0.0
    %3591 = vmatpush.msra.mxu0 0.0
    %3592 = vmatpush.msra.mxu0 0.0
    %v3593 = vand.u32 %v3443, 4294901760
    %3594 = vmatpush.msra.mxu0 %v3593
    %v3595 = vand.u32 %v3442, 4294901760
    %3596 = vmatpush.msra.mxu0 %v3595
    %v3597 = vand.u32 %v2095, 4294901760
    %v3598 = vsub.f32 %v2095, %v3597
    %v3599 = vand.u32 %v3598, 4294901760
    %3600 = vmatmul.f32.gmra.mxu0 %v3599
    %v3601 = vpop.f32.mrf.mxu0
    %v3602 = vadd.f32 %v3562, %v3601
    %v3603 = vand.u32 %v2098, 4294901760
    %v3604 = vsub.f32 %v2098, %v3603
    %v3605 = vand.u32 %v3604, 4294901760
    %3606 = vmatmul.f32.gmra.mxu0 %v3605
    %v3607 = vpop.f32.mrf.mxu0
    %v3608 = vadd.f32 %v3567, %v3607
    %v3609 = vand.u32 %v2101, 4294901760
    %v3610 = vsub.f32 %v2101, %v3609
    %v3611 = vand.u32 %v3610, 4294901760
    %3612 = vmatmul.f32.gmra.mxu0 %v3611
    %v3613 = vpop.f32.mrf.mxu0
    %v3614 = vadd.f32 %v3572, %v3613
    %v3615 = vand.u32 %v2104, 4294901760
    %v3616 = vsub.f32 %v2104, %v3615
    %v3617 = vand.u32 %v3616, 4294901760
    %3618 = vmatmul.f32.gmra.mxu0 %v3617
    %v3619 = vpop.f32.mrf.mxu0
    %v3620 = vadd.f32 %v3577, %v3619
    %3621 = vdwg.mxu0
    %3622 = vmatpush.msra.mxu0 0.0
    %3623 = vmatpush.msra.mxu0 0.0
    %3624 = vmatpush.msra.mxu0 0.0
    %3625 = vmatpush.msra.mxu0 0.0
    %3626 = vmatpush.msra.mxu0 0.0
    %3627 = vmatpush.msra.mxu0 0.0
    %3628 = vmatpush.msra.mxu0 0.0
    %3629 = vmatpush.msra.mxu0 0.0
    %3630 = vmatpush.msra.mxu0 0.0
    %3631 = vmatpush.msra.mxu0 0.0
    %3632 = vmatpush.msra.mxu0 0.0
    %3633 = vmatpush.msra.mxu0 0.0
    %3634 = vmatpush.msra.mxu0 0.0
    %3635 = vmatpush.msra.mxu0 0.0
    %v3636 = vand.u32 %v3443, 4294901760
    %v3637 = vsub.f32 %v3443, %v3636
    %v3638 = vand.u32 %v3637, 4294901760
    %3639 = vmatpush.msra.mxu0 %v3638
    %v3640 = vand.u32 %v3442, 4294901760
    %v3641 = vsub.f32 %v3442, %v3640
    %v3642 = vand.u32 %v3641, 4294901760
    %3643 = vmatpush.msra.mxu0 %v3642
    %v3644 = vand.u32 %v2095, 4294901760
    %3645 = vmatmul.f32.gmra.mxu0 %v3644
    %v3646 = vpop.f32.mrf.mxu0
    %v3647 = vadd.f32 %v3602, %v3646
    %v3648 = vand.u32 %v2098, 4294901760
    %3649 = vmatmul.f32.gmra.mxu0 %v3648
    %v3650 = vpop.f32.mrf.mxu0
    %v3651 = vadd.f32 %v3608, %v3650
    %v3652 = vand.u32 %v2101, 4294901760
    %3653 = vmatmul.f32.gmra.mxu0 %v3652
    %v3654 = vpop.f32.mrf.mxu0
    %v3655 = vadd.f32 %v3614, %v3654
    %v3656 = vand.u32 %v2104, 4294901760
    %3657 = vmatmul.f32.gmra.mxu0 %v3656
    %v3658 = vpop.f32.mrf.mxu0
    %v3659 = vadd.f32 %v3620, %v3658
    %3660 = vdwg.mxu0
    %3661 = vmatpush.msra.mxu0 0.0
    %3662 = vmatpush.msra.mxu0 0.0
    %3663 = vmatpush.msra.mxu0 0.0
    %3664 = vmatpush.msra.mxu0 0.0
    %3665 = vmatpush.msra.mxu0 0.0
    %3666 = vmatpush.msra.mxu0 0.0
    %3667 = vmatpush.msra.mxu0 0.0
    %3668 = vmatpush.msra.mxu0 0.0
    %3669 = vmatpush.msra.mxu0 0.0
    %3670 = vmatpush.msra.mxu0 0.0
    %3671 = vmatpush.msra.mxu0 0.0
    %3672 = vmatpush.msra.mxu0 0.0
    %3673 = vmatpush.msra.mxu0 0.0
    %3674 = vmatpush.msra.mxu0 0.0
    %v3675 = vand.u32 %v3443, 4294901760
    %3676 = vmatpush.msra.mxu0 %v3675
    %v3677 = vand.u32 %v3442, 4294901760
    %3678 = vmatpush.msra.mxu0 %v3677
    %v3679 = vand.u32 %v2095, 4294901760
    %3680 = vmatmul.f32.gmra.mxu0 %v3679
    %v3681 = vpop.f32.mrf.mxu0
    %v3682 = vadd.f32 %v3647, %v3681
    %v3683 = vand.u32 %v2098, 4294901760
    %3684 = vmatmul.f32.gmra.mxu0 %v3683
    %v3685 = vpop.f32.mrf.mxu0
    %v3686 = vadd.f32 %v3651, %v3685
    %v3687 = vand.u32 %v2101, 4294901760
    %3688 = vmatmul.f32.gmra.mxu0 %v3687
    %v3689 = vpop.f32.mrf.mxu0
    %v3690 = vadd.f32 %v3655, %v3689
    %v3691 = vand.u32 %v2104, 4294901760
    %3692 = vmatmul.f32.gmra.mxu0 %v3691
    %v3693 = vpop.f32.mrf.mxu0
    %v3694 = vadd.f32 %v3659, %v3693
    %3695 = vdwg.mxu0
    %v3696 = vrot.slane %v3682, 2
    %v3697 = vrot.slane %v3686, 2
    %v3698 = vrot.slane %v3690, 2
    %v3699 = vrot.slane %v3694, 2
    %v3700 = vsel %vm1766, %v3698, %v3699
    %v3701 = vsel %vm1766, %v3697, %v3698
    %v3702 = vsel %vm1766, %v3696, %v3697
    %v3703 = vsel %vm1766, %v3699, %v3696
    %v3704 = vsel %vm1783, %v3702, 0.0
    %v3705 = vsel %vm1784, %v3701, 0.0
    %v3706 = vsel %vm1785, %v3700, 0.0
    %v3707 = vsel %vm1786, %v3703, 0.0
    %v3708 = vadd.f32 %v3438, %v3704
    %v3709 = vadd.f32 %v3439, %v3705
    %v3710 = vadd.f32 %v3440, %v3706
    %v3711 = vadd.f32 %v3441, %v3707
    %v3712 = vld [vmem:[%s2 + $0x60] sm:$0xff]
    %v3713 = vld [vmem:[%s2 + $0x68] sm:$0xff]
    %3714 = vmatpush.msra.mxu0 0.0
    %3715 = vmatpush.msra.mxu0 0.0
    %3716 = vmatpush.msra.mxu0 0.0
    %3717 = vmatpush.msra.mxu0 0.0
    %3718 = vmatpush.msra.mxu0 0.0
    %3719 = vmatpush.msra.mxu0 0.0
    %3720 = vmatpush.msra.mxu0 0.0
    %3721 = vmatpush.msra.mxu0 0.0
    %3722 = vmatpush.msra.mxu0 0.0
    %3723 = vmatpush.msra.mxu0 0.0
    %3724 = vmatpush.msra.mxu0 0.0
    %3725 = vmatpush.msra.mxu0 0.0
    %3726 = vmatpush.msra.mxu0 0.0
    %3727 = vmatpush.msra.mxu0 0.0
    %v3728 = vand.u32 %v3713, 4294901760
    %3729 = vmatpush.msra.mxu0 %v3728
    %v3730 = vand.u32 %v3712, 4294901760
    %3731 = vmatpush.msra.mxu0 %v3730
    %v3732 = vand.u32 %v2095, 4294901760
    %v3733 = vsub.f32 %v2095, %v3732
    %v3734 = vand.u32 %v3733, 4294901760
    %v3735 = vsub.f32 %v3733, %v3734
    %v3736 = vand.u32 %v3735, 4294901760
    %3737 = vmatmul.f32.gmra.mxu0 %v3736
    %v3738 = vpop.f32.mrf.mxu0
    %v3739 = vadd.f32 0.0, %v3738
    %v3740 = vand.u32 %v2098, 4294901760
    %v3741 = vsub.f32 %v2098, %v3740
    %v3742 = vand.u32 %v3741, 4294901760
    %v3743 = vsub.f32 %v3741, %v3742
    %v3744 = vand.u32 %v3743, 4294901760
    %3745 = vmatmul.f32.gmra.mxu0 %v3744
    %v3746 = vpop.f32.mrf.mxu0
    %v3747 = vadd.f32 0.0, %v3746
    %v3748 = vand.u32 %v2101, 4294901760
    %v3749 = vsub.f32 %v2101, %v3748
    %v3750 = vand.u32 %v3749, 4294901760
    %v3751 = vsub.f32 %v3749, %v3750
    %v3752 = vand.u32 %v3751, 4294901760
    %3753 = vmatmul.f32.gmra.mxu0 %v3752
    %v3754 = vpop.f32.mrf.mxu0
    %v3755 = vadd.f32 0.0, %v3754
    %v3756 = vand.u32 %v2104, 4294901760
    %v3757 = vsub.f32 %v2104, %v3756
    %v3758 = vand.u32 %v3757, 4294901760
    %v3759 = vsub.f32 %v3757, %v3758
    %v3760 = vand.u32 %v3759, 4294901760
    %3761 = vmatmul.f32.gmra.mxu0 %v3760
    %v3762 = vpop.f32.mrf.mxu0
    %v3763 = vadd.f32 0.0, %v3762
    %3764 = vdwg.mxu0
    %3765 = vmatpush.msra.mxu0 0.0
    %3766 = vmatpush.msra.mxu0 0.0
    %3767 = vmatpush.msra.mxu0 0.0
    %3768 = vmatpush.msra.mxu0 0.0
    %3769 = vmatpush.msra.mxu0 0.0
    %3770 = vmatpush.msra.mxu0 0.0
    %3771 = vmatpush.msra.mxu0 0.0
    %3772 = vmatpush.msra.mxu0 0.0
    %3773 = vmatpush.msra.mxu0 0.0
    %3774 = vmatpush.msra.mxu0 0.0
    %3775 = vmatpush.msra.mxu0 0.0
    %3776 = vmatpush.msra.mxu0 0.0
    %3777 = vmatpush.msra.mxu0 0.0
    %3778 = vmatpush.msra.mxu0 0.0
    %v3779 = vand.u32 %v3713, 4294901760
    %v3780 = vsub.f32 %v3713, %v3779
    %v3781 = vand.u32 %v3780, 4294901760
    %v3782 = vsub.f32 %v3780, %v3781
    %v3783 = vand.u32 %v3782, 4294901760
    %3784 = vmatpush.msra.mxu0 %v3783
    %v3785 = vand.u32 %v3712, 4294901760
    %v3786 = vsub.f32 %v3712, %v3785
    %v3787 = vand.u32 %v3786, 4294901760
    %v3788 = vsub.f32 %v3786, %v3787
    %v3789 = vand.u32 %v3788, 4294901760
    %3790 = vmatpush.msra.mxu0 %v3789
    %v3791 = vand.u32 %v2095, 4294901760
    %3792 = vmatmul.f32.gmra.mxu0 %v3791
    %v3793 = vpop.f32.mrf.mxu0
    %v3794 = vadd.f32 %v3739, %v3793
    %v3795 = vand.u32 %v2098, 4294901760
    %3796 = vmatmul.f32.gmra.mxu0 %v3795
    %v3797 = vpop.f32.mrf.mxu0
    %v3798 = vadd.f32 %v3747, %v3797
    %v3799 = vand.u32 %v2101, 4294901760
    %3800 = vmatmul.f32.gmra.mxu0 %v3799
    %v3801 = vpop.f32.mrf.mxu0
    %v3802 = vadd.f32 %v3755, %v3801
    %v3803 = vand.u32 %v2104, 4294901760
    %3804 = vmatmul.f32.gmra.mxu0 %v3803
    %v3805 = vpop.f32.mrf.mxu0
    %v3806 = vadd.f32 %v3763, %v3805
    %3807 = vdwg.mxu0
    %3808 = vmatpush.msra.mxu0 0.0
    %3809 = vmatpush.msra.mxu0 0.0
    %3810 = vmatpush.msra.mxu0 0.0
    %3811 = vmatpush.msra.mxu0 0.0
    %3812 = vmatpush.msra.mxu0 0.0
    %3813 = vmatpush.msra.mxu0 0.0
    %3814 = vmatpush.msra.mxu0 0.0
    %3815 = vmatpush.msra.mxu0 0.0
    %3816 = vmatpush.msra.mxu0 0.0
    %3817 = vmatpush.msra.mxu0 0.0
    %3818 = vmatpush.msra.mxu0 0.0
    %3819 = vmatpush.msra.mxu0 0.0
    %3820 = vmatpush.msra.mxu0 0.0
    %3821 = vmatpush.msra.mxu0 0.0
    %v3822 = vand.u32 %v3713, 4294901760
    %v3823 = vsub.f32 %v3713, %v3822
    %3824 = vmatpush.msra.mxu0 %v3823
    %v3825 = vand.u32 %v3712, 4294901760
    %v3826 = vsub.f32 %v3712, %v3825
    %3827 = vmatpush.msra.mxu0 %v3826
    %v3828 = vand.u32 %v2095, 4294901760
    %v3829 = vsub.f32 %v2095, %v3828
    %3830 = vmatmul.f32.gmra.mxu0 %v3829
    %v3831 = vpop.f32.mrf.mxu0
    %v3832 = vadd.f32 %v3794, %v3831
    %v3833 = vand.u32 %v2098, 4294901760
    %v3834 = vsub.f32 %v2098, %v3833
    %3835 = vmatmul.f32.gmra.mxu0 %v3834
    %v3836 = vpop.f32.mrf.mxu0
    %v3837 = vadd.f32 %v3798, %v3836
    %v3838 = vand.u32 %v2101, 4294901760
    %v3839 = vsub.f32 %v2101, %v3838
    %3840 = vmatmul.f32.gmra.mxu0 %v3839
    %v3841 = vpop.f32.mrf.mxu0
    %v3842 = vadd.f32 %v3802, %v3841
    %v3843 = vand.u32 %v2104, 4294901760
    %v3844 = vsub.f32 %v2104, %v3843
    %3845 = vmatmul.f32.gmra.mxu0 %v3844
    %v3846 = vpop.f32.mrf.mxu0
    %v3847 = vadd.f32 %v3806, %v3846
    %3848 = vdwg.mxu0
    %3849 = vmatpush.msra.mxu0 0.0
    %3850 = vmatpush.msra.mxu0 0.0
    %3851 = vmatpush.msra.mxu0 0.0
    %3852 = vmatpush.msra.mxu0 0.0
    %3853 = vmatpush.msra.mxu0 0.0
    %3854 = vmatpush.msra.mxu0 0.0
    %3855 = vmatpush.msra.mxu0 0.0
    %3856 = vmatpush.msra.mxu0 0.0
    %3857 = vmatpush.msra.mxu0 0.0
    %3858 = vmatpush.msra.mxu0 0.0
    %3859 = vmatpush.msra.mxu0 0.0
    %3860 = vmatpush.msra.mxu0 0.0
    %3861 = vmatpush.msra.mxu0 0.0
    %3862 = vmatpush.msra.mxu0 0.0
    %v3863 = vand.u32 %v3713, 4294901760
    %3864 = vmatpush.msra.mxu0 %v3863
    %v3865 = vand.u32 %v3712, 4294901760
    %3866 = vmatpush.msra.mxu0 %v3865
    %v3867 = vand.u32 %v2095, 4294901760
    %v3868 = vsub.f32 %v2095, %v3867
    %v3869 = vand.u32 %v3868, 4294901760
    %3870 = vmatmul.f32.gmra.mxu0 %v3869
    %v3871 = vpop.f32.mrf.mxu0
    %v3872 = vadd.f32 %v3832, %v3871
    %v3873 = vand.u32 %v2098, 4294901760
    %v3874 = vsub.f32 %v2098, %v3873
    %v3875 = vand.u32 %v3874, 4294901760
    %3876 = vmatmul.f32.gmra.mxu0 %v3875
    %v3877 = vpop.f32.mrf.mxu0
    %v3878 = vadd.f32 %v3837, %v3877
    %v3879 = vand.u32 %v2101, 4294901760
    %v3880 = vsub.f32 %v2101, %v3879
    %v3881 = vand.u32 %v3880, 4294901760
    %3882 = vmatmul.f32.gmra.mxu0 %v3881
    %v3883 = vpop.f32.mrf.mxu0
    %v3884 = vadd.f32 %v3842, %v3883
    %v3885 = vand.u32 %v2104, 4294901760
    %v3886 = vsub.f32 %v2104, %v3885
    %v3887 = vand.u32 %v3886, 4294901760
    %3888 = vmatmul.f32.gmra.mxu0 %v3887
    %v3889 = vpop.f32.mrf.mxu0
    %v3890 = vadd.f32 %v3847, %v3889
    %3891 = vdwg.mxu0
    %3892 = vmatpush.msra.mxu0 0.0
    %3893 = vmatpush.msra.mxu0 0.0
    %3894 = vmatpush.msra.mxu0 0.0
    %3895 = vmatpush.msra.mxu0 0.0
    %3896 = vmatpush.msra.mxu0 0.0
    %3897 = vmatpush.msra.mxu0 0.0
    %3898 = vmatpush.msra.mxu0 0.0
    %3899 = vmatpush.msra.mxu0 0.0
    %3900 = vmatpush.msra.mxu0 0.0
    %3901 = vmatpush.msra.mxu0 0.0
    %3902 = vmatpush.msra.mxu0 0.0
    %3903 = vmatpush.msra.mxu0 0.0
    %3904 = vmatpush.msra.mxu0 0.0
    %3905 = vmatpush.msra.mxu0 0.0
    %v3906 = vand.u32 %v3713, 4294901760
    %v3907 = vsub.f32 %v3713, %v3906
    %v3908 = vand.u32 %v3907, 4294901760
    %3909 = vmatpush.msra.mxu0 %v3908
    %v3910 = vand.u32 %v3712, 4294901760
    %v3911 = vsub.f32 %v3712, %v3910
    %v3912 = vand.u32 %v3911, 4294901760
    %3913 = vmatpush.msra.mxu0 %v3912
    %v3914 = vand.u32 %v2095, 4294901760
    %3915 = vmatmul.f32.gmra.mxu0 %v3914
    %v3916 = vpop.f32.mrf.mxu0
    %v3917 = vadd.f32 %v3872, %v3916
    %v3918 = vand.u32 %v2098, 4294901760
    %3919 = vmatmul.f32.gmra.mxu0 %v3918
    %v3920 = vpop.f32.mrf.mxu0
    %v3921 = vadd.f32 %v3878, %v3920
    %v3922 = vand.u32 %v2101, 4294901760
    %3923 = vmatmul.f32.gmra.mxu0 %v3922
    %v3924 = vpop.f32.mrf.mxu0
    %v3925 = vadd.f32 %v3884, %v3924
    %v3926 = vand.u32 %v2104, 4294901760
    %3927 = vmatmul.f32.gmra.mxu0 %v3926
    %v3928 = vpop.f32.mrf.mxu0
    %v3929 = vadd.f32 %v3890, %v3928
    %3930 = vdwg.mxu0
    %3931 = vmatpush.msra.mxu0 0.0
    %3932 = vmatpush.msra.mxu0 0.0
    %3933 = vmatpush.msra.mxu0 0.0
    %3934 = vmatpush.msra.mxu0 0.0
    %3935 = vmatpush.msra.mxu0 0.0
    %3936 = vmatpush.msra.mxu0 0.0
    %3937 = vmatpush.msra.mxu0 0.0
    %3938 = vmatpush.msra.mxu0 0.0
    %3939 = vmatpush.msra.mxu0 0.0
    %3940 = vmatpush.msra.mxu0 0.0
    %3941 = vmatpush.msra.mxu0 0.0
    %3942 = vmatpush.msra.mxu0 0.0
    %3943 = vmatpush.msra.mxu0 0.0
    %3944 = vmatpush.msra.mxu0 0.0
    %v3945 = vand.u32 %v3713, 4294901760
    %3946 = vmatpush.msra.mxu0 %v3945
    %v3947 = vand.u32 %v3712, 4294901760
    %3948 = vmatpush.msra.mxu0 %v3947
    %v3949 = vand.u32 %v2095, 4294901760
    %3950 = vmatmul.f32.gmra.mxu0 %v3949
    %v3951 = vpop.f32.mrf.mxu0
    %v3952 = vadd.f32 %v3917, %v3951
    %v3953 = vand.u32 %v2098, 4294901760
    %3954 = vmatmul.f32.gmra.mxu0 %v3953
    %v3955 = vpop.f32.mrf.mxu0
    %v3956 = vadd.f32 %v3921, %v3955
    %v3957 = vand.u32 %v2101, 4294901760
    %3958 = vmatmul.f32.gmra.mxu0 %v3957
    %v3959 = vpop.f32.mrf.mxu0
    %v3960 = vadd.f32 %v3925, %v3959
    %v3961 = vand.u32 %v2104, 4294901760
    %3962 = vmatmul.f32.gmra.mxu0 %v3961
    %v3963 = vpop.f32.mrf.mxu0
    %v3964 = vadd.f32 %v3929, %v3963
    %3965 = vdwg.mxu0
    %v3966 = vrot.slane %v3952, 3
    %v3967 = vrot.slane %v3956, 3
    %v3968 = vrot.slane %v3960, 3
    %v3969 = vrot.slane %v3964, 3
    %v3970 = vsel %vm2053, %v3968, %v3969
    %v3971 = vsel %vm2053, %v3967, %v3968
    %v3972 = vsel %vm2053, %v3966, %v3967
    %v3973 = vsel %vm2053, %v3969, %v3966
    %v3974 = vsel %vm2070, %v3972, 0.0
    %v3975 = vsel %vm2071, %v3971, 0.0
    %v3976 = vsel %vm2072, %v3970, 0.0
    %v3977 = vsel %vm2073, %v3973, 0.0
    %v3978 = vadd.f32 %v3708, %v3974
    %v3979 = vadd.f32 %v3709, %v3975
    %v3980 = vadd.f32 %v3710, %v3976
    %v3981 = vadd.f32 %v3711, %v3977
    %v3982 = vstv %s2091
    %v3983 = vadd.f32 %v3978, %v3982
    %v3984 = vadd.f32 %v3979, %v3982
    %v3985 = vadd.f32 %v3980, %v3982
    %v3986 = vadd.f32 %v3981, %v3982
    %v3987 = vxor.u32 %v3983, 2147483648
    %v3988 = vxor.u32 %v3984, 2147483648
    %v3989 = vxor.u32 %v3985, 2147483648
    %v3990 = vxor.u32 %v3986, 2147483648
    %v3991 = vmul.f32 %v3987, 1.442695
    %v3992 = vpow.pop %v3991
    %v3993 = vmul.f32 %v3988, 1.442695
    %v3994 = vpow.pop %v3993
    %v3995 = vmul.f32 %v3989, 1.442695
    %v3996 = vpow.pop %v3995
    %v3997 = vmul.f32 %v3990, 1.442695
    %v3998 = vpow.pop %v3997
    %v3999 = vadd.f32 %v3992, 1.0
    %v4000 = vadd.f32 %v3994, 1.0
    %v4001 = vadd.f32 %v3996, 1.0
    %v4002 = vadd.f32 %v3998, 1.0
    %v4003 = vrcp.pop %v3999
    %v4004 = vmul.f32 %v3999, %v4003
    %v4005 = vsub.f32 1.0, %v4004
    %v4006 = vmul.f32 %v4003, %v4005
    %v4007 = vadd.f32 %v4003, %v4006
    %vm4008 = vweird.f32 %v3999
    %vm4009 = vweird.f32 %v4003
    %vm4010 = vmor %vm4008, %vm4009
    %v4011 = vsel %vm4010, %v4003, %v4007
    %v4012 = vand.u32 2147483647, %v3999
    %vm4013 = vcmp.eq.f32.partialorder %v4012, 8.507059e+37
    %v4014 = vand.u32 %v3999, 2147483648
    %v4015 = vor.u32 1.1754944e-38, %v4014
    %v4016 = vsel %vm4013, %v4015, %v4011
    %v4017 = vmul.f32 1.0, %v4016
    %v4018 = vrcp.pop %v4000
    %v4019 = vmul.f32 %v4000, %v4018
    %v4020 = vsub.f32 1.0, %v4019
    %v4021 = vmul.f32 %v4018, %v4020
    %v4022 = vadd.f32 %v4018, %v4021
    %vm4023 = vweird.f32 %v4000
    %vm4024 = vweird.f32 %v4018
    %vm4025 = vmor %vm4023, %vm4024
    %v4026 = vsel %vm4025, %v4018, %v4022
    %v4027 = vand.u32 2147483647, %v4000
    %vm4028 = vcmp.eq.f32.partialorder %v4027, 8.507059e+37
    %v4029 = vand.u32 %v4000, 2147483648
    %v4030 = vor.u32 1.1754944e-38, %v4029
    %v4031 = vsel %vm4028, %v4030, %v4026
    %v4032 = vmul.f32 1.0, %v4031
    %v4033 = vrcp.pop %v4001
    %v4034 = vmul.f32 %v4001, %v4033
    %v4035 = vsub.f32 1.0, %v4034
    %v4036 = vmul.f32 %v4033, %v4035
    %v4037 = vadd.f32 %v4033, %v4036
    %vm4038 = vweird.f32 %v4001
    %vm4039 = vweird.f32 %v4033
    %vm4040 = vmor %vm4038, %vm4039
    %v4041 = vsel %vm4040, %v4033, %v4037
    %v4042 = vand.u32 2147483647, %v4001
    %vm4043 = vcmp.eq.f32.partialorder %v4042, 8.507059e+37
    %v4044 = vand.u32 %v4001, 2147483648
    %v4045 = vor.u32 1.1754944e-38, %v4044
    %v4046 = vsel %vm4043, %v4045, %v4041
    %v4047 = vmul.f32 1.0, %v4046
    %v4048 = vrcp.pop %v4002
    %v4049 = vmul.f32 %v4002, %v4048
    %v4050 = vsub.f32 1.0, %v4049
    %v4051 = vmul.f32 %v4048, %v4050
    %v4052 = vadd.f32 %v4048, %v4051
    %vm4053 = vweird.f32 %v4002
    %vm4054 = vweird.f32 %v4048
    %vm4055 = vmor %vm4053, %vm4054
    %v4056 = vsel %vm4055, %v4048, %v4052
    %v4057 = vand.u32 2147483647, %v4002
    %vm4058 = vcmp.eq.f32.partialorder %v4057, 8.507059e+37
    %v4059 = vand.u32 %v4002, 2147483648
    %v4060 = vor.u32 1.1754944e-38, %v4059
    %v4061 = vsel %vm4058, %v4060, %v4056
    %v4062 = vmul.f32 1.0, %v4061
    %v4063 = vmul.f32 %v4017, %v31
    %v4064 = vmul.f32 %v4032, %v32
    %v4065 = vmul.f32 %v4047, %v33
    %v4066 = vmul.f32 %v4062, %v34
    %4067 = vst.msk [vmem:[#allocation5] sm:$0xff] %vm91, %v4063
    %4068 = vst.msk [vmem:[#allocation5 + $0x8] sm:$0xff] %vm91, %v4064
    %4069 = vst.msk [vmem:[#allocation5 + $0x10] sm:$0xff] %vm91, %v4065
    %4070 = vst.msk [vmem:[#allocation5 + $0x18] sm:$0xff] %vm91, %v4066
    // Predicated region
    $region22: #{pa_layer.1} parent=1 // pred_check
      _
    $region23: #{pa_layer.1} parent=1 // pred_check_branch
      %4072 = sbr.rel (0) target = $region25
    $region24: #{pa_layer.1} parent=1 // pred_region
      %4074 = vsyncadd [#allocation3], 0
      %s4075 = sshll.u32 [#allocation5], 4
      %s4076 = int_to_ptr.vmem [resolvable:$true] %s4075
      %s4077 = sshll.u32 %s4, 4
      %s4078 = int_to_ptr.hbm [resolvable:$true] %s4077
      %4083 = dma.vmem_to_hbm [thread:$0]  %s4076, 512, %s4078, [#allocation3], 128, 128, 8
    $region25: #{pa_layer.1} parent=1 // pred_fallthru
      _
    // Predicated region
    $region26: #{pa_layer.1} parent=1 // pred_check
      _
    $region27: #{pa_layer.1} parent=1 // pred_check_branch
      %4085 = sbr.rel (0) target = $region29
    $region28: #{pa_layer.1} parent=1 // pred_region
      %4087 = dma.done [#allocation3], 512
    $region29: #{pa_layer.1} parent=1 // pred_fallthru
      _
    %4088 = vsyncpa [#allocation3], 1
    %4089 = vsyncpa [#allocation4], 1

</llo_original>
